<compile_context>
chip_gen: v6e
topology: v6e:2x2x1
jax: 0.10.0
libtpu: 0.0.40
codegen_flags: <defaults>
</compile_context>

<pallas_src>
import functools

import jax
import jax.numpy as jnp
import numpy as np
from jax.experimental import pallas as pl
from jax.experimental.pallas import tpu as pltpu

LANE = 128
NEG_BIG = -1e30  # finite "minus infinity" for padded classifier lanes


def _leaky_relu(x, alpha):
    return jnp.where(x > 0, x, alpha * x)


def mlp_kernel(x_ref, w1_ref, b1_ref, w3_ref, b3_ref, w4_ref, b4_ref,
               w5_ref, b5_ref, o_ref, *, alpha):
    cdt = w1_ref.dtype  # matmul-input dtype (bf16 or f32)

    # fc1 + LeakyReLU   (dropout == identity in eval mode)
    h = jnp.dot(x_ref[...], w1_ref[...],
                preferred_element_type=jnp.float32) + b1_ref[...]
    h = _leaky_relu(h, alpha).astype(cdt)
    # fc3 + LeakyReLU
    h = jnp.dot(h, w3_ref[...],
                preferred_element_type=jnp.float32) + b3_ref[...]
    h = _leaky_relu(h, alpha).astype(cdt)
    # fc4 + LeakyReLU
    h = jnp.dot(h, w4_ref[...],
                preferred_element_type=jnp.float32) + b4_ref[...]
    h = _leaky_relu(h, alpha).astype(cdt)
    # fc5 (padded classifier columns: zero weights + -1e30 bias -> exp() == 0 below)
    logits = jnp.dot(h, w5_ref[...],
                     preferred_element_type=jnp.float32) + b5_ref[...]
    # log_softmax over the class axis (stable, f32)
    m = jnp.max(logits, axis=-1, keepdims=True)
    s = logits - m
    lse = jnp.log(jnp.sum(jnp.exp(s), axis=-1, keepdims=True))
    o_ref[...] = (s - lse).astype(o_ref.dtype)


def _round_up(n, m):
    return ((n + m - 1) // m) * m


def _pick_tile_m(n):
    # Keep >= 2 grid steps (v7x has 2 TensorCores sharing the "parallel" axis),
    # grow the tile for large batches to amortize the ~0.35us per-step overhead
    # and fill the 256 MXU rows on v6e/v7x.  128 is already ideal on v5e.
    for tm in (512, 256):
        if n >= 2 * tm:
            return tm
    return 128


def prepare_params(params, use_bf16=True):
    """One-time prep: bf16 casts + classifier lane padding (hoisted off the hot path)."""
    in_dtype = jnp.bfloat16 if use_bf16 else jnp.float32
    (w1, b1), (w3, b3), (w4, b4), (w5, b5) = params
    nclass = w5.shape[1]
    nclass_p = _round_up(nclass, LANE)

    w5_p = jnp.zeros((w5.shape[0], nclass_p), in_dtype).at[:, :nclass].set(
        w5.astype(in_dtype))
    # Large finite negative bias on padded lanes: exp underflows to exactly 0,
    # and no -inf arithmetic that could turn into NaN under future rewrites.
    b5_p = jnp.full((1, nclass_p), NEG_BIG, jnp.float32).at[:, :nclass].set(
        b5.astype(jnp.float32))

    return (w1.astype(in_dtype), b1.astype(jnp.float32),
            w3.astype(in_dtype), b3.astype(jnp.float32),
            w4.astype(in_dtype), b4.astype(jnp.float32),
            w5_p, b5_p)


@functools.partial(
    jax.jit,
    static_argnames=("alpha", "tile_m", "nclass", "single_buffer_weights"))
def _mlp_forward_jit(x, w1, b1, w3, b3, w4, b4, w5, b5, *,
                     alpha, tile_m, nclass, single_buffer_weights):
    N, nfeat = x.shape
    nclass_p = w5.shape[1]
    in_dtype = w1.dtype

    # Batch pad only (K dim stays unpadded at nfeat); fuses under jit.
    n_p = _round_up(N, tile_m)
    x_c = x.astype(in_dtype)
    if n_p != N:
        x_c = jnp.zeros((n_p, nfeat), in_dtype).at[:N].set(x_c)

    weight_mode = pl.Buffered(1) if single_buffer_weights else None

    def fixed(shape):
        # Whole-array block, same block every grid step -> stays resident in
        # VMEM (no per-step re-DMA); single-buffered when supported.
        return pl.BlockSpec(shape, lambda i: (0,) * len(shape),
                            pipeline_mode=weight_mode)

    grid = (n_p // tile_m,)
    kernel = functools.partial(mlp_kernel, alpha=alpha)

    out = pl.pallas_call(
        kernel,
        out_shape=jax.ShapeDtypeStruct((n_p, nclass_p), jnp.float32),
        grid_spec=pltpu.PrefetchScalarGridSpec(
            num_scalar_prefetch=0,
            grid=grid,
            in_specs=[
                pl.BlockSpec((tile_m, nfeat), lambda i: (i, 0)),  # x tile, K unpadded
                fixed(w1.shape), fixed(b1.shape),
                fixed(w3.shape), fixed(b3.shape),
                fixed(w4.shape), fixed(b4.shape),
                fixed(w5.shape), fixed(b5.shape),
            ],
            out_specs=pl.BlockSpec((tile_m, nclass_p), lambda i: (i, 0)),
        ),
        compiler_params=pltpu.CompilerParams(
            dimension_semantics=("parallel",)),
    )(x_c, w1, b1, w3, b3, w4, b4, w5, b5)

    return out[:N, :nclass]


def mlp_forward(x, prepped_params, nclass, *, alpha, tile_m=None):
    if tile_m is None:
        tile_m = _pick_tile_m(x.shape[0])
    try:
        return _mlp_forward_jit(x, *prepped_params, alpha=alpha, tile_m=tile_m,
                                nclass=nclass, single_buffer_weights=True)
    except Exception:
        # Fallback if pl.Buffered(1) single-buffering is rejected by this jax build.
        return _mlp_forward_jit(x, *prepped_params, alpha=alpha, tile_m=tile_m,
                                nclass=nclass, single_buffer_weights=False)


def init_params(key, nfeat, nclass):
    # Deterministic synthetic parameters (shapes match the PyTorch module,
    # stored as [in, out] so the kernel does x @ W + b).
    dims = [(nfeat, 128), (128, 256), (256, 512), (512, nclass)]
    params = []
    for (din, dout) in dims:
        key, kw, kb = jax.random.split(key, 3)
        bound = 1.0 / np.sqrt(din)
        w = jax.random.uniform(kw, (din, dout), jnp.float32, -bound, bound)
        b = jax.random.uniform(kb, (1, dout), jnp.float32, -bound, bound)
        params.append((w, b))
    return params


def reference_forward(x, params, alpha, use_bf16=True):
    # Mirrors the kernel's dtype flow (bf16 matmul inputs, f32 accumulation /
    # elementwise) so the comparison validates the kernel, not the cast.
    in_dtype = jnp.bfloat16 if use_bf16 else jnp.float32
    h = x.astype(in_dtype)
    for i, (w, b) in enumerate(params):
        h = jnp.dot(h, w.astype(in_dtype),
                    preferred_element_type=jnp.float32) + b.astype(jnp.float32)
        if i < len(params) - 1:
            h = jnp.where(h > 0, h, alpha * h).astype(in_dtype)
    return jax.nn.log_softmax(h, axis=1)


if __name__ == "__main__":
    N, nfeat, nclass = 256, 32, 10
    alpha = 0.2  # LeakyReLU negative slope

    key = jax.random.PRNGKey(0)
    key, kx = jax.random.split(key)
    x = jax.random.normal(kx, (N, nfeat), jnp.float32)
    params = init_params(key, nfeat, nclass)

    # One-time parameter prep (padding / casts) — hoisted out of the per-call path.
    prepped = prepare_params(params, use_bf16=True)
    prepped = jax.block_until_ready(prepped)

    out = mlp_forward(x, prepped, nclass, alpha=alpha)
    out = jax.block_until_ready(out)

    ref = reference_forward(x, params, alpha, use_bf16=True)
    np.testing.assert_allclose(np.asarray(out), np.asarray(ref),
                               rtol=1e-3, atol=1e-3)
    print("KERNEL_OK")
</pallas_src>

<mosaic_0001>
module attributes {stable_mosaic.version = 11 : i64} {
  func.func @mlp_kernel(%arg0: i32, %arg1: memref<128x32xbf16, #tpu.memory_space<vmem>>, %arg2: memref<32x128xbf16, #tpu.memory_space<vmem>>, %arg3: memref<1x128xf32, #tpu.memory_space<vmem>>, %arg4: memref<128x256xbf16, #tpu.memory_space<vmem>>, %arg5: memref<1x256xf32, #tpu.memory_space<vmem>>, %arg6: memref<256x512xbf16, #tpu.memory_space<vmem>>, %arg7: memref<1x512xf32, #tpu.memory_space<vmem>>, %arg8: memref<512x128xbf16, #tpu.memory_space<vmem>>, %arg9: memref<1x128xf32, #tpu.memory_space<vmem>>, %arg10: memref<128x128xf32, #tpu.memory_space<vmem>>) attributes {dimension_semantics = [#tpu.dimension_semantics<parallel>], iteration_bounds = array<i64: 2>, scalar_prefetch = 0 : i64, scratch_operands = 0 : i64, tpu.core_type = #tpu.core_type<tc>, window_params = [{transform_indices = @transform_0, window_bounds = array<i64: 128, 32>}, {pipeline_mode = #tpu.pipeline_mode<synchronous>, transform_indices = @transform_1, window_bounds = array<i64: 32, 128>}, {pipeline_mode = #tpu.pipeline_mode<synchronous>, transform_indices = @transform_2, window_bounds = array<i64: 1, 128>}, {pipeline_mode = #tpu.pipeline_mode<synchronous>, transform_indices = @transform_3, window_bounds = array<i64: 128, 256>}, {pipeline_mode = #tpu.pipeline_mode<synchronous>, transform_indices = @transform_4, window_bounds = array<i64: 1, 256>}, {pipeline_mode = #tpu.pipeline_mode<synchronous>, transform_indices = @transform_5, window_bounds = array<i64: 256, 512>}, {pipeline_mode = #tpu.pipeline_mode<synchronous>, transform_indices = @transform_6, window_bounds = array<i64: 1, 512>}, {pipeline_mode = #tpu.pipeline_mode<synchronous>, transform_indices = @transform_7, window_bounds = array<i64: 512, 128>}, {pipeline_mode = #tpu.pipeline_mode<synchronous>, transform_indices = @transform_8, window_bounds = array<i64: 1, 128>}, {transform_indices = @transform_9, window_bounds = array<i64: 128, 128>}]} {
    %c0 = arith.constant 0 : index
    %c0_0 = arith.constant 0 : index
    %0 = vector.load %arg1[%c0, %c0_0] : memref<128x32xbf16, #tpu.memory_space<vmem>>, vector<128x32xbf16>
    %c0_1 = arith.constant 0 : index
    %c0_2 = arith.constant 0 : index
    %1 = vector.load %arg2[%c0_1, %c0_2] : memref<32x128xbf16, #tpu.memory_space<vmem>>, vector<32x128xbf16>
    %cst = arith.constant dense<0.000000e+00> : vector<128x128xf32>
    %2 = tpu.matmul %0, %1, %cst {dimension_numbers = #tpu.dot_dimension_numbers<[1], [0], [0], [1], [0, 0, 1, 1], [], []>} : vector<128x32xbf16>, vector<32x128xbf16>, vector<128x128xf32> -> vector<128x128xf32>
    %c0_3 = arith.constant 0 : index
    %c0_4 = arith.constant 0 : index
    %3 = vector.load %arg3[%c0_3, %c0_4] : memref<1x128xf32, #tpu.memory_space<vmem>>, vector<1x128xf32>
    %4 = vector.broadcast %3 : vector<1x128xf32> to vector<128x128xf32>
    %5 = arith.addf %2, %4 : vector<128x128xf32>
    %cst_5 = arith.constant 0.000000e+00 : f32
    %6 = vector.broadcast %cst_5 : f32 to vector<128x128xf32>
    %7 = arith.cmpf ogt, %5, %6 : vector<128x128xf32>
    %cst_6 = arith.constant 2.000000e-01 : f32
    %8 = vector.broadcast %cst_6 : f32 to vector<128x128xf32>
    %9 = arith.mulf %8, %5 : vector<128x128xf32>
    %10 = arith.select %7, %5, %9 : vector<128x128xi1>, vector<128x128xf32>
    %11 = arith.truncf %10 : vector<128x128xf32> to vector<128x128xbf16>
    %c0_7 = arith.constant 0 : index
    %c0_8 = arith.constant 0 : index
    %12 = vector.load %arg4[%c0_7, %c0_8] : memref<128x256xbf16, #tpu.memory_space<vmem>>, vector<128x256xbf16>
    %cst_9 = arith.constant dense<0.000000e+00> : vector<128x256xf32>
    %13 = tpu.matmul %11, %12, %cst_9 {dimension_numbers = #tpu.dot_dimension_numbers<[1], [0], [0], [1], [0, 0, 1, 1], [], []>} : vector<128x128xbf16>, vector<128x256xbf16>, vector<128x256xf32> -> vector<128x256xf32>
    %c0_10 = arith.constant 0 : index
    %c0_11 = arith.constant 0 : index
    %14 = vector.load %arg5[%c0_10, %c0_11] : memref<1x256xf32, #tpu.memory_space<vmem>>, vector<1x256xf32>
    %15 = vector.broadcast %14 : vector<1x256xf32> to vector<128x256xf32>
    %16 = arith.addf %13, %15 : vector<128x256xf32>
    %cst_12 = arith.constant 0.000000e+00 : f32
    %17 = vector.broadcast %cst_12 : f32 to vector<128x256xf32>
    %18 = arith.cmpf ogt, %16, %17 : vector<128x256xf32>
    %cst_13 = arith.constant 2.000000e-01 : f32
    %19 = vector.broadcast %cst_13 : f32 to vector<128x256xf32>
    %20 = arith.mulf %19, %16 : vector<128x256xf32>
    %21 = arith.select %18, %16, %20 : vector<128x256xi1>, vector<128x256xf32>
    %22 = arith.truncf %21 : vector<128x256xf32> to vector<128x256xbf16>
    %c0_14 = arith.constant 0 : index
    %c0_15 = arith.constant 0 : index
    %23 = vector.load %arg6[%c0_14, %c0_15] : memref<256x512xbf16, #tpu.memory_space<vmem>>, vector<256x512xbf16>
    %cst_16 = arith.constant dense<0.000000e+00> : vector<128x512xf32>
    %24 = tpu.matmul %22, %23, %cst_16 {dimension_numbers = #tpu.dot_dimension_numbers<[1], [0], [0], [1], [0, 0, 1, 1], [], []>} : vector<128x256xbf16>, vector<256x512xbf16>, vector<128x512xf32> -> vector<128x512xf32>
    %c0_17 = arith.constant 0 : index
    %c0_18 = arith.constant 0 : index
    %25 = vector.load %arg7[%c0_17, %c0_18] : memref<1x512xf32, #tpu.memory_space<vmem>>, vector<1x512xf32>
    %26 = vector.broadcast %25 : vector<1x512xf32> to vector<128x512xf32>
    %27 = arith.addf %24, %26 : vector<128x512xf32>
    %cst_19 = arith.constant 0.000000e+00 : f32
    %28 = vector.broadcast %cst_19 : f32 to vector<128x512xf32>
    %29 = arith.cmpf ogt, %27, %28 : vector<128x512xf32>
    %cst_20 = arith.constant 2.000000e-01 : f32
    %30 = vector.broadcast %cst_20 : f32 to vector<128x512xf32>
    %31 = arith.mulf %30, %27 : vector<128x512xf32>
    %32 = arith.select %29, %27, %31 : vector<128x512xi1>, vector<128x512xf32>
    %33 = arith.truncf %32 : vector<128x512xf32> to vector<128x512xbf16>
    %c0_21 = arith.constant 0 : index
    %c0_22 = arith.constant 0 : index
    %34 = vector.load %arg8[%c0_21, %c0_22] : memref<512x128xbf16, #tpu.memory_space<vmem>>, vector<512x128xbf16>
    %cst_23 = arith.constant dense<0.000000e+00> : vector<128x128xf32>
    %35 = tpu.matmul %33, %34, %cst_23 {dimension_numbers = #tpu.dot_dimension_numbers<[1], [0], [0], [1], [0, 0, 1, 1], [], []>} : vector<128x512xbf16>, vector<512x128xbf16>, vector<128x128xf32> -> vector<128x128xf32>
    %c0_24 = arith.constant 0 : index
    %c0_25 = arith.constant 0 : index
    %36 = vector.load %arg9[%c0_24, %c0_25] : memref<1x128xf32, #tpu.memory_space<vmem>>, vector<1x128xf32>
    %37 = vector.broadcast %36 : vector<1x128xf32> to vector<128x128xf32>
    %38 = arith.addf %35, %37 : vector<128x128xf32>
    %cst_26 = arith.constant dense<0xFF800000> : vector<128xf32>
    %39 = vector.multi_reduction <maximumf>, %38, %cst_26 [1] : vector<128x128xf32> to vector<128xf32>
    %40 = vector.shape_cast %39 : vector<128xf32> to vector<128x1xf32>
    %41 = vector.broadcast %40 : vector<128x1xf32> to vector<128x128xf32>
    %42 = arith.subf %38, %41 : vector<128x128xf32>
    %43 = math.exp %42 : vector<128x128xf32>
    %cst_27 = arith.constant dense<0.000000e+00> : vector<128xf32>
    %44 = vector.multi_reduction <add>, %43, %cst_27 [1] : vector<128x128xf32> to vector<128xf32>
    %45 = vector.shape_cast %44 : vector<128xf32> to vector<128x1xf32>
    %46 = math.log %45 : vector<128x1xf32>
    %47 = vector.broadcast %46 : vector<128x1xf32> to vector<128x128xf32>
    %48 = arith.subf %42, %47 : vector<128x128xf32>
    %c0_28 = arith.constant 0 : index
    %c0_29 = arith.constant 0 : index
    %49 = vector.load %arg10[%c0_28, %c0_29] : memref<128x128xf32, #tpu.memory_space<vmem>>, vector<128x128xf32>
    tpu.vector_store %arg10[%c0_28, %c0_29], %48 {strides = array<i32>} : memref<128x128xf32, #tpu.memory_space<vmem>>, vector<128x128xf32>,
    return
  }
  func.func @transform_0(%arg0: i32) -> (i32, i32) {
    %c0_i32 = arith.constant 0 : i32
    %c0_i32_0 = arith.constant 0 : i32
    return %arg0, %c0_i32 : i32, i32
  }
  func.func @transform_1(%arg0: i32) -> (i32, i32) {
    %c0_i32 = arith.constant 0 : i32
    %c0_i32_0 = arith.constant 0 : i32
    %c0_i32_1 = arith.constant 0 : i32
    return %c0_i32, %c0_i32_0 : i32, i32
  }
  func.func @transform_2(%arg0: i32) -> (i32, i32) {
    %c0_i32 = arith.constant 0 : i32
    %c0_i32_0 = arith.constant 0 : i32
    %c0_i32_1 = arith.constant 0 : i32
    return %c0_i32, %c0_i32_0 : i32, i32
  }
  func.func @transform_3(%arg0: i32) -> (i32, i32) {
    %c0_i32 = arith.constant 0 : i32
    %c0_i32_0 = arith.constant 0 : i32
    %c0_i32_1 = arith.constant 0 : i32
    return %c0_i32, %c0_i32_0 : i32, i32
  }
  func.func @transform_4(%arg0: i32) -> (i32, i32) {
    %c0_i32 = arith.constant 0 : i32
    %c0_i32_0 = arith.constant 0 : i32
    %c0_i32_1 = arith.constant 0 : i32
    return %c0_i32, %c0_i32_0 : i32, i32
  }
  func.func @transform_5(%arg0: i32) -> (i32, i32) {
    %c0_i32 = arith.constant 0 : i32
    %c0_i32_0 = arith.constant 0 : i32
    %c0_i32_1 = arith.constant 0 : i32
    return %c0_i32, %c0_i32_0 : i32, i32
  }
  func.func @transform_6(%arg0: i32) -> (i32, i32) {
    %c0_i32 = arith.constant 0 : i32
    %c0_i32_0 = arith.constant 0 : i32
    %c0_i32_1 = arith.constant 0 : i32
    return %c0_i32, %c0_i32_0 : i32, i32
  }
  func.func @transform_7(%arg0: i32) -> (i32, i32) {
    %c0_i32 = arith.constant 0 : i32
    %c0_i32_0 = arith.constant 0 : i32
    %c0_i32_1 = arith.constant 0 : i32
    return %c0_i32, %c0_i32_0 : i32, i32
  }
  func.func @transform_8(%arg0: i32) -> (i32, i32) {
    %c0_i32 = arith.constant 0 : i32
    %c0_i32_0 = arith.constant 0 : i32
    %c0_i32_1 = arith.constant 0 : i32
    return %c0_i32, %c0_i32_0 : i32, i32
  }
  func.func @transform_9(%arg0: i32) -> (i32, i32) {
    %c0_i32 = arith.constant 0 : i32
    %c0_i32_0 = arith.constant 0 : i32
    return %arg0, %c0_i32 : i32, i32
  }
}

module attributes {stable_mosaic.version = 11 : i64} {
  func.func @mlp_kernel(%arg0: i32, %arg1: memref<128x32xbf16, #tpu.memory_space<vmem>>, %arg2: memref<32x128xbf16, #tpu.memory_space<vmem>>, %arg3: memref<1x128xf32, #tpu.memory_space<vmem>>, %arg4: memref<128x256xbf16, #tpu.memory_space<vmem>>, %arg5: memref<1x256xf32, #tpu.memory_space<vmem>>, %arg6: memref<256x512xbf16, #tpu.memory_space<vmem>>, %arg7: memref<1x512xf32, #tpu.memory_space<vmem>>, %arg8: memref<512x128xbf16, #tpu.memory_space<vmem>>, %arg9: memref<1x128xf32, #tpu.memory_space<vmem>>, %arg10: memref<128x128xf32, #tpu.memory_space<vmem>>) attributes {dimension_semantics = [#tpu.dimension_semantics<parallel>], iteration_bounds = array<i64: 2>, scalar_prefetch = 0 : i64, scratch_operands = 0 : i64, tpu.core_type = #tpu.core_type<tc>, window_params = [{transform_indices = @transform_0, window_bounds = array<i64: 128, 32>}, {pipeline_mode = #tpu.pipeline_mode<synchronous>, transform_indices = @transform_1, window_bounds = array<i64: 32, 128>}, {pipeline_mode = #tpu.pipeline_mode<synchronous>, transform_indices = @transform_2, window_bounds = array<i64: 1, 128>}, {pipeline_mode = #tpu.pipeline_mode<synchronous>, transform_indices = @transform_3, window_bounds = array<i64: 128, 256>}, {pipeline_mode = #tpu.pipeline_mode<synchronous>, transform_indices = @transform_4, window_bounds = array<i64: 1, 256>}, {pipeline_mode = #tpu.pipeline_mode<synchronous>, transform_indices = @transform_5, window_bounds = array<i64: 256, 512>}, {pipeline_mode = #tpu.pipeline_mode<synchronous>, transform_indices = @transform_6, window_bounds = array<i64: 1, 512>}, {pipeline_mode = #tpu.pipeline_mode<synchronous>, transform_indices = @transform_7, window_bounds = array<i64: 512, 128>}, {pipeline_mode = #tpu.pipeline_mode<synchronous>, transform_indices = @transform_8, window_bounds = array<i64: 1, 128>}, {transform_indices = @transform_9, window_bounds = array<i64: 128, 128>}]} {
    %c0 = arith.constant 0 : index
    %c0_0 = arith.constant 0 : index
    %0 = vector.load %arg1[%c0, %c0_0] : memref<128x32xbf16, #tpu.memory_space<vmem>>, vector<128x32xbf16>
    %c0_1 = arith.constant 0 : index
    %c0_2 = arith.constant 0 : index
    %1 = vector.load %arg2[%c0_1, %c0_2] : memref<32x128xbf16, #tpu.memory_space<vmem>>, vector<32x128xbf16>
    %cst = arith.constant dense<0.000000e+00> : vector<128x128xf32>
    %2 = tpu.matmul %0, %1, %cst {dimension_numbers = #tpu.dot_dimension_numbers<[1], [0], [0], [1], [0, 0, 1, 1], [], []>} : vector<128x32xbf16>, vector<32x128xbf16>, vector<128x128xf32> -> vector<128x128xf32>
    %c0_3 = arith.constant 0 : index
    %c0_4 = arith.constant 0 : index
    %3 = vector.load %arg3[%c0_3, %c0_4] : memref<1x128xf32, #tpu.memory_space<vmem>>, vector<1x128xf32>
    %4 = vector.broadcast %3 : vector<1x128xf32> to vector<128x128xf32>
    %5 = arith.addf %2, %4 : vector<128x128xf32>
    %cst_5 = arith.constant 0.000000e+00 : f32
    %6 = vector.broadcast %cst_5 : f32 to vector<128x128xf32>
    %7 = arith.cmpf ogt, %5, %6 : vector<128x128xf32>
    %cst_6 = arith.constant 2.000000e-01 : f32
    %8 = vector.broadcast %cst_6 : f32 to vector<128x128xf32>
    %9 = arith.mulf %8, %5 : vector<128x128xf32>
    %10 = arith.select %7, %5, %9 : vector<128x128xi1>, vector<128x128xf32>
    %11 = arith.truncf %10 : vector<128x128xf32> to vector<128x128xbf16>
    %c0_7 = arith.constant 0 : index
    %c0_8 = arith.constant 0 : index
    %12 = vector.load %arg4[%c0_7, %c0_8] : memref<128x256xbf16, #tpu.memory_space<vmem>>, vector<128x256xbf16>
    %cst_9 = arith.constant dense<0.000000e+00> : vector<128x256xf32>
    %13 = tpu.matmul %11, %12, %cst_9 {dimension_numbers = #tpu.dot_dimension_numbers<[1], [0], [0], [1], [0, 0, 1, 1], [], []>} : vector<128x128xbf16>, vector<128x256xbf16>, vector<128x256xf32> -> vector<128x256xf32>
    %c0_10 = arith.constant 0 : index
    %c0_11 = arith.constant 0 : index
    %14 = vector.load %arg5[%c0_10, %c0_11] : memref<1x256xf32, #tpu.memory_space<vmem>>, vector<1x256xf32>
    %15 = vector.broadcast %14 : vector<1x256xf32> to vector<128x256xf32>
    %16 = arith.addf %13, %15 : vector<128x256xf32>
    %cst_12 = arith.constant 0.000000e+00 : f32
    %17 = vector.broadcast %cst_12 : f32 to vector<128x256xf32>
    %18 = arith.cmpf ogt, %16, %17 : vector<128x256xf32>
    %cst_13 = arith.constant 2.000000e-01 : f32
    %19 = vector.broadcast %cst_13 : f32 to vector<128x256xf32>
    %20 = arith.mulf %19, %16 : vector<128x256xf32>
    %21 = arith.select %18, %16, %20 : vector<128x256xi1>, vector<128x256xf32>
    %22 = arith.truncf %21 : vector<128x256xf32> to vector<128x256xbf16>
    %c0_14 = arith.constant 0 : index
    %c0_15 = arith.constant 0 : index
    %23 = vector.load %arg6[%c0_14, %c0_15] : memref<256x512xbf16, #tpu.memory_space<vmem>>, vector<256x512xbf16>
    %cst_16 = arith.constant dense<0.000000e+00> : vector<128x512xf32>
    %24 = tpu.matmul %22, %23, %cst_16 {dimension_numbers = #tpu.dot_dimension_numbers<[1], [0], [0], [1], [0, 0, 1, 1], [], []>} : vector<128x256xbf16>, vector<256x512xbf16>, vector<128x512xf32> -> vector<128x512xf32>
    %c0_17 = arith.constant 0 : index
    %c0_18 = arith.constant 0 : index
    %25 = vector.load %arg7[%c0_17, %c0_18] : memref<1x512xf32, #tpu.memory_space<vmem>>, vector<1x512xf32>
    %26 = vector.broadcast %25 : vector<1x512xf32> to vector<128x512xf32>
    %27 = arith.addf %24, %26 : vector<128x512xf32>
    %cst_19 = arith.constant 0.000000e+00 : f32
    %28 = vector.broadcast %cst_19 : f32 to vector<128x512xf32>
    %29 = arith.cmpf ogt, %27, %28 : vector<128x512xf32>
    %cst_20 = arith.constant 2.000000e-01 : f32
    %30 = vector.broadcast %cst_20 : f32 to vector<128x512xf32>
    %31 = arith.mulf %30, %27 : vector<128x512xf32>
    %32 = arith.select %29, %27, %31 : vector<128x512xi1>, vector<128x512xf32>
    %33 = arith.truncf %32 : vector<128x512xf32> to vector<128x512xbf16>
    %c0_21 = arith.constant 0 : index
    %c0_22 = arith.constant 0 : index
    %34 = vector.load %arg8[%c0_21, %c0_22] : memref<512x128xbf16, #tpu.memory_space<vmem>>, vector<512x128xbf16>
    %cst_23 = arith.constant dense<0.000000e+00> : vector<128x128xf32>
    %35 = tpu.matmul %33, %34, %cst_23 {dimension_numbers = #tpu.dot_dimension_numbers<[1], [0], [0], [1], [0, 0, 1, 1], [], []>} : vector<128x512xbf16>, vector<512x128xbf16>, vector<128x128xf32> -> vector<128x128xf32>
    %c0_24 = arith.constant 0 : index
    %c0_25 = arith.constant 0 : index
    %36 = vector.load %arg9[%c0_24, %c0_25] : memref<1x128xf32, #tpu.memory_space<vmem>>, vector<1x128xf32>
    %37 = vector.broadcast %36 : vector<1x128xf32> to vector<128x128xf32>
    %38 = arith.addf %35, %37 : vector<128x128xf32>
    %cst_26 = arith.constant dense<0xFF800000> : vector<128xf32>
    %39 = vector.multi_reduction <maximumf>, %38, %cst_26 [1] : vector<128x128xf32> to vector<128xf32>
    %40 = vector.shape_cast %39 : vector<128xf32> to vector<128x1xf32>
    %41 = vector.broadcast %40 : vector<128x1xf32> to vector<128x128xf32>
    %42 = arith.subf %38, %41 : vector<128x128xf32>
    %43 = math.exp %42 : vector<128x128xf32>
    %cst_27 = arith.constant dense<0.000000e+00> : vector<128xf32>
    %44 = vector.multi_reduction <add>, %43, %cst_27 [1] : vector<128x128xf32> to vector<128xf32>
    %45 = vector.shape_cast %44 : vector<128xf32> to vector<128x1xf32>
    %46 = math.log %45 : vector<128x1xf32>
    %47 = vector.broadcast %46 : vector<128x1xf32> to vector<128x128xf32>
    %48 = arith.subf %42, %47 : vector<128x128xf32>
    %c0_28 = arith.constant 0 : index
    %c0_29 = arith.constant 0 : index
    %49 = vector.load %arg10[%c0_28, %c0_29] : memref<128x128xf32, #tpu.memory_space<vmem>>, vector<128x128xf32>
    tpu.vector_store %arg10[%c0_28, %c0_29], %48 {strides = array<i32>} : memref<128x128xf32, #tpu.memory_space<vmem>>, vector<128x128xf32>,
    return
  }
  func.func @transform_0(%arg0: i32) -> (i32, i32) {
    %c0_i32 = arith.constant 0 : i32
    %c0_i32_0 = arith.constant 0 : i32
    return %arg0, %c0_i32 : i32, i32
  }
  func.func @transform_1(%arg0: i32) -> (i32, i32) {
    %c0_i32 = arith.constant 0 : i32
    %c0_i32_0 = arith.constant 0 : i32
    %c0_i32_1 = arith.constant 0 : i32
    return %c0_i32, %c0_i32_0 : i32, i32
  }
  func.func @transform_2(%arg0: i32) -> (i32, i32) {
    %c0_i32 = arith.constant 0 : i32
    %c0_i32_0 = arith.constant 0 : i32
    %c0_i32_1 = arith.constant 0 : i32
    return %c0_i32, %c0_i32_0 : i32, i32
  }
  func.func @transform_3(%arg0: i32) -> (i32, i32) {
    %c0_i32 = arith.constant 0 : i32
    %c0_i32_0 = arith.constant 0 : i32
    %c0_i32_1 = arith.constant 0 : i32
    return %c0_i32, %c0_i32_0 : i32, i32
  }
  func.func @transform_4(%arg0: i32) -> (i32, i32) {
    %c0_i32 = arith.constant 0 : i32
    %c0_i32_0 = arith.constant 0 : i32
    %c0_i32_1 = arith.constant 0 : i32
    return %c0_i32, %c0_i32_0 : i32, i32
  }
  func.func @transform_5(%arg0: i32) -> (i32, i32) {
    %c0_i32 = arith.constant 0 : i32
    %c0_i32_0 = arith.constant 0 : i32
    %c0_i32_1 = arith.constant 0 : i32
    return %c0_i32, %c0_i32_0 : i32, i32
  }
  func.func @transform_6(%arg0: i32) -> (i32, i32) {
    %c0_i32 = arith.constant 0 : i32
    %c0_i32_0 = arith.constant 0 : i32
    %c0_i32_1 = arith.constant 0 : i32
    return %c0_i32, %c0_i32_0 : i32, i32
  }
  func.func @transform_7(%arg0: i32) -> (i32, i32) {
    %c0_i32 = arith.constant 0 : i32
    %c0_i32_0 = arith.constant 0 : i32
    %c0_i32_1 = arith.constant 0 : i32
    return %c0_i32, %c0_i32_0 : i32, i32
  }
  func.func @transform_8(%arg0: i32) -> (i32, i32) {
    %c0_i32 = arith.constant 0 : i32
    %c0_i32_0 = arith.constant 0 : i32
    %c0_i32_1 = arith.constant 0 : i32
    return %c0_i32, %c0_i32_0 : i32, i32
  }
  func.func @transform_9(%arg0: i32) -> (i32, i32) {
    %c0_i32 = arith.constant 0 : i32
    %c0_i32_0 = arith.constant 0 : i32
    return %arg0, %c0_i32 : i32, i32
  }
}

</mosaic_0001>

<llo_original>
// kernel: _mlp_forward_jit.1
$region0: #{_mlp_forward_jit.1}
  #allocation0 [shape = 'u32[]', space=smem, size = 0x4, offset = 0x4, fixed_abs, tag = 'smem constant byte address 0x4 - core index']
  #allocation1 [shape = 'u32[144,128]{1,0:T(1,128)}', space=vmem, size = 0x12000, scoped, tag = 'internal scratch']
  %s0 = inlined_call_operand.vmem [shape: bf16[256,32], index: 0, kind: input, shape index: {}]
  %s1 = inlined_call_operand.hbm [shape: bf16[32,128], index: 1, kind: input, shape index: {}]
  %s2 = inlined_call_operand.vmem [shape: f32[1,128], index: 2, kind: input, shape index: {}]
  %s3 = inlined_call_operand.hbm [shape: bf16[128,256], index: 3, kind: input, shape index: {}]
  %s4 = inlined_call_operand.vmem [shape: f32[1,256], index: 4, kind: input, shape index: {}]
  %s5 = inlined_call_operand.hbm [shape: bf16[256,512], index: 5, kind: input, shape index: {}]
  %s6 = inlined_call_operand.vmem [shape: f32[1,512], index: 6, kind: input, shape index: {}]
  %s7 = inlined_call_operand.vmem [shape: bf16[512,128], index: 7, kind: input, shape index: {}]
  %s8 = inlined_call_operand.vmem [shape: f32[1,128], index: 8, kind: input, shape index: {}]
  %s9 = inlined_call_operand.vmem [shape: f32[256,128], index: 9, kind: output, shape index: {}]
  %s10 = sld [smem:[#allocation0]]
  $region81: #{_mlp_forward_jit.1} parent=0
    _
  %s12 = ssub.s32 1, %s10
  %s13 = scalar_select 0, %s12, %s10
  $region1: #{_mlp_forward_jit.1} parent=0
    #allocation2 [shape = 'u8[8192]{0}', space=vmem, size = 0x2000, scoped, tag = 'input window, operand 1, single buffered']
    #allocation3 [shape = 's32[2]{0}', space=sflag, size = 0x8, scoped, tag = 'scoped memory for _mlp_forward_jit.1']
    #allocation4 [shape = 'u8[65536]{0}', space=vmem, size = 0x10000, scoped, tag = 'input window, operand 3, single buffered']
    #allocation5 [shape = 's32[1]{0}', space=sflag, size = 0x4, scoped, tag = 'scoped memory for _mlp_forward_jit.1']
    #allocation6 [shape = 'u8[262144]{0}', space=vmem, size = 0x40000, scoped, tag = 'input window, operand 5, single buffered']
    %14 = vsyncpa [#allocation3], 0
    %15 = vsyncpa [#allocation5], 0
    loop: start=0, step=1, limit=4
    $region2: #{_mlp_forward_jit.1} parent=1 // loop_pre_header
      _
    $region3: #{_mlp_forward_jit.1} parent=1 // loop_header
      %s17 = sphi 0, %s21
      %p18 = scmp.ge.s32.totalorder %s17, 4
      %s27 = sphi 0, %s29
      %s30 = sphi 0, %s27
      %s31 = sphi 0, %s30
      %s47 = sphi 0, %s31
      %s51 = sphi 0, %s51
      %s53 = sphi 0, %s51
      %s54 = sphi 0, %s53
      %s68 = sphi 0, %s54
      %s72 = sphi 0, %s72
      %s74 = sphi 0, %s72
      %s75 = sphi 0, %s74
      %s89 = sphi 0, %s75
      %s93 = sphi 0, %s93
      %s95 = sphi 0, %s93
      %s96 = sphi 0, %s95
      %s110 = sphi 0, %s96
      %s114 = sphi 0, %s114
      %s116 = sphi 0, %s114
      %s117 = sphi 0, %s116
      %s131 = sphi 0, %s117
      %s135 = sphi 0, %s135
      %s137 = sphi 0, %s135
      %s138 = sphi 0, %s137
      %s152 = sphi 0, %s138
      %s156 = sphi 0, %s156
      %s158 = sphi 0, %s156
      %s159 = sphi 0, %s158
      %s173 = sphi 0, %s159
      %s177 = sphi 0, %s177
      %s179 = sphi 0, %s177
      %s180 = sphi 0, %s179
      %s194 = sphi 0, %s180
      %s198 = sphi 0, %s198
      %s200 = sphi 0, %s198
      %s201 = sphi 0, %s200
      %s215 = sphi 0, %s201
      %s221 = sphi 0, %s223
      %s224 = sphi 0, %s221
      %s225 = sphi 0, %s224
      %s241 = sphi 0, %s225
    $region4: #{_mlp_forward_jit.1} parent=1 // loop_header_branch
      %20 = sbr.rel (%p18) target = $region8
    $region5: #{_mlp_forward_jit.1} parent=1 // loop_body
      %s22 = ssub.s32 %s17, 1
      %s23 = ssub.s32 %s17, 2
      %s24 = sadd.s32 %s17, 1
      %s25 = ssub.s32 %s17, %s24
      %p26 = scmp.eq.s32.totalorder %s25, 0
      %s28 = sadd.s32 %s27, 1
      %s29 = scalar_select %p26, %s27, %s28
      %p32 = pneg %p26
      %p33 = scmp.eq.s32.totalorder %s17, 1
      %p34 = por %p32, %p33
      %p35 = scmp.ne.s32.totalorder %s27, %s30
      %p36 = scmp.eq.s32.totalorder %s17, 0
      %p37 = por %p35, %p36
      %p38 = scmp.ne.s32.totalorder %s27, %s30
      %p39 = scmp.eq.s32.totalorder %s22, 1
      %p40 = por %p38, %p39
      %p41 = scmp.ne.s32.totalorder %s30, %s31
      %p42 = scmp.eq.s32.totalorder %s22, 0
      %p43 = por %p41, %p42
      %p44 = scmp.ne.s32.totalorder %s30, %s31
      %p45 = scmp.eq.s32.totalorder %s23, 1
      %p46 = por %p44, %p45
      %p48 = scmp.ne.s32.totalorder %s31, %s47
      %p49 = scmp.eq.s32.totalorder %s23, 0
      %p50 = por %p48, %p49
      %s52 = sadd.s32 %s51, 1
      %p55 = scmp.eq.s32.totalorder %s17, 1
      %p56 = scmp.ne.s32.totalorder %s51, %s53
      %p57 = scmp.eq.s32.totalorder %s17, 0
      %p58 = por %p56, %p57
      %p59 = scmp.ne.s32.totalorder %s51, %s53
      %p60 = scmp.eq.s32.totalorder %s22, 1
      %p61 = por %p59, %p60
      %p62 = scmp.ne.s32.totalorder %s53, %s54
      %p63 = scmp.eq.s32.totalorder %s22, 0
      %p64 = por %p62, %p63
      %p65 = scmp.ne.s32.totalorder %s53, %s54
      %p66 = scmp.eq.s32.totalorder %s23, 1
      %p67 = por %p65, %p66
      %p69 = scmp.ne.s32.totalorder %s54, %s68
      %p70 = scmp.eq.s32.totalorder %s23, 0
      %p71 = por %p69, %p70
      %s73 = sadd.s32 %s72, 1
      %p76 = scmp.eq.s32.totalorder %s17, 1
      %p77 = scmp.ne.s32.totalorder %s72, %s74
      %p78 = scmp.eq.s32.totalorder %s17, 0
      %p79 = por %p77, %p78
      %p80 = scmp.ne.s32.totalorder %s72, %s74
      %p81 = scmp.eq.s32.totalorder %s22, 1
      %p82 = por %p80, %p81
      %p83 = scmp.ne.s32.totalorder %s74, %s75
      %p84 = scmp.eq.s32.totalorder %s22, 0
      %p85 = por %p83, %p84
      %p86 = scmp.ne.s32.totalorder %s74, %s75
      %p87 = scmp.eq.s32.totalorder %s23, 1
      %p88 = por %p86, %p87
      %p90 = scmp.ne.s32.totalorder %s75, %s89
      %p91 = scmp.eq.s32.totalorder %s23, 0
      %p92 = por %p90, %p91
      %s94 = sadd.s32 %s93, 1
      %p97 = scmp.eq.s32.totalorder %s17, 1
      %p98 = scmp.ne.s32.totalorder %s93, %s95
      %p99 = scmp.eq.s32.totalorder %s17, 0
      %p100 = por %p98, %p99
      %p101 = scmp.ne.s32.totalorder %s93, %s95
      %p102 = scmp.eq.s32.totalorder %s22, 1
      %p103 = por %p101, %p102
      %p104 = scmp.ne.s32.totalorder %s95, %s96
      %p105 = scmp.eq.s32.totalorder %s22, 0
      %p106 = por %p104, %p105
      %p107 = scmp.ne.s32.totalorder %s95, %s96
      %p108 = scmp.eq.s32.totalorder %s23, 1
      %p109 = por %p107, %p108
      %p111 = scmp.ne.s32.totalorder %s96, %s110
      %p112 = scmp.eq.s32.totalorder %s23, 0
      %p113 = por %p111, %p112
      %s115 = sadd.s32 %s114, 1
      %p118 = scmp.eq.s32.totalorder %s17, 1
      %p119 = scmp.ne.s32.totalorder %s114, %s116
      %p120 = scmp.eq.s32.totalorder %s17, 0
      %p121 = por %p119, %p120
      %p122 = scmp.ne.s32.totalorder %s114, %s116
      %p123 = scmp.eq.s32.totalorder %s22, 1
      %p124 = por %p122, %p123
      %p125 = scmp.ne.s32.totalorder %s116, %s117
      %p126 = scmp.eq.s32.totalorder %s22, 0
      %p127 = por %p125, %p126
      %p128 = scmp.ne.s32.totalorder %s116, %s117
      %p129 = scmp.eq.s32.totalorder %s23, 1
      %p130 = por %p128, %p129
      %p132 = scmp.ne.s32.totalorder %s117, %s131
      %p133 = scmp.eq.s32.totalorder %s23, 0
      %p134 = por %p132, %p133
      %s136 = sadd.s32 %s135, 1
      %p139 = scmp.eq.s32.totalorder %s17, 1
      %p140 = scmp.ne.s32.totalorder %s135, %s137
      %p141 = scmp.eq.s32.totalorder %s17, 0
      %p142 = por %p140, %p141
      %p143 = scmp.ne.s32.totalorder %s135, %s137
      %p144 = scmp.eq.s32.totalorder %s22, 1
      %p145 = por %p143, %p144
      %p146 = scmp.ne.s32.totalorder %s137, %s138
      %p147 = scmp.eq.s32.totalorder %s22, 0
      %p148 = por %p146, %p147
      %p149 = scmp.ne.s32.totalorder %s137, %s138
      %p150 = scmp.eq.s32.totalorder %s23, 1
      %p151 = por %p149, %p150
      %p153 = scmp.ne.s32.totalorder %s138, %s152
      %p154 = scmp.eq.s32.totalorder %s23, 0
      %p155 = por %p153, %p154
      %s157 = sadd.s32 %s156, 1
      %p160 = scmp.eq.s32.totalorder %s17, 1
      %p161 = scmp.ne.s32.totalorder %s156, %s158
      %p162 = scmp.eq.s32.totalorder %s17, 0
      %p163 = por %p161, %p162
      %p164 = scmp.ne.s32.totalorder %s156, %s158
      %p165 = scmp.eq.s32.totalorder %s22, 1
      %p166 = por %p164, %p165
      %p167 = scmp.ne.s32.totalorder %s158, %s159
      %p168 = scmp.eq.s32.totalorder %s22, 0
      %p169 = por %p167, %p168
      %p170 = scmp.ne.s32.totalorder %s158, %s159
      %p171 = scmp.eq.s32.totalorder %s23, 1
      %p172 = por %p170, %p171
      %p174 = scmp.ne.s32.totalorder %s159, %s173
      %p175 = scmp.eq.s32.totalorder %s23, 0
      %p176 = por %p174, %p175
      %s178 = sadd.s32 %s177, 1
      %p181 = scmp.eq.s32.totalorder %s17, 1
      %p182 = scmp.ne.s32.totalorder %s177, %s179
      %p183 = scmp.eq.s32.totalorder %s17, 0
      %p184 = por %p182, %p183
      %p185 = scmp.ne.s32.totalorder %s177, %s179
      %p186 = scmp.eq.s32.totalorder %s22, 1
      %p187 = por %p185, %p186
      %p188 = scmp.ne.s32.totalorder %s179, %s180
      %p189 = scmp.eq.s32.totalorder %s22, 0
      %p190 = por %p188, %p189
      %p191 = scmp.ne.s32.totalorder %s179, %s180
      %p192 = scmp.eq.s32.totalorder %s23, 1
      %p193 = por %p191, %p192
      %p195 = scmp.ne.s32.totalorder %s180, %s194
      %p196 = scmp.eq.s32.totalorder %s23, 0
      %p197 = por %p195, %p196
      %s199 = sadd.s32 %s198, 1
      %p202 = scmp.eq.s32.totalorder %s17, 1
      %p203 = scmp.ne.s32.totalorder %s198, %s200
      %p204 = scmp.eq.s32.totalorder %s17, 0
      %p205 = por %p203, %p204
      %p206 = scmp.ne.s32.totalorder %s198, %s200
      %p207 = scmp.eq.s32.totalorder %s22, 1
      %p208 = por %p206, %p207
      %p209 = scmp.ne.s32.totalorder %s200, %s201
      %p210 = scmp.eq.s32.totalorder %s22, 0
      %p211 = por %p209, %p210
      %p212 = scmp.ne.s32.totalorder %s200, %s201
      %p213 = scmp.eq.s32.totalorder %s23, 1
      %p214 = por %p212, %p213
      %p216 = scmp.ne.s32.totalorder %s201, %s215
      %p217 = scmp.eq.s32.totalorder %s23, 0
      %p218 = por %p216, %p217
      %s219 = ssub.s32 %s17, %s24
      %p220 = scmp.eq.s32.totalorder %s219, 0
      %s222 = sadd.s32 %s221, 1
      %s223 = scalar_select %p220, %s221, %s222
      %p226 = pneg %p220
      %p227 = scmp.eq.s32.totalorder %s17, 1
      %p228 = por %p226, %p227
      %p229 = scmp.ne.s32.totalorder %s221, %s224
      %p230 = scmp.eq.s32.totalorder %s17, 0
      %p231 = por %p229, %p230
      %p232 = scmp.ne.s32.totalorder %s221, %s224
      %p233 = scmp.eq.s32.totalorder %s22, 1
      %p234 = por %p232, %p233
      %p235 = scmp.ne.s32.totalorder %s224, %s225
      %p236 = scmp.eq.s32.totalorder %s22, 0
      %p237 = por %p235, %p236
      %p238 = scmp.ne.s32.totalorder %s224, %s225
      %p239 = scmp.eq.s32.totalorder %s23, 1
      %p240 = por %p238, %p239
      %p242 = scmp.ne.s32.totalorder %s225, %s241
      %p243 = scmp.eq.s32.totalorder %s23, 0
      %p244 = por %p242, %p243
      %p245 = scmp.le.s32.totalorder 1, %s17
      %p246 = scmp.lt.s32.totalorder %s17, 3
      %p247 = pnand %p245, %p246
      %p248 = pneg %p247
      // Predicated region
      $region9: #{_mlp_forward_jit.1} parent=5 // pred_check
        _
      $region10: #{_mlp_forward_jit.1} parent=5 // pred_check_branch
        %250 = sbr.rel (%p247) target = $region12
      $region11: #{_mlp_forward_jit.1} parent=5 // pred_region
        %s251 = ssub.s32 %s17, 1
        // Predicated region
        $region13: #{_mlp_forward_jit.1} parent=11 // pred_check
          %p252 = pneg %p64
        $region14: #{_mlp_forward_jit.1} parent=11 // pred_check_branch
          %254 = sbr.rel (%p252) target = $region16
        $region15: #{_mlp_forward_jit.1} parent=11 // pred_region
          %s256 = ssub.s32 256, 256
          %257 = vsyncadd [#allocation3], %s256
          %s258 = sshll.u32 [#allocation2], 4
          %s259 = int_to_ptr.vmem [resolvable:$true] %s258
          %264 = dma.hbm_to_vmem [thread:$0]  %s1, 256, %s259, [#allocation3], 64, 64, 4
        $region16: #{_mlp_forward_jit.1} parent=11 // pred_fallthru
          _
        // Predicated region
        $region17: #{_mlp_forward_jit.1} parent=11 // pred_check
          %p265 = pneg %p85
        $region18: #{_mlp_forward_jit.1} parent=11 // pred_check_branch
          %267 = sbr.rel (%p265) target = $region20
        $region19: #{_mlp_forward_jit.1} parent=11 // pred_region
          _
        $region20: #{_mlp_forward_jit.1} parent=11 // pred_fallthru
          _
        // Predicated region
        $region21: #{_mlp_forward_jit.1} parent=11 // pred_check
          %p268 = pneg %p106
        $region22: #{_mlp_forward_jit.1} parent=11 // pred_check_branch
          %270 = sbr.rel (%p268) target = $region24
        $region23: #{_mlp_forward_jit.1} parent=11 // pred_region
          %s272 = ssub.s32 2048, 2048
          %273 = vsyncadd [#allocation5], %s272
          %s274 = sshll.u32 [#allocation4], 4
          %s275 = int_to_ptr.vmem [resolvable:$true] %s274
          %280 = dma.hbm_to_vmem [thread:$0]  %s3, 2048, %s275, [#allocation5], 128, 128, 8
        $region24: #{_mlp_forward_jit.1} parent=11 // pred_fallthru
          _
        // Predicated region
        $region25: #{_mlp_forward_jit.1} parent=11 // pred_check
          %p281 = pneg %p127
        $region26: #{_mlp_forward_jit.1} parent=11 // pred_check_branch
          %283 = sbr.rel (%p281) target = $region28
        $region27: #{_mlp_forward_jit.1} parent=11 // pred_region
          _
        $region28: #{_mlp_forward_jit.1} parent=11 // pred_fallthru
          _
        // Predicated region
        $region29: #{_mlp_forward_jit.1} parent=11 // pred_check
          %p284 = pneg %p148
        $region30: #{_mlp_forward_jit.1} parent=11 // pred_check_branch
          %286 = sbr.rel (%p284) target = $region32
        $region31: #{_mlp_forward_jit.1} parent=11 // pred_region
          %s288 = ssub.s32 8192, 8192
          %289 = vsyncadd [#allocation5], %s288
          %s290 = sshll.u32 [#allocation6], 4
          %s291 = int_to_ptr.vmem [resolvable:$true] %s290
          %296 = dma.hbm_to_vmem [thread:$0]  %s5, 8192, %s291, [#allocation5], 256, 256, 16
        $region32: #{_mlp_forward_jit.1} parent=11 // pred_fallthru
          _
        // Predicated region
        $region33: #{_mlp_forward_jit.1} parent=11 // pred_check
          %p297 = pneg %p169
        $region34: #{_mlp_forward_jit.1} parent=11 // pred_check_branch
          %299 = sbr.rel (%p297) target = $region36
        $region35: #{_mlp_forward_jit.1} parent=11 // pred_region
          _
        $region36: #{_mlp_forward_jit.1} parent=11 // pred_fallthru
          _
        // Predicated region
        $region37: #{_mlp_forward_jit.1} parent=11 // pred_check
          %p300 = pneg %p190
        $region38: #{_mlp_forward_jit.1} parent=11 // pred_check_branch
          %302 = sbr.rel (%p300) target = $region40
        $region39: #{_mlp_forward_jit.1} parent=11 // pred_region
          _
        $region40: #{_mlp_forward_jit.1} parent=11 // pred_fallthru
          _
        // Predicated region
        $region41: #{_mlp_forward_jit.1} parent=11 // pred_check
          %p303 = pneg %p211
        $region42: #{_mlp_forward_jit.1} parent=11 // pred_check_branch
          %305 = sbr.rel (%p303) target = $region44
        $region43: #{_mlp_forward_jit.1} parent=11 // pred_region
          _
        $region44: #{_mlp_forward_jit.1} parent=11 // pred_fallthru
          _
      $region12: #{_mlp_forward_jit.1} parent=5 // pred_fallthru
        _
      %p306 = scmp.lt.s32.totalorder %s17, 2
      // Predicated region
      $region45: #{_mlp_forward_jit.1} parent=5 // pred_check
        %p307 = pneg %p306
      $region46: #{_mlp_forward_jit.1} parent=5 // pred_check_branch
        %309 = sbr.rel (%p307) target = $region48
      $region47: #{_mlp_forward_jit.1} parent=5 // pred_region
        // Predicated region
        $region49: #{_mlp_forward_jit.1} parent=47 // pred_check
          %p310 = pneg %p37
        $region50: #{_mlp_forward_jit.1} parent=47 // pred_check_branch
          %312 = sbr.rel (%p310) target = $region52
        $region51: #{_mlp_forward_jit.1} parent=47 // pred_region
          %s313 = smul.u32 16, %s17
          %p314 = scmp.lt.s32.totalorder %s313, 31
          %s315 = scalar_select %p314, %s313, 31
          %s316 = smul.addr %s315, 4
          %s317 = scalar_lea.vmem %s0, %s316
          %s318 = smul.u32 16, %s17
        $region52: #{_mlp_forward_jit.1} parent=47 // pred_fallthru
          _
      $region48: #{_mlp_forward_jit.1} parent=5 // pred_fallthru
        _
      %p319 = scmp.le.s32.totalorder 1, %s17
      %p320 = scmp.lt.s32.totalorder %s17, 3
      %p321 = pnand %p319, %p320
      %p322 = pneg %p321
      // Predicated region
      $region53: #{_mlp_forward_jit.1} parent=5 // pred_check
        _
      $region54: #{_mlp_forward_jit.1} parent=5 // pred_check_branch
        %324 = sbr.rel (%p321) target = $region56
      $region55: #{_mlp_forward_jit.1} parent=5 // pred_region
        %s325 = ssub.s32 %s17, 1
        // Predicated region
        $region57: #{_mlp_forward_jit.1} parent=55 // pred_check
          %p326 = pneg %p64
        $region58: #{_mlp_forward_jit.1} parent=55 // pred_check_branch
          %328 = sbr.rel (%p326) target = $region60
        $region59: #{_mlp_forward_jit.1} parent=55 // pred_region
          %329 = dma.done [#allocation3], 256
        $region60: #{_mlp_forward_jit.1} parent=55 // pred_fallthru
          _
        // Predicated region
        $region61: #{_mlp_forward_jit.1} parent=55 // pred_check
          %p330 = pneg %p106
        $region62: #{_mlp_forward_jit.1} parent=55 // pred_check_branch
          %332 = sbr.rel (%p330) target = $region64
        $region63: #{_mlp_forward_jit.1} parent=55 // pred_region
          %333 = dma.done [#allocation5], 2048
        $region64: #{_mlp_forward_jit.1} parent=55 // pred_fallthru
          _
        // Predicated region
        $region65: #{_mlp_forward_jit.1} parent=55 // pred_check
          %p334 = pneg %p148
        $region66: #{_mlp_forward_jit.1} parent=55 // pred_check_branch
          %336 = sbr.rel (%p334) target = $region68
        $region67: #{_mlp_forward_jit.1} parent=55 // pred_region
          %337 = dma.done [#allocation5], 8192
        $region68: #{_mlp_forward_jit.1} parent=55 // pred_fallthru
          _
        %s338 = smul.u32 16, %s22
        %p339 = scmp.lt.s32.totalorder %s338, 31
        %s340 = scalar_select %p339, %s338, 31
        %s341 = smul.addr %s340, 4
        %s342 = scalar_lea.vmem %s0, %s341
        %p343 = pneg %p43
        %p344 = pneg %p40
        %p345 = pneg %p64
        %p346 = pneg %p61
        %p347 = pneg %p85
        %p348 = pneg %p82
        %p349 = pneg %p106
        %p350 = pneg %p103
        %p351 = pneg %p127
        %p352 = pneg %p124
        %p353 = pneg %p148
        %p354 = pneg %p145
        %p355 = pneg %p169
        %p356 = pneg %p166
        %p357 = pneg %p190
        %p358 = pneg %p187
        %p359 = pneg %p211
        %p360 = pneg %p208
        %p361 = pneg %p237
        %p362 = pneg %p234
        %s363 = smul.u32 16, %s22
        %p364 = scmp.lt.s32.totalorder %s363, 31
        %s365 = scalar_select %p364, %s363, 31
        %s366 = smul.addr %s365, 8
        %s367 = scalar_lea.vmem %s9, %s366
        %s368 = smul.u32 16, %s22
        %p369 = scmp.lt.s32.totalorder %s368, 31
        %s370 = scalar_select %p369, %s368, 31
        %s371 = smul.addr %s370, 4
        %s372 = scalar_lea.vmem %s0, %s371
        %s373 = smul.u32 16, %s22
        %s374 = smul.u32 16, %s22
        %p375 = scmp.lt.s32.totalorder %s374, 31
        %s376 = scalar_select %p375, %s374, 31
        %s377 = smul.addr %s376, 8
        %s378 = scalar_lea.vmem %s9, %s377
        %s379 = smul.u32 16, %s22
        %v381 = vld [vmem:[%s372] sm:$0xf]
        %v382 = vld [vmem:[%s372 + $0x4] sm:$0xf]
        %v383 = vld [vmem:[%s372 + $0x8] sm:$0xf]
        %v384 = vld [vmem:[%s372 + $0xc] sm:$0xf]
        %v385 = vld [vmem:[%s372 + $0x10] sm:$0xf]
        %v386 = vld [vmem:[%s372 + $0x14] sm:$0xf]
        %v387 = vld [vmem:[%s372 + $0x18] sm:$0xf]
        %v388 = vld [vmem:[%s372 + $0x1c] sm:$0xf]
        %v389 = vld [vmem:[%s372 + $0x20] sm:$0xf]
        %v390 = vld [vmem:[%s372 + $0x24] sm:$0xf]
        %v391 = vld [vmem:[%s372 + $0x28] sm:$0xf]
        %v392 = vld [vmem:[%s372 + $0x2c] sm:$0xf]
        %v393 = vld [vmem:[%s372 + $0x30] sm:$0xf]
        %v394 = vld [vmem:[%s372 + $0x34] sm:$0xf]
        %v395 = vld [vmem:[%s372 + $0x38] sm:$0xf]
        %v396 = vld [vmem:[%s372 + $0x3c] sm:$0xf]
        %v397 = vld [vmem:[#allocation2] sm:$0xf]
        %v398 = vld [vmem:[#allocation2 + $0x4] sm:$0xf]
        %v399 = vld [vmem:[#allocation2 + $0x8] sm:$0xf]
        %v400 = vld [vmem:[#allocation2 + $0xc] sm:$0xf]
        %v401 = vld [vmem:[%s2] sm:$0x1]
        %v403 = vlaneseq
        %v404 = vshrl.u32 %v403, 7
        %v405 = vsub.s32 0, %v404
        %v406 = vrot.slane %v401, %v405
        %v424 = vunpack.c.l.b16 %v381
        %v425 = vunpack.c.l.b16 %v382
        %v426 = vunpack.c.l.b16 %v383
        %v427 = vunpack.c.l.b16 %v384
        %v428 = vunpack.c.l.b16 %v385
        %v429 = vunpack.c.l.b16 %v386
        %v430 = vunpack.c.l.b16 %v387
        %v431 = vunpack.c.l.b16 %v388
        %v432 = vunpack.c.l.b16 %v389
        %v433 = vunpack.c.l.b16 %v390
        %v434 = vunpack.c.l.b16 %v391
        %v435 = vunpack.c.l.b16 %v392
        %v436 = vunpack.c.l.b16 %v393
        %v437 = vunpack.c.l.b16 %v394
        %v438 = vunpack.c.l.b16 %v395
        %v439 = vunpack.c.l.b16 %v396
        %v440 = vpack.c.b16 %v425, %v424
        %v441 = vpack.c.b16 %v427, %v426
        %v442 = vpack.c.b16 %v429, %v428
        %v443 = vpack.c.b16 %v431, %v430
        %v444 = vpack.c.b16 %v433, %v432
        %v445 = vpack.c.b16 %v435, %v434
        %v446 = vpack.c.b16 %v437, %v436
        %v447 = vpack.c.b16 %v439, %v438
        %v452 = vunpack.c.l.b16 %v397
        %v453 = vunpack.c.l.b16 %v398
        %v454 = vunpack.c.l.b16 %v399
        %v455 = vunpack.c.l.b16 %v400
        %v456 = vpack.c.b16 %v453, %v452
        %v457 = vpack.c.b16 %v455, %v454
        %vm460 = vcmask 261120
        %v462 = vsel %vm460, %v440, 0
        %v465 = vsel %vm460, %v441, 0
        %v468 = vsel %vm460, %v442, 0
        %v471 = vsel %vm460, %v443, 0
        %v474 = vsel %vm460, %v444, 0
        %v477 = vsel %vm460, %v445, 0
        %v480 = vsel %vm460, %v446, 0
        %v483 = vsel %vm460, %v447, 0
        %485 = vmatprep.subr.bf16.mxu0 0
        %486 = vmatpush1.bf16.msra.mxu0 0
        %487 = vmatprep.subr.bf16.mxu0 0
        %488 = vmatpush1.bf16.msra.mxu0 0
        %489 = vmatprep.subr.bf16.mxu0 0
        %490 = vmatpush1.bf16.msra.mxu0 0
        %491 = vmatprep.subr.bf16.mxu0 0
        %492 = vmatpush1.bf16.msra.mxu0 0
        %493 = vmatprep.subr.bf16.mxu0 0
        %494 = vmatpush1.bf16.msra.mxu0 0
        %495 = vmatprep.subr.bf16.mxu0 0
        %496 = vmatpush1.bf16.msra.mxu0 0
        %497 = vmatprep.subr.bf16.mxu0 0
        %498 = vmatpush1.bf16.msra.mxu0 %v457
        %499 = vmatprep.subr.bf16.mxu0 0
        %500 = vmatpush1.bf16.msra.mxu0 %v456
        %501 = vmatprep.subr.bf16.mxu0 0
        %502 = vmatpush2.bf16.msra.mxu0 0
        %503 = vmatprep.subr.bf16.mxu0 0
        %504 = vmatpush2.bf16.msra.mxu0 0
        %505 = vmatprep.subr.bf16.mxu0 0
        %506 = vmatpush2.bf16.msra.mxu0 0
        %507 = vmatprep.subr.bf16.mxu0 0
        %508 = vmatpush2.bf16.msra.mxu0 0
        %509 = vmatprep.subr.bf16.mxu0 0
        %510 = vmatpush2.bf16.msra.mxu0 0
        %511 = vmatprep.subr.bf16.mxu0 0
        %512 = vmatpush2.bf16.msra.mxu0 0
        %513 = vmatprep.subr.bf16.mxu0 0
        %514 = vmatpush2.bf16.msra.mxu0 0
        %515 = vmatprep.subr.bf16.mxu0 0
        %516 = vmatpush2.bf16.msra.mxu0 0
        %517 = vmatprep.mubr.bf16.mxu0 0
        %518 = vmatmul.mubr.bf16.gmra.mxu0 %v462
        %v519 = vpop.f32.mrf.mxu0
        %v520 = vadd.f32 %v406, %v519
        %v521 = vpop.f32.mrf.mxu0
        %v522 = vpop.f32.mrf.mxu0
        %v523 = vadd.f32 %v406, %v522
        %v524 = vpop.f32.mrf.mxu0
        %525 = vmatprep.mubr.bf16.mxu0 0
        %526 = vmatmul.mubr.bf16.gmra.mxu0 %v465
        %v527 = vpop.f32.mrf.mxu0
        %v528 = vadd.f32 %v406, %v527
        %v529 = vpop.f32.mrf.mxu0
        %v530 = vpop.f32.mrf.mxu0
        %v531 = vadd.f32 %v406, %v530
        %v532 = vpop.f32.mrf.mxu0
        %533 = vmatprep.mubr.bf16.mxu0 0
        %534 = vmatmul.mubr.bf16.gmra.mxu0 %v468
        %v535 = vpop.f32.mrf.mxu0
        %v536 = vadd.f32 %v406, %v535
        %v537 = vpop.f32.mrf.mxu0
        %v538 = vpop.f32.mrf.mxu0
        %v539 = vadd.f32 %v406, %v538
        %v540 = vpop.f32.mrf.mxu0
        %541 = vmatprep.mubr.bf16.mxu0 0
        %542 = vmatmul.mubr.bf16.gmra.mxu0 %v471
        %v543 = vpop.f32.mrf.mxu0
        %v544 = vadd.f32 %v406, %v543
        %v545 = vpop.f32.mrf.mxu0
        %v546 = vpop.f32.mrf.mxu0
        %v547 = vadd.f32 %v406, %v546
        %v548 = vpop.f32.mrf.mxu0
        %549 = vmatprep.mubr.bf16.mxu0 0
        %550 = vmatmul.mubr.bf16.gmra.mxu0 %v474
        %v551 = vpop.f32.mrf.mxu0
        %v552 = vadd.f32 %v406, %v551
        %v553 = vpop.f32.mrf.mxu0
        %v554 = vpop.f32.mrf.mxu0
        %v555 = vadd.f32 %v406, %v554
        %v556 = vpop.f32.mrf.mxu0
        %557 = vmatprep.mubr.bf16.mxu0 0
        %558 = vmatmul.mubr.bf16.gmra.mxu0 %v477
        %v559 = vpop.f32.mrf.mxu0
        %v560 = vadd.f32 %v406, %v559
        %v561 = vpop.f32.mrf.mxu0
        %v562 = vpop.f32.mrf.mxu0
        %v563 = vadd.f32 %v406, %v562
        %v564 = vpop.f32.mrf.mxu0
        %565 = vmatprep.mubr.bf16.mxu0 0
        %566 = vmatmul.mubr.bf16.gmra.mxu0 %v480
        %v567 = vpop.f32.mrf.mxu0
        %v568 = vadd.f32 %v406, %v567
        %v569 = vpop.f32.mrf.mxu0
        %v570 = vpop.f32.mrf.mxu0
        %v571 = vadd.f32 %v406, %v570
        %v572 = vpop.f32.mrf.mxu0
        %573 = vmatprep.mubr.bf16.mxu0 0
        %574 = vmatmul.mubr.bf16.gmra.mxu0 %v483
        %v575 = vpop.f32.mrf.mxu0
        %v576 = vadd.f32 %v406, %v575
        %v577 = vpop.f32.mrf.mxu0
        %v578 = vpop.f32.mrf.mxu0
        %v579 = vadd.f32 %v406, %v578
        %v580 = vpop.f32.mrf.mxu0
        %581 = vdwg.mxu0
        %vm582 = vcmp.gt.f32.partialorder %v520, 0.0
        %vm583 = vcmp.gt.f32.partialorder %v523, 0.0
        %vm584 = vcmp.gt.f32.partialorder %v528, 0.0
        %vm585 = vcmp.gt.f32.partialorder %v531, 0.0
        %vm586 = vcmp.gt.f32.partialorder %v536, 0.0
        %vm587 = vcmp.gt.f32.partialorder %v539, 0.0
        %vm588 = vcmp.gt.f32.partialorder %v544, 0.0
        %vm589 = vcmp.gt.f32.partialorder %v547, 0.0
        %vm590 = vcmp.gt.f32.partialorder %v552, 0.0
        %vm591 = vcmp.gt.f32.partialorder %v555, 0.0
        %vm592 = vcmp.gt.f32.partialorder %v560, 0.0
        %vm593 = vcmp.gt.f32.partialorder %v563, 0.0
        %vm594 = vcmp.gt.f32.partialorder %v568, 0.0
        %vm595 = vcmp.gt.f32.partialorder %v571, 0.0
        %vm596 = vcmp.gt.f32.partialorder %v576, 0.0
        %vm597 = vcmp.gt.f32.partialorder %v579, 0.0
        %v598 = vmul.f32 %v520, 0.2
        %v599 = vmul.f32 %v523, 0.2
        %v600 = vmul.f32 %v528, 0.2
        %v601 = vmul.f32 %v531, 0.2
        %v602 = vmul.f32 %v536, 0.2
        %v603 = vmul.f32 %v539, 0.2
        %v604 = vmul.f32 %v544, 0.2
        %v605 = vmul.f32 %v547, 0.2
        %v606 = vmul.f32 %v552, 0.2
        %v607 = vmul.f32 %v555, 0.2
        %v608 = vmul.f32 %v560, 0.2
        %v609 = vmul.f32 %v563, 0.2
        %v610 = vmul.f32 %v568, 0.2
        %v611 = vmul.f32 %v571, 0.2
        %v612 = vmul.f32 %v576, 0.2
        %v613 = vmul.f32 %v579, 0.2
        %v614 = vsel %vm582, %v520, %v598
        %v615 = vsel %vm583, %v523, %v599
        %v616 = vsel %vm584, %v528, %v600
        %v617 = vsel %vm585, %v531, %v601
        %v618 = vsel %vm586, %v536, %v602
        %v619 = vsel %vm587, %v539, %v603
        %v620 = vsel %vm588, %v544, %v604
        %v621 = vsel %vm589, %v547, %v605
        %v622 = vsel %vm590, %v552, %v606
        %v623 = vsel %vm591, %v555, %v607
        %v624 = vsel %vm592, %v560, %v608
        %v625 = vsel %vm593, %v563, %v609
        %v626 = vsel %vm594, %v568, %v610
        %v627 = vsel %vm595, %v571, %v611
        %v628 = vsel %vm596, %v576, %v612
        %v629 = vsel %vm597, %v579, %v613
        %v630 = vpack.c.bf16 %v615, %v614
        %v631 = vpack.c.bf16 %v617, %v616
        %v632 = vpack.c.bf16 %v619, %v618
        %v633 = vpack.c.bf16 %v621, %v620
        %v634 = vpack.c.bf16 %v623, %v622
        %v635 = vpack.c.bf16 %v625, %v624
        %v636 = vpack.c.bf16 %v627, %v626
        %v637 = vpack.c.bf16 %v629, %v628
        %v638 = vld [vmem:[#allocation4] sm:$0xff]
        %v639 = vld [vmem:[#allocation4 + $0x8] sm:$0xff]
        %v640 = vld [vmem:[#allocation4 + $0x10] sm:$0xff]
        %v641 = vld [vmem:[#allocation4 + $0x18] sm:$0xff]
        %v642 = vld [vmem:[#allocation4 + $0x20] sm:$0xff]
        %v643 = vld [vmem:[#allocation4 + $0x28] sm:$0xff]
        %v644 = vld [vmem:[#allocation4 + $0x30] sm:$0xff]
        %v645 = vld [vmem:[#allocation4 + $0x38] sm:$0xff]
        %v646 = vld [vmem:[#allocation4 + $0x40] sm:$0xff]
        %v647 = vld [vmem:[#allocation4 + $0x48] sm:$0xff]
        %v648 = vld [vmem:[#allocation4 + $0x50] sm:$0xff]
        %v649 = vld [vmem:[#allocation4 + $0x58] sm:$0xff]
        %v650 = vld [vmem:[#allocation4 + $0x60] sm:$0xff]
        %v651 = vld [vmem:[#allocation4 + $0x68] sm:$0xff]
        %v652 = vld [vmem:[#allocation4 + $0x70] sm:$0xff]
        %v653 = vld [vmem:[#allocation4 + $0x78] sm:$0xff]
        %v654 = vld [vmem:[%s4] sm:$0x3]
        %v656 = vlaneseq
        %v657 = vshrl.u32 %v656, 7
        %v658 = vsub.s32 0, %v657
        %v659 = vrot.slane %v654, %v658
        %v660 = vlaneseq
        %v661 = vshrl.u32 %v660, 7
        %v662 = vsub.s32 1, %v661
        %v663 = vrot.slane %v654, %v662
        %v682 = vunpack.c.l.b16 %v638
        %v683 = vunpack.c.h.b16 %v638
        %v684 = vunpack.c.l.b16 %v639
        %v685 = vunpack.c.h.b16 %v639
        %v686 = vunpack.c.l.b16 %v640
        %v687 = vunpack.c.h.b16 %v640
        %v688 = vunpack.c.l.b16 %v641
        %v689 = vunpack.c.h.b16 %v641
        %v690 = vunpack.c.l.b16 %v642
        %v691 = vunpack.c.h.b16 %v642
        %v692 = vunpack.c.l.b16 %v643
        %v693 = vunpack.c.h.b16 %v643
        %v694 = vunpack.c.l.b16 %v644
        %v695 = vunpack.c.h.b16 %v644
        %v696 = vunpack.c.l.b16 %v645
        %v697 = vunpack.c.h.b16 %v645
        %v698 = vunpack.c.l.b16 %v646
        %v699 = vunpack.c.h.b16 %v646
        %v700 = vunpack.c.l.b16 %v647
        %v701 = vunpack.c.h.b16 %v647
        %v702 = vunpack.c.l.b16 %v648
        %v703 = vunpack.c.h.b16 %v648
        %v704 = vunpack.c.l.b16 %v649
        %v705 = vunpack.c.h.b16 %v649
        %v706 = vunpack.c.l.b16 %v650
        %v707 = vunpack.c.h.b16 %v650
        %v708 = vunpack.c.l.b16 %v651
        %v709 = vunpack.c.h.b16 %v651
        %v710 = vunpack.c.l.b16 %v652
        %v711 = vunpack.c.h.b16 %v652
        %v712 = vunpack.c.l.b16 %v653
        %v713 = vunpack.c.h.b16 %v653
        %v714 = vpack.c.b16 %v684, %v682
        %v715 = vpack.c.b16 %v685, %v683
        %v716 = vpack.c.b16 %v688, %v686
        %v717 = vpack.c.b16 %v689, %v687
        %v718 = vpack.c.b16 %v692, %v690
        %v719 = vpack.c.b16 %v693, %v691
        %v720 = vpack.c.b16 %v696, %v694
        %v721 = vpack.c.b16 %v697, %v695
        %v722 = vpack.c.b16 %v700, %v698
        %v723 = vpack.c.b16 %v701, %v699
        %v724 = vpack.c.b16 %v704, %v702
        %v725 = vpack.c.b16 %v705, %v703
        %v726 = vpack.c.b16 %v708, %v706
        %v727 = vpack.c.b16 %v709, %v707
        %v728 = vpack.c.b16 %v712, %v710
        %v729 = vpack.c.b16 %v713, %v711
        %746 = vmatprep.subr.bf16.mxu0 %v729
        %747 = vmatpush1.bf16.msra.mxu0 %v728
        %748 = vmatprep.subr.bf16.mxu0 %v727
        %749 = vmatpush1.bf16.msra.mxu0 %v726
        %750 = vmatprep.subr.bf16.mxu0 %v725
        %751 = vmatpush1.bf16.msra.mxu0 %v724
        %752 = vmatprep.subr.bf16.mxu0 %v723
        %753 = vmatpush1.bf16.msra.mxu0 %v722
        %754 = vmatprep.subr.bf16.mxu0 %v721
        %755 = vmatpush1.bf16.msra.mxu0 %v720
        %756 = vmatprep.subr.bf16.mxu0 %v719
        %757 = vmatpush1.bf16.msra.mxu0 %v718
        %758 = vmatprep.subr.bf16.mxu0 %v717
        %759 = vmatpush1.bf16.msra.mxu0 %v716
        %760 = vmatprep.subr.bf16.mxu0 %v715
        %761 = vmatpush1.bf16.msra.mxu0 %v714
        %762 = vmatprep.subr.bf16.mxu0 0
        %763 = vmatpush2.bf16.msra.mxu0 0
        %764 = vmatprep.subr.bf16.mxu0 0
        %765 = vmatpush2.bf16.msra.mxu0 0
        %766 = vmatprep.subr.bf16.mxu0 0
        %767 = vmatpush2.bf16.msra.mxu0 0
        %768 = vmatprep.subr.bf16.mxu0 0
        %769 = vmatpush2.bf16.msra.mxu0 0
        %770 = vmatprep.subr.bf16.mxu0 0
        %771 = vmatpush2.bf16.msra.mxu0 0
        %772 = vmatprep.subr.bf16.mxu0 0
        %773 = vmatpush2.bf16.msra.mxu0 0
        %774 = vmatprep.subr.bf16.mxu0 0
        %775 = vmatpush2.bf16.msra.mxu0 0
        %776 = vmatprep.subr.bf16.mxu0 0
        %777 = vmatpush2.bf16.msra.mxu0 0
        %778 = vmatprep.mubr.bf16.mxu0 0
        %779 = vmatmul.mubr.bf16.gmra.mxu0 %v630
        %v780 = vpop.f32.mrf.mxu0
        %v781 = vadd.f32 %v659, %v780
        %v782 = vpop.f32.mrf.mxu0
        %v783 = vadd.f32 %v663, %v782
        %v784 = vpop.f32.mrf.mxu0
        %v785 = vadd.f32 %v659, %v784
        %v786 = vpop.f32.mrf.mxu0
        %v787 = vadd.f32 %v663, %v786
        %788 = vmatprep.mubr.bf16.mxu0 0
        %789 = vmatmul.mubr.bf16.gmra.mxu0 %v631
        %v790 = vpop.f32.mrf.mxu0
        %v791 = vadd.f32 %v659, %v790
        %v792 = vpop.f32.mrf.mxu0
        %v793 = vadd.f32 %v663, %v792
        %v794 = vpop.f32.mrf.mxu0
        %v795 = vadd.f32 %v659, %v794
        %v796 = vpop.f32.mrf.mxu0
        %v797 = vadd.f32 %v663, %v796
        %798 = vmatprep.mubr.bf16.mxu0 0
        %799 = vmatmul.mubr.bf16.gmra.mxu0 %v632
        %v800 = vpop.f32.mrf.mxu0
        %v801 = vadd.f32 %v659, %v800
        %v802 = vpop.f32.mrf.mxu0
        %v803 = vadd.f32 %v663, %v802
        %v804 = vpop.f32.mrf.mxu0
        %v805 = vadd.f32 %v659, %v804
        %v806 = vpop.f32.mrf.mxu0
        %v807 = vadd.f32 %v663, %v806
        %808 = vmatprep.mubr.bf16.mxu0 0
        %809 = vmatmul.mubr.bf16.gmra.mxu0 %v633
        %v810 = vpop.f32.mrf.mxu0
        %v811 = vadd.f32 %v659, %v810
        %v812 = vpop.f32.mrf.mxu0
        %v813 = vadd.f32 %v663, %v812
        %v814 = vpop.f32.mrf.mxu0
        %v815 = vadd.f32 %v659, %v814
        %v816 = vpop.f32.mrf.mxu0
        %v817 = vadd.f32 %v663, %v816
        %818 = vmatprep.mubr.bf16.mxu0 0
        %819 = vmatmul.mubr.bf16.gmra.mxu0 %v634
        %v820 = vpop.f32.mrf.mxu0
        %v821 = vadd.f32 %v659, %v820
        %v822 = vpop.f32.mrf.mxu0
        %v823 = vadd.f32 %v663, %v822
        %v824 = vpop.f32.mrf.mxu0
        %v825 = vadd.f32 %v659, %v824
        %v826 = vpop.f32.mrf.mxu0
        %v827 = vadd.f32 %v663, %v826
        %828 = vmatprep.mubr.bf16.mxu0 0
        %829 = vmatmul.mubr.bf16.gmra.mxu0 %v635
        %v830 = vpop.f32.mrf.mxu0
        %v831 = vadd.f32 %v659, %v830
        %v832 = vpop.f32.mrf.mxu0
        %v833 = vadd.f32 %v663, %v832
        %v834 = vpop.f32.mrf.mxu0
        %v835 = vadd.f32 %v659, %v834
        %v836 = vpop.f32.mrf.mxu0
        %v837 = vadd.f32 %v663, %v836
        %838 = vmatprep.mubr.bf16.mxu0 0
        %839 = vmatmul.mubr.bf16.gmra.mxu0 %v636
        %v840 = vpop.f32.mrf.mxu0
        %v841 = vadd.f32 %v659, %v840
        %v842 = vpop.f32.mrf.mxu0
        %v843 = vadd.f32 %v663, %v842
        %v844 = vpop.f32.mrf.mxu0
        %v845 = vadd.f32 %v659, %v844
        %v846 = vpop.f32.mrf.mxu0
        %v847 = vadd.f32 %v663, %v846
        %848 = vmatprep.mubr.bf16.mxu0 0
        %849 = vmatmul.mubr.bf16.gmra.mxu0 %v637
        %v850 = vpop.f32.mrf.mxu0
        %v851 = vadd.f32 %v659, %v850
        %v852 = vpop.f32.mrf.mxu0
        %v853 = vadd.f32 %v663, %v852
        %v854 = vpop.f32.mrf.mxu0
        %v855 = vadd.f32 %v659, %v854
        %v856 = vpop.f32.mrf.mxu0
        %v857 = vadd.f32 %v663, %v856
        %858 = vdwg.mxu0
        %vm859 = vcmp.gt.f32.partialorder %v781, 0.0
        %vm860 = vcmp.gt.f32.partialorder %v783, 0.0
        %vm861 = vcmp.gt.f32.partialorder %v785, 0.0
        %vm862 = vcmp.gt.f32.partialorder %v787, 0.0
        %vm863 = vcmp.gt.f32.partialorder %v791, 0.0
        %vm864 = vcmp.gt.f32.partialorder %v793, 0.0
        %vm865 = vcmp.gt.f32.partialorder %v795, 0.0
        %vm866 = vcmp.gt.f32.partialorder %v797, 0.0
        %vm867 = vcmp.gt.f32.partialorder %v801, 0.0
        %vm868 = vcmp.gt.f32.partialorder %v803, 0.0
        %vm869 = vcmp.gt.f32.partialorder %v805, 0.0
        %vm870 = vcmp.gt.f32.partialorder %v807, 0.0
        %vm871 = vcmp.gt.f32.partialorder %v811, 0.0
        %vm872 = vcmp.gt.f32.partialorder %v813, 0.0
        %vm873 = vcmp.gt.f32.partialorder %v815, 0.0
        %vm874 = vcmp.gt.f32.partialorder %v817, 0.0
        %vm875 = vcmp.gt.f32.partialorder %v821, 0.0
        %vm876 = vcmp.gt.f32.partialorder %v823, 0.0
        %vm877 = vcmp.gt.f32.partialorder %v825, 0.0
        %vm878 = vcmp.gt.f32.partialorder %v827, 0.0
        %vm879 = vcmp.gt.f32.partialorder %v831, 0.0
        %vm880 = vcmp.gt.f32.partialorder %v833, 0.0
        %vm881 = vcmp.gt.f32.partialorder %v835, 0.0
        %vm882 = vcmp.gt.f32.partialorder %v837, 0.0
        %vm883 = vcmp.gt.f32.partialorder %v841, 0.0
        %vm884 = vcmp.gt.f32.partialorder %v843, 0.0
        %vm885 = vcmp.gt.f32.partialorder %v845, 0.0
        %vm886 = vcmp.gt.f32.partialorder %v847, 0.0
        %vm887 = vcmp.gt.f32.partialorder %v851, 0.0
        %vm888 = vcmp.gt.f32.partialorder %v853, 0.0
        %vm889 = vcmp.gt.f32.partialorder %v855, 0.0
        %vm890 = vcmp.gt.f32.partialorder %v857, 0.0
        %v891 = vmul.f32 %v781, 0.2
        %v892 = vmul.f32 %v783, 0.2
        %v893 = vmul.f32 %v785, 0.2
        %v894 = vmul.f32 %v787, 0.2
        %v895 = vmul.f32 %v791, 0.2
        %v896 = vmul.f32 %v793, 0.2
        %v897 = vmul.f32 %v795, 0.2
        %v898 = vmul.f32 %v797, 0.2
        %v899 = vmul.f32 %v801, 0.2
        %v900 = vmul.f32 %v803, 0.2
        %v901 = vmul.f32 %v805, 0.2
        %v902 = vmul.f32 %v807, 0.2
        %v903 = vmul.f32 %v811, 0.2
        %v904 = vmul.f32 %v813, 0.2
        %v905 = vmul.f32 %v815, 0.2
        %v906 = vmul.f32 %v817, 0.2
        %v907 = vmul.f32 %v821, 0.2
        %v908 = vmul.f32 %v823, 0.2
        %v909 = vmul.f32 %v825, 0.2
        %v910 = vmul.f32 %v827, 0.2
        %v911 = vmul.f32 %v831, 0.2
        %v912 = vmul.f32 %v833, 0.2
        %v913 = vmul.f32 %v835, 0.2
        %v914 = vmul.f32 %v837, 0.2
        %v915 = vmul.f32 %v841, 0.2
        %v916 = vmul.f32 %v843, 0.2
        %v917 = vmul.f32 %v845, 0.2
        %v918 = vmul.f32 %v847, 0.2
        %v919 = vmul.f32 %v851, 0.2
        %v920 = vmul.f32 %v853, 0.2
        %v921 = vmul.f32 %v855, 0.2
        %v922 = vmul.f32 %v857, 0.2
        %v923 = vsel %vm859, %v781, %v891
        %v924 = vsel %vm860, %v783, %v892
        %v925 = vsel %vm861, %v785, %v893
        %v926 = vsel %vm862, %v787, %v894
        %v927 = vsel %vm863, %v791, %v895
        %v928 = vsel %vm864, %v793, %v896
        %v929 = vsel %vm865, %v795, %v897
        %v930 = vsel %vm866, %v797, %v898
        %v931 = vsel %vm867, %v801, %v899
        %v932 = vsel %vm868, %v803, %v900
        %v933 = vsel %vm869, %v805, %v901
        %v934 = vsel %vm870, %v807, %v902
        %v935 = vsel %vm871, %v811, %v903
        %v936 = vsel %vm872, %v813, %v904
        %v937 = vsel %vm873, %v815, %v905
        %v938 = vsel %vm874, %v817, %v906
        %v939 = vsel %vm875, %v821, %v907
        %v940 = vsel %vm876, %v823, %v908
        %v941 = vsel %vm877, %v825, %v909
        %v942 = vsel %vm878, %v827, %v910
        %v943 = vsel %vm879, %v831, %v911
        %v944 = vsel %vm880, %v833, %v912
        %v945 = vsel %vm881, %v835, %v913
        %v946 = vsel %vm882, %v837, %v914
        %v947 = vsel %vm883, %v841, %v915
        %v948 = vsel %vm884, %v843, %v916
        %v949 = vsel %vm885, %v845, %v917
        %v950 = vsel %vm886, %v847, %v918
        %v951 = vsel %vm887, %v851, %v919
        %v952 = vsel %vm888, %v853, %v920
        %v953 = vsel %vm889, %v855, %v921
        %v954 = vsel %vm890, %v857, %v922
        %v955 = vpack.c.bf16 %v925, %v923
        %v956 = vpack.c.bf16 %v926, %v924
        %v957 = vpack.c.bf16 %v929, %v927
        %v958 = vpack.c.bf16 %v930, %v928
        %v959 = vpack.c.bf16 %v933, %v931
        %v960 = vpack.c.bf16 %v934, %v932
        %v961 = vpack.c.bf16 %v937, %v935
        %v962 = vpack.c.bf16 %v938, %v936
        %v963 = vpack.c.bf16 %v941, %v939
        %v964 = vpack.c.bf16 %v942, %v940
        %v965 = vpack.c.bf16 %v945, %v943
        %v966 = vpack.c.bf16 %v946, %v944
        %v967 = vpack.c.bf16 %v949, %v947
        %v968 = vpack.c.bf16 %v950, %v948
        %v969 = vpack.c.bf16 %v953, %v951
        %v970 = vpack.c.bf16 %v954, %v952
        %v971 = vld [vmem:[#allocation6] sm:$0xff]
        %v972 = vld [vmem:[#allocation6 + $0x8] sm:$0xff]
        %v973 = vld [vmem:[#allocation6 + $0x10] sm:$0xff]
        %v974 = vld [vmem:[#allocation6 + $0x18] sm:$0xff]
        %v975 = vld [vmem:[#allocation6 + $0x20] sm:$0xff]
        %v976 = vld [vmem:[#allocation6 + $0x28] sm:$0xff]
        %v977 = vld [vmem:[#allocation6 + $0x30] sm:$0xff]
        %v978 = vld [vmem:[#allocation6 + $0x38] sm:$0xff]
        %v979 = vld [vmem:[#allocation6 + $0x40] sm:$0xff]
        %v980 = vld [vmem:[#allocation6 + $0x48] sm:$0xff]
        %v981 = vld [vmem:[#allocation6 + $0x50] sm:$0xff]
        %v982 = vld [vmem:[#allocation6 + $0x58] sm:$0xff]
        %v983 = vld [vmem:[#allocation6 + $0x60] sm:$0xff]
        %v984 = vld [vmem:[#allocation6 + $0x68] sm:$0xff]
        %v985 = vld [vmem:[#allocation6 + $0x70] sm:$0xff]
        %v986 = vld [vmem:[#allocation6 + $0x78] sm:$0xff]
        %v987 = vld [vmem:[#allocation6 + $0x80] sm:$0xff]
        %v988 = vld [vmem:[#allocation6 + $0x88] sm:$0xff]
        %v989 = vld [vmem:[#allocation6 + $0x90] sm:$0xff]
        %v990 = vld [vmem:[#allocation6 + $0x98] sm:$0xff]
        %v991 = vld [vmem:[#allocation6 + $0xa0] sm:$0xff]
        %v992 = vld [vmem:[#allocation6 + $0xa8] sm:$0xff]
        %v993 = vld [vmem:[#allocation6 + $0xb0] sm:$0xff]
        %v994 = vld [vmem:[#allocation6 + $0xb8] sm:$0xff]
        %v995 = vld [vmem:[#allocation6 + $0xc0] sm:$0xff]
        %v996 = vld [vmem:[#allocation6 + $0xc8] sm:$0xff]
        %v997 = vld [vmem:[#allocation6 + $0xd0] sm:$0xff]
        %v998 = vld [vmem:[#allocation6 + $0xd8] sm:$0xff]
        %v999 = vld [vmem:[#allocation6 + $0xe0] sm:$0xff]
        %v1000 = vld [vmem:[#allocation6 + $0xe8] sm:$0xff]
        %v1001 = vld [vmem:[#allocation6 + $0xf0] sm:$0xff]
        %v1002 = vld [vmem:[#allocation6 + $0xf8] sm:$0xff]
        %v1003 = vld [vmem:[#allocation6 + $0x100] sm:$0xff]
        %v1004 = vld [vmem:[#allocation6 + $0x108] sm:$0xff]
        %v1005 = vld [vmem:[#allocation6 + $0x110] sm:$0xff]
        %v1006 = vld [vmem:[#allocation6 + $0x118] sm:$0xff]
        %v1007 = vld [vmem:[#allocation6 + $0x120] sm:$0xff]
        %v1008 = vld [vmem:[#allocation6 + $0x128] sm:$0xff]
        %v1009 = vld [vmem:[#allocation6 + $0x130] sm:$0xff]
        %v1010 = vld [vmem:[#allocation6 + $0x138] sm:$0xff]
        %v1011 = vld [vmem:[#allocation6 + $0x140] sm:$0xff]
        %v1012 = vld [vmem:[#allocation6 + $0x148] sm:$0xff]
        %v1013 = vld [vmem:[#allocation6 + $0x150] sm:$0xff]
        %v1014 = vld [vmem:[#allocation6 + $0x158] sm:$0xff]
        %v1015 = vld [vmem:[#allocation6 + $0x160] sm:$0xff]
        %v1016 = vld [vmem:[#allocation6 + $0x168] sm:$0xff]
        %v1017 = vld [vmem:[#allocation6 + $0x170] sm:$0xff]
        %v1018 = vld [vmem:[#allocation6 + $0x178] sm:$0xff]
        %v1019 = vld [vmem:[#allocation6 + $0x180] sm:$0xff]
        %v1020 = vld [vmem:[#allocation6 + $0x188] sm:$0xff]
        %v1021 = vld [vmem:[#allocation6 + $0x190] sm:$0xff]
        %v1022 = vld [vmem:[#allocation6 + $0x198] sm:$0xff]
        %v1023 = vld [vmem:[#allocation6 + $0x1a0] sm:$0xff]
        %v1024 = vld [vmem:[#allocation6 + $0x1a8] sm:$0xff]
        %v1025 = vld [vmem:[#allocation6 + $0x1b0] sm:$0xff]
        %v1026 = vld [vmem:[#allocation6 + $0x1b8] sm:$0xff]
        %v1027 = vld [vmem:[#allocation6 + $0x1c0] sm:$0xff]
        %v1028 = vld [vmem:[#allocation6 + $0x1c8] sm:$0xff]
        %v1029 = vld [vmem:[#allocation6 + $0x1d0] sm:$0xff]
        %v1030 = vld [vmem:[#allocation6 + $0x1d8] sm:$0xff]
        %v1031 = vld [vmem:[#allocation6 + $0x1e0] sm:$0xff]
        %v1032 = vld [vmem:[#allocation6 + $0x1e8] sm:$0xff]
        %v1033 = vld [vmem:[#allocation6 + $0x1f0] sm:$0xff]
        %v1034 = vld [vmem:[#allocation6 + $0x1f8] sm:$0xff]
        %v1035 = vld [vmem:[%s6] sm:$0xf]
        %v1037 = vlaneseq
        %v1038 = vshrl.u32 %v1037, 7
        %v1039 = vsub.s32 0, %v1038
        %v1040 = vrot.slane %v1035, %v1039
        %v1041 = vlaneseq
        %v1042 = vshrl.u32 %v1041, 7
        %v1043 = vsub.s32 1, %v1042
        %v1044 = vrot.slane %v1035, %v1043
        %v1045 = vlaneseq
        %v1046 = vshrl.u32 %v1045, 7
        %v1047 = vsub.s32 2, %v1046
        %v1048 = vrot.slane %v1035, %v1047
        %v1049 = vlaneseq
        %v1050 = vshrl.u32 %v1049, 7
        %v1051 = vsub.s32 3, %v1050
        %v1052 = vrot.slane %v1035, %v1051
        %v1121 = vunpack.c.l.b16 %v971
        %v1122 = vunpack.c.h.b16 %v971
        %v1123 = vunpack.c.l.b16 %v972
        %v1124 = vunpack.c.h.b16 %v972
        %v1125 = vunpack.c.l.b16 %v973
        %v1126 = vunpack.c.h.b16 %v973
        %v1127 = vunpack.c.l.b16 %v974
        %v1128 = vunpack.c.h.b16 %v974
        %v1129 = vunpack.c.l.b16 %v975
        %v1130 = vunpack.c.h.b16 %v975
        %v1131 = vunpack.c.l.b16 %v976
        %v1132 = vunpack.c.h.b16 %v976
        %v1133 = vunpack.c.l.b16 %v977
        %v1134 = vunpack.c.h.b16 %v977
        %v1135 = vunpack.c.l.b16 %v978
        %v1136 = vunpack.c.h.b16 %v978
        %v1137 = vunpack.c.l.b16 %v979
        %v1138 = vunpack.c.h.b16 %v979
        %v1139 = vunpack.c.l.b16 %v980
        %v1140 = vunpack.c.h.b16 %v980
        %v1141 = vunpack.c.l.b16 %v981
        %v1142 = vunpack.c.h.b16 %v981
        %v1143 = vunpack.c.l.b16 %v982
        %v1144 = vunpack.c.h.b16 %v982
        %v1145 = vunpack.c.l.b16 %v983
        %v1146 = vunpack.c.h.b16 %v983
        %v1147 = vunpack.c.l.b16 %v984
        %v1148 = vunpack.c.h.b16 %v984
        %v1149 = vunpack.c.l.b16 %v985
        %v1150 = vunpack.c.h.b16 %v985
        %v1151 = vunpack.c.l.b16 %v986
        %v1152 = vunpack.c.h.b16 %v986
        %v1153 = vunpack.c.l.b16 %v987
        %v1154 = vunpack.c.h.b16 %v987
        %v1155 = vunpack.c.l.b16 %v988
        %v1156 = vunpack.c.h.b16 %v988
        %v1157 = vunpack.c.l.b16 %v989
        %v1158 = vunpack.c.h.b16 %v989
        %v1159 = vunpack.c.l.b16 %v990
        %v1160 = vunpack.c.h.b16 %v990
        %v1161 = vunpack.c.l.b16 %v991
        %v1162 = vunpack.c.h.b16 %v991
        %v1163 = vunpack.c.l.b16 %v992
        %v1164 = vunpack.c.h.b16 %v992
        %v1165 = vunpack.c.l.b16 %v993
        %v1166 = vunpack.c.h.b16 %v993
        %v1167 = vunpack.c.l.b16 %v994
        %v1168 = vunpack.c.h.b16 %v994
        %v1169 = vunpack.c.l.b16 %v995
        %v1170 = vunpack.c.h.b16 %v995
        %v1171 = vunpack.c.l.b16 %v996
        %v1172 = vunpack.c.h.b16 %v996
        %v1173 = vunpack.c.l.b16 %v997
        %v1174 = vunpack.c.h.b16 %v997
        %v1175 = vunpack.c.l.b16 %v998
        %v1176 = vunpack.c.h.b16 %v998
        %v1177 = vunpack.c.l.b16 %v999
        %v1178 = vunpack.c.h.b16 %v999
        %v1179 = vunpack.c.l.b16 %v1000
        %v1180 = vunpack.c.h.b16 %v1000
        %v1181 = vunpack.c.l.b16 %v1001
        %v1182 = vunpack.c.h.b16 %v1001
        %v1183 = vunpack.c.l.b16 %v1002
        %v1184 = vunpack.c.h.b16 %v1002
        %v1185 = vunpack.c.l.b16 %v1003
        %v1186 = vunpack.c.h.b16 %v1003
        %v1187 = vunpack.c.l.b16 %v1004
        %v1188 = vunpack.c.h.b16 %v1004
        %v1189 = vunpack.c.l.b16 %v1005
        %v1190 = vunpack.c.h.b16 %v1005
        %v1191 = vunpack.c.l.b16 %v1006
        %v1192 = vunpack.c.h.b16 %v1006
        %v1193 = vunpack.c.l.b16 %v1007
        %v1194 = vunpack.c.h.b16 %v1007
        %v1195 = vunpack.c.l.b16 %v1008
        %v1196 = vunpack.c.h.b16 %v1008
        %v1197 = vunpack.c.l.b16 %v1009
        %v1198 = vunpack.c.h.b16 %v1009
        %v1199 = vunpack.c.l.b16 %v1010
        %v1200 = vunpack.c.h.b16 %v1010
        %v1201 = vunpack.c.l.b16 %v1011
        %v1202 = vunpack.c.h.b16 %v1011
        %v1203 = vunpack.c.l.b16 %v1012
        %v1204 = vunpack.c.h.b16 %v1012
        %v1205 = vunpack.c.l.b16 %v1013
        %v1206 = vunpack.c.h.b16 %v1013
        %v1207 = vunpack.c.l.b16 %v1014
        %v1208 = vunpack.c.h.b16 %v1014
        %v1209 = vunpack.c.l.b16 %v1015
        %v1210 = vunpack.c.h.b16 %v1015
        %v1211 = vunpack.c.l.b16 %v1016
        %v1212 = vunpack.c.h.b16 %v1016
        %v1213 = vunpack.c.l.b16 %v1017
        %v1214 = vunpack.c.h.b16 %v1017
        %v1215 = vunpack.c.l.b16 %v1018
        %v1216 = vunpack.c.h.b16 %v1018
        %v1217 = vunpack.c.l.b16 %v1019
        %v1218 = vunpack.c.h.b16 %v1019
        %v1219 = vunpack.c.l.b16 %v1020
        %v1220 = vunpack.c.h.b16 %v1020
        %v1221 = vunpack.c.l.b16 %v1021
        %v1222 = vunpack.c.h.b16 %v1021
        %v1223 = vunpack.c.l.b16 %v1022
        %v1224 = vunpack.c.h.b16 %v1022
        %v1225 = vunpack.c.l.b16 %v1023
        %v1226 = vunpack.c.h.b16 %v1023
        %v1227 = vunpack.c.l.b16 %v1024
        %v1228 = vunpack.c.h.b16 %v1024
        %v1229 = vunpack.c.l.b16 %v1025
        %v1230 = vunpack.c.h.b16 %v1025
        %v1231 = vunpack.c.l.b16 %v1026
        %v1232 = vunpack.c.h.b16 %v1026
        %v1233 = vunpack.c.l.b16 %v1027
        %v1234 = vunpack.c.h.b16 %v1027
        %v1235 = vunpack.c.l.b16 %v1028
        %v1236 = vunpack.c.h.b16 %v1028
        %v1237 = vunpack.c.l.b16 %v1029
        %v1238 = vunpack.c.h.b16 %v1029
        %v1239 = vunpack.c.l.b16 %v1030
        %v1240 = vunpack.c.h.b16 %v1030
        %v1241 = vunpack.c.l.b16 %v1031
        %v1242 = vunpack.c.h.b16 %v1031
        %v1243 = vunpack.c.l.b16 %v1032
        %v1244 = vunpack.c.h.b16 %v1032
        %v1245 = vunpack.c.l.b16 %v1033
        %v1246 = vunpack.c.h.b16 %v1033
        %v1247 = vunpack.c.l.b16 %v1034
        %v1248 = vunpack.c.h.b16 %v1034
        %v1249 = vpack.c.b16 %v1125, %v1121
        %v1250 = vpack.c.b16 %v1126, %v1122
        %v1251 = vpack.c.b16 %v1127, %v1123
        %v1252 = vpack.c.b16 %v1128, %v1124
        %v1253 = vpack.c.b16 %v1133, %v1129
        %v1254 = vpack.c.b16 %v1134, %v1130
        %v1255 = vpack.c.b16 %v1135, %v1131
        %v1256 = vpack.c.b16 %v1136, %v1132
        %v1257 = vpack.c.b16 %v1141, %v1137
        %v1258 = vpack.c.b16 %v1142, %v1138
        %v1259 = vpack.c.b16 %v1143, %v1139
        %v1260 = vpack.c.b16 %v1144, %v1140
        %v1261 = vpack.c.b16 %v1149, %v1145
        %v1262 = vpack.c.b16 %v1150, %v1146
        %v1263 = vpack.c.b16 %v1151, %v1147
        %v1264 = vpack.c.b16 %v1152, %v1148
        %v1265 = vpack.c.b16 %v1157, %v1153
        %v1266 = vpack.c.b16 %v1158, %v1154
        %v1267 = vpack.c.b16 %v1159, %v1155
        %v1268 = vpack.c.b16 %v1160, %v1156
        %v1269 = vpack.c.b16 %v1165, %v1161
        %v1270 = vpack.c.b16 %v1166, %v1162
        %v1271 = vpack.c.b16 %v1167, %v1163
        %v1272 = vpack.c.b16 %v1168, %v1164
        %v1273 = vpack.c.b16 %v1173, %v1169
        %v1274 = vpack.c.b16 %v1174, %v1170
        %v1275 = vpack.c.b16 %v1175, %v1171
        %v1276 = vpack.c.b16 %v1176, %v1172
        %v1277 = vpack.c.b16 %v1181, %v1177
        %v1278 = vpack.c.b16 %v1182, %v1178
        %v1279 = vpack.c.b16 %v1183, %v1179
        %v1280 = vpack.c.b16 %v1184, %v1180
        %v1281 = vpack.c.b16 %v1189, %v1185
        %v1282 = vpack.c.b16 %v1190, %v1186
        %v1283 = vpack.c.b16 %v1191, %v1187
        %v1284 = vpack.c.b16 %v1192, %v1188
        %v1285 = vpack.c.b16 %v1197, %v1193
        %v1286 = vpack.c.b16 %v1198, %v1194
        %v1287 = vpack.c.b16 %v1199, %v1195
        %v1288 = vpack.c.b16 %v1200, %v1196
        %v1289 = vpack.c.b16 %v1205, %v1201
        %v1290 = vpack.c.b16 %v1206, %v1202
        %v1291 = vpack.c.b16 %v1207, %v1203
        %v1292 = vpack.c.b16 %v1208, %v1204
        %v1293 = vpack.c.b16 %v1213, %v1209
        %v1294 = vpack.c.b16 %v1214, %v1210
        %v1295 = vpack.c.b16 %v1215, %v1211
        %v1296 = vpack.c.b16 %v1216, %v1212
        %v1297 = vpack.c.b16 %v1221, %v1217
        %v1298 = vpack.c.b16 %v1222, %v1218
        %v1299 = vpack.c.b16 %v1223, %v1219
        %v1300 = vpack.c.b16 %v1224, %v1220
        %v1301 = vpack.c.b16 %v1229, %v1225
        %v1302 = vpack.c.b16 %v1230, %v1226
        %v1303 = vpack.c.b16 %v1231, %v1227
        %v1304 = vpack.c.b16 %v1232, %v1228
        %v1305 = vpack.c.b16 %v1237, %v1233
        %v1306 = vpack.c.b16 %v1238, %v1234
        %v1307 = vpack.c.b16 %v1239, %v1235
        %v1308 = vpack.c.b16 %v1240, %v1236
        %v1309 = vpack.c.b16 %v1245, %v1241
        %v1310 = vpack.c.b16 %v1246, %v1242
        %v1311 = vpack.c.b16 %v1247, %v1243
        %v1312 = vpack.c.b16 %v1248, %v1244
        %1377 = vmatprep.subr.bf16.mxu0 %v1278
        %1378 = vmatpush1.bf16.msra.mxu0 %v1277
        %1379 = vmatprep.subr.bf16.mxu0 %v1274
        %1380 = vmatpush1.bf16.msra.mxu0 %v1273
        %1381 = vmatprep.subr.bf16.mxu0 %v1270
        %1382 = vmatpush1.bf16.msra.mxu0 %v1269
        %1383 = vmatprep.subr.bf16.mxu0 %v1266
        %1384 = vmatpush1.bf16.msra.mxu0 %v1265
        %1385 = vmatprep.subr.bf16.mxu0 %v1262
        %1386 = vmatpush1.bf16.msra.mxu0 %v1261
        %1387 = vmatprep.subr.bf16.mxu0 %v1258
        %1388 = vmatpush1.bf16.msra.mxu0 %v1257
        %1389 = vmatprep.subr.bf16.mxu0 %v1254
        %1390 = vmatpush1.bf16.msra.mxu0 %v1253
        %1391 = vmatprep.subr.bf16.mxu0 %v1250
        %1392 = vmatpush1.bf16.msra.mxu0 %v1249
        %1393 = vmatprep.subr.bf16.mxu0 %v1310
        %1394 = vmatpush2.bf16.msra.mxu0 %v1309
        %1395 = vmatprep.subr.bf16.mxu0 %v1306
        %1396 = vmatpush2.bf16.msra.mxu0 %v1305
        %1397 = vmatprep.subr.bf16.mxu0 %v1302
        %1398 = vmatpush2.bf16.msra.mxu0 %v1301
        %1399 = vmatprep.subr.bf16.mxu0 %v1298
        %1400 = vmatpush2.bf16.msra.mxu0 %v1297
        %1401 = vmatprep.subr.bf16.mxu0 %v1294
        %1402 = vmatpush2.bf16.msra.mxu0 %v1293
        %1403 = vmatprep.subr.bf16.mxu0 %v1290
        %1404 = vmatpush2.bf16.msra.mxu0 %v1289
        %1405 = vmatprep.subr.bf16.mxu0 %v1286
        %1406 = vmatpush2.bf16.msra.mxu0 %v1285
        %1407 = vmatprep.subr.bf16.mxu0 %v1282
        %1408 = vmatpush2.bf16.msra.mxu0 %v1281
        %1409 = vmatprep.mubr.bf16.mxu0 %v956
        %1410 = vmatmul.mubr.bf16.gmra.mxu0 %v955
        %v1411 = vpop.f32.mrf.mxu0
        %v1412 = vadd.f32 %v1040, %v1411
        %v1413 = vpop.f32.mrf.mxu0
        %v1414 = vadd.f32 %v1044, %v1413
        %v1415 = vpop.f32.mrf.mxu0
        %v1416 = vadd.f32 %v1040, %v1415
        %v1417 = vpop.f32.mrf.mxu0
        %v1418 = vadd.f32 %v1044, %v1417
        %1419 = vmatprep.mubr.bf16.mxu0 %v958
        %1420 = vmatmul.mubr.bf16.gmra.mxu0 %v957
        %v1421 = vpop.f32.mrf.mxu0
        %v1422 = vadd.f32 %v1040, %v1421
        %v1423 = vpop.f32.mrf.mxu0
        %v1424 = vadd.f32 %v1044, %v1423
        %v1425 = vpop.f32.mrf.mxu0
        %v1426 = vadd.f32 %v1040, %v1425
        %v1427 = vpop.f32.mrf.mxu0
        %v1428 = vadd.f32 %v1044, %v1427
        %1429 = vmatprep.mubr.bf16.mxu0 %v960
        %1430 = vmatmul.mubr.bf16.gmra.mxu0 %v959
        %v1431 = vpop.f32.mrf.mxu0
        %v1432 = vadd.f32 %v1040, %v1431
        %v1433 = vpop.f32.mrf.mxu0
        %v1434 = vadd.f32 %v1044, %v1433
        %v1435 = vpop.f32.mrf.mxu0
        %v1436 = vadd.f32 %v1040, %v1435
        %v1437 = vpop.f32.mrf.mxu0
        %v1438 = vadd.f32 %v1044, %v1437
        %1439 = vmatprep.mubr.bf16.mxu0 %v962
        %1440 = vmatmul.mubr.bf16.gmra.mxu0 %v961
        %v1441 = vpop.f32.mrf.mxu0
        %v1442 = vadd.f32 %v1040, %v1441
        %v1443 = vpop.f32.mrf.mxu0
        %v1444 = vadd.f32 %v1044, %v1443
        %v1445 = vpop.f32.mrf.mxu0
        %v1446 = vadd.f32 %v1040, %v1445
        %v1447 = vpop.f32.mrf.mxu0
        %v1448 = vadd.f32 %v1044, %v1447
        %1449 = vmatprep.mubr.bf16.mxu0 %v964
        %1450 = vmatmul.mubr.bf16.gmra.mxu0 %v963
        %v1451 = vpop.f32.mrf.mxu0
        %v1452 = vadd.f32 %v1040, %v1451
        %v1453 = vpop.f32.mrf.mxu0
        %v1454 = vadd.f32 %v1044, %v1453
        %v1455 = vpop.f32.mrf.mxu0
        %v1456 = vadd.f32 %v1040, %v1455
        %v1457 = vpop.f32.mrf.mxu0
        %v1458 = vadd.f32 %v1044, %v1457
        %1459 = vmatprep.mubr.bf16.mxu0 %v966
        %1460 = vmatmul.mubr.bf16.gmra.mxu0 %v965
        %v1461 = vpop.f32.mrf.mxu0
        %v1462 = vadd.f32 %v1040, %v1461
        %v1463 = vpop.f32.mrf.mxu0
        %v1464 = vadd.f32 %v1044, %v1463
        %v1465 = vpop.f32.mrf.mxu0
        %v1466 = vadd.f32 %v1040, %v1465
        %v1467 = vpop.f32.mrf.mxu0
        %v1468 = vadd.f32 %v1044, %v1467
        %1469 = vmatprep.mubr.bf16.mxu0 %v968
        %1470 = vmatmul.mubr.bf16.gmra.mxu0 %v967
        %v1471 = vpop.f32.mrf.mxu0
        %v1472 = vadd.f32 %v1040, %v1471
        %v1473 = vpop.f32.mrf.mxu0
        %v1474 = vadd.f32 %v1044, %v1473
        %v1475 = vpop.f32.mrf.mxu0
        %v1476 = vadd.f32 %v1040, %v1475
        %v1477 = vpop.f32.mrf.mxu0
        %v1478 = vadd.f32 %v1044, %v1477
        %1479 = vmatprep.mubr.bf16.mxu0 %v970
        %1480 = vmatmul.mubr.bf16.gmra.mxu0 %v969
        %v1481 = vpop.f32.mrf.mxu0
        %v1482 = vadd.f32 %v1040, %v1481
        %v1483 = vpop.f32.mrf.mxu0
        %v1484 = vadd.f32 %v1044, %v1483
        %v1485 = vpop.f32.mrf.mxu0
        %v1486 = vadd.f32 %v1040, %v1485
        %v1487 = vpop.f32.mrf.mxu0
        %v1488 = vadd.f32 %v1044, %v1487
        %1489 = vdwg.mxu0
        %1490 = vmatprep.subr.bf16.mxu0 %v1280
        %1491 = vmatpush1.bf16.msra.mxu0 %v1279
        %1492 = vmatprep.subr.bf16.mxu0 %v1276
        %1493 = vmatpush1.bf16.msra.mxu0 %v1275
        %1494 = vmatprep.subr.bf16.mxu0 %v1272
        %1495 = vmatpush1.bf16.msra.mxu0 %v1271
        %1496 = vmatprep.subr.bf16.mxu0 %v1268
        %1497 = vmatpush1.bf16.msra.mxu0 %v1267
        %1498 = vmatprep.subr.bf16.mxu0 %v1264
        %1499 = vmatpush1.bf16.msra.mxu0 %v1263
        %1500 = vmatprep.subr.bf16.mxu0 %v1260
        %1501 = vmatpush1.bf16.msra.mxu0 %v1259
        %1502 = vmatprep.subr.bf16.mxu0 %v1256
        %1503 = vmatpush1.bf16.msra.mxu0 %v1255
        %1504 = vmatprep.subr.bf16.mxu0 %v1252
        %1505 = vmatpush1.bf16.msra.mxu0 %v1251
        %1506 = vmatprep.subr.bf16.mxu0 %v1312
        %1507 = vmatpush2.bf16.msra.mxu0 %v1311
        %1508 = vmatprep.subr.bf16.mxu0 %v1308
        %1509 = vmatpush2.bf16.msra.mxu0 %v1307
        %1510 = vmatprep.subr.bf16.mxu0 %v1304
        %1511 = vmatpush2.bf16.msra.mxu0 %v1303
        %1512 = vmatprep.subr.bf16.mxu0 %v1300
        %1513 = vmatpush2.bf16.msra.mxu0 %v1299
        %1514 = vmatprep.subr.bf16.mxu0 %v1296
        %1515 = vmatpush2.bf16.msra.mxu0 %v1295
        %1516 = vmatprep.subr.bf16.mxu0 %v1292
        %1517 = vmatpush2.bf16.msra.mxu0 %v1291
        %1518 = vmatprep.subr.bf16.mxu0 %v1288
        %1519 = vmatpush2.bf16.msra.mxu0 %v1287
        %1520 = vmatprep.subr.bf16.mxu0 %v1284
        %1521 = vmatpush2.bf16.msra.mxu0 %v1283
        %1522 = vmatprep.mubr.bf16.mxu0 %v956
        %1523 = vmatmul.mubr.bf16.gmra.mxu0 %v955
        %v1524 = vpop.f32.mrf.mxu0
        %v1525 = vadd.f32 %v1048, %v1524
        %v1526 = vpop.f32.mrf.mxu0
        %v1527 = vadd.f32 %v1052, %v1526
        %v1528 = vpop.f32.mrf.mxu0
        %v1529 = vadd.f32 %v1048, %v1528
        %v1530 = vpop.f32.mrf.mxu0
        %v1531 = vadd.f32 %v1052, %v1530
        %1532 = vmatprep.mubr.bf16.mxu0 %v958
        %1533 = vmatmul.mubr.bf16.gmra.mxu0 %v957
        %v1534 = vpop.f32.mrf.mxu0
        %v1535 = vadd.f32 %v1048, %v1534
        %v1536 = vpop.f32.mrf.mxu0
        %v1537 = vadd.f32 %v1052, %v1536
        %v1538 = vpop.f32.mrf.mxu0
        %v1539 = vadd.f32 %v1048, %v1538
        %v1540 = vpop.f32.mrf.mxu0
        %v1541 = vadd.f32 %v1052, %v1540
        %1542 = vmatprep.mubr.bf16.mxu0 %v960
        %1543 = vmatmul.mubr.bf16.gmra.mxu0 %v959
        %v1544 = vpop.f32.mrf.mxu0
        %v1545 = vadd.f32 %v1048, %v1544
        %v1546 = vpop.f32.mrf.mxu0
        %v1547 = vadd.f32 %v1052, %v1546
        %v1548 = vpop.f32.mrf.mxu0
        %v1549 = vadd.f32 %v1048, %v1548
        %v1550 = vpop.f32.mrf.mxu0
        %v1551 = vadd.f32 %v1052, %v1550
        %1552 = vmatprep.mubr.bf16.mxu0 %v962
        %1553 = vmatmul.mubr.bf16.gmra.mxu0 %v961
        %v1554 = vpop.f32.mrf.mxu0
        %v1555 = vadd.f32 %v1048, %v1554
        %v1556 = vpop.f32.mrf.mxu0
        %v1557 = vadd.f32 %v1052, %v1556
        %v1558 = vpop.f32.mrf.mxu0
        %v1559 = vadd.f32 %v1048, %v1558
        %v1560 = vpop.f32.mrf.mxu0
        %v1561 = vadd.f32 %v1052, %v1560
        %1562 = vmatprep.mubr.bf16.mxu0 %v964
        %1563 = vmatmul.mubr.bf16.gmra.mxu0 %v963
        %v1564 = vpop.f32.mrf.mxu0
        %v1565 = vadd.f32 %v1048, %v1564
        %v1566 = vpop.f32.mrf.mxu0
        %v1567 = vadd.f32 %v1052, %v1566
        %v1568 = vpop.f32.mrf.mxu0
        %v1569 = vadd.f32 %v1048, %v1568
        %v1570 = vpop.f32.mrf.mxu0
        %v1571 = vadd.f32 %v1052, %v1570
        %1572 = vmatprep.mubr.bf16.mxu0 %v966
        %1573 = vmatmul.mubr.bf16.gmra.mxu0 %v965
        %v1574 = vpop.f32.mrf.mxu0
        %v1575 = vadd.f32 %v1048, %v1574
        %v1576 = vpop.f32.mrf.mxu0
        %v1577 = vadd.f32 %v1052, %v1576
        %v1578 = vpop.f32.mrf.mxu0
        %v1579 = vadd.f32 %v1048, %v1578
        %v1580 = vpop.f32.mrf.mxu0
        %v1581 = vadd.f32 %v1052, %v1580
        %1582 = vmatprep.mubr.bf16.mxu0 %v968
        %1583 = vmatmul.mubr.bf16.gmra.mxu0 %v967
        %v1584 = vpop.f32.mrf.mxu0
        %v1585 = vadd.f32 %v1048, %v1584
        %v1586 = vpop.f32.mrf.mxu0
        %v1587 = vadd.f32 %v1052, %v1586
        %v1588 = vpop.f32.mrf.mxu0
        %v1589 = vadd.f32 %v1048, %v1588
        %v1590 = vpop.f32.mrf.mxu0
        %v1591 = vadd.f32 %v1052, %v1590
        %1592 = vmatprep.mubr.bf16.mxu0 %v970
        %1593 = vmatmul.mubr.bf16.gmra.mxu0 %v969
        %v1594 = vpop.f32.mrf.mxu0
        %v1595 = vadd.f32 %v1048, %v1594
        %v1596 = vpop.f32.mrf.mxu0
        %v1597 = vadd.f32 %v1052, %v1596
        %v1598 = vpop.f32.mrf.mxu0
        %v1599 = vadd.f32 %v1048, %v1598
        %v1600 = vpop.f32.mrf.mxu0
        %v1601 = vadd.f32 %v1052, %v1600
        %1602 = vdwg.mxu0
        %vm1603 = vcmp.gt.f32.partialorder %v1412, 0.0
        %vm1604 = vcmp.gt.f32.partialorder %v1414, 0.0
        %vm1605 = vcmp.gt.f32.partialorder %v1525, 0.0
        %vm1606 = vcmp.gt.f32.partialorder %v1527, 0.0
        %vm1607 = vcmp.gt.f32.partialorder %v1416, 0.0
        %vm1608 = vcmp.gt.f32.partialorder %v1418, 0.0
        %vm1609 = vcmp.gt.f32.partialorder %v1529, 0.0
        %vm1610 = vcmp.gt.f32.partialorder %v1531, 0.0
        %vm1611 = vcmp.gt.f32.partialorder %v1422, 0.0
        %vm1612 = vcmp.gt.f32.partialorder %v1424, 0.0
        %vm1613 = vcmp.gt.f32.partialorder %v1535, 0.0
        %vm1614 = vcmp.gt.f32.partialorder %v1537, 0.0
        %vm1615 = vcmp.gt.f32.partialorder %v1426, 0.0
        %vm1616 = vcmp.gt.f32.partialorder %v1428, 0.0
        %vm1617 = vcmp.gt.f32.partialorder %v1539, 0.0
        %vm1618 = vcmp.gt.f32.partialorder %v1541, 0.0
        %vm1619 = vcmp.gt.f32.partialorder %v1432, 0.0
        %vm1620 = vcmp.gt.f32.partialorder %v1434, 0.0
        %vm1621 = vcmp.gt.f32.partialorder %v1545, 0.0
        %vm1622 = vcmp.gt.f32.partialorder %v1547, 0.0
        %vm1623 = vcmp.gt.f32.partialorder %v1436, 0.0
        %vm1624 = vcmp.gt.f32.partialorder %v1438, 0.0
        %vm1625 = vcmp.gt.f32.partialorder %v1549, 0.0
        %vm1626 = vcmp.gt.f32.partialorder %v1551, 0.0
        %vm1627 = vcmp.gt.f32.partialorder %v1442, 0.0
        %vm1628 = vcmp.gt.f32.partialorder %v1444, 0.0
        %vm1629 = vcmp.gt.f32.partialorder %v1555, 0.0
        %vm1630 = vcmp.gt.f32.partialorder %v1557, 0.0
        %vm1631 = vcmp.gt.f32.partialorder %v1446, 0.0
        %vm1632 = vcmp.gt.f32.partialorder %v1448, 0.0
        %vm1633 = vcmp.gt.f32.partialorder %v1559, 0.0
        %vm1634 = vcmp.gt.f32.partialorder %v1561, 0.0
        %vm1635 = vcmp.gt.f32.partialorder %v1452, 0.0
        %vm1636 = vcmp.gt.f32.partialorder %v1454, 0.0
        %vm1637 = vcmp.gt.f32.partialorder %v1565, 0.0
        %vm1638 = vcmp.gt.f32.partialorder %v1567, 0.0
        %vm1639 = vcmp.gt.f32.partialorder %v1456, 0.0
        %vm1640 = vcmp.gt.f32.partialorder %v1458, 0.0
        %vm1641 = vcmp.gt.f32.partialorder %v1569, 0.0
        %vm1642 = vcmp.gt.f32.partialorder %v1571, 0.0
        %vm1643 = vcmp.gt.f32.partialorder %v1462, 0.0
        %vm1644 = vcmp.gt.f32.partialorder %v1464, 0.0
        %vm1645 = vcmp.gt.f32.partialorder %v1575, 0.0
        %vm1646 = vcmp.gt.f32.partialorder %v1577, 0.0
        %vm1647 = vcmp.gt.f32.partialorder %v1466, 0.0
        %vm1648 = vcmp.gt.f32.partialorder %v1468, 0.0
        %vm1649 = vcmp.gt.f32.partialorder %v1579, 0.0
        %vm1650 = vcmp.gt.f32.partialorder %v1581, 0.0
        %vm1651 = vcmp.gt.f32.partialorder %v1472, 0.0
        %vm1652 = vcmp.gt.f32.partialorder %v1474, 0.0
        %vm1653 = vcmp.gt.f32.partialorder %v1585, 0.0
        %vm1654 = vcmp.gt.f32.partialorder %v1587, 0.0
        %vm1655 = vcmp.gt.f32.partialorder %v1476, 0.0
        %vm1656 = vcmp.gt.f32.partialorder %v1478, 0.0
        %vm1657 = vcmp.gt.f32.partialorder %v1589, 0.0
        %vm1658 = vcmp.gt.f32.partialorder %v1591, 0.0
        %vm1659 = vcmp.gt.f32.partialorder %v1482, 0.0
        %vm1660 = vcmp.gt.f32.partialorder %v1484, 0.0
        %vm1661 = vcmp.gt.f32.partialorder %v1595, 0.0
        %vm1662 = vcmp.gt.f32.partialorder %v1597, 0.0
        %vm1663 = vcmp.gt.f32.partialorder %v1486, 0.0
        %vm1664 = vcmp.gt.f32.partialorder %v1488, 0.0
        %vm1665 = vcmp.gt.f32.partialorder %v1599, 0.0
        %vm1666 = vcmp.gt.f32.partialorder %v1601, 0.0
        %v1667 = vmul.f32 %v1412, 0.2
        %v1668 = vmul.f32 %v1414, 0.2
        %v1669 = vmul.f32 %v1525, 0.2
        %v1670 = vmul.f32 %v1527, 0.2
        %v1671 = vmul.f32 %v1416, 0.2
        %v1672 = vmul.f32 %v1418, 0.2
        %v1673 = vmul.f32 %v1529, 0.2
        %v1674 = vmul.f32 %v1531, 0.2
        %v1675 = vmul.f32 %v1422, 0.2
        %v1676 = vmul.f32 %v1424, 0.2
        %v1677 = vmul.f32 %v1535, 0.2
        %v1678 = vmul.f32 %v1537, 0.2
        %v1679 = vmul.f32 %v1426, 0.2
        %v1680 = vmul.f32 %v1428, 0.2
        %v1681 = vmul.f32 %v1539, 0.2
        %v1682 = vmul.f32 %v1541, 0.2
        %v1683 = vmul.f32 %v1432, 0.2
        %v1684 = vmul.f32 %v1434, 0.2
        %v1685 = vmul.f32 %v1545, 0.2
        %v1686 = vmul.f32 %v1547, 0.2
        %v1687 = vmul.f32 %v1436, 0.2
        %v1688 = vmul.f32 %v1438, 0.2
        %v1689 = vmul.f32 %v1549, 0.2
        %v1690 = vmul.f32 %v1551, 0.2
        %v1691 = vmul.f32 %v1442, 0.2
        %v1692 = vmul.f32 %v1444, 0.2
        %v1693 = vmul.f32 %v1555, 0.2
        %v1694 = vmul.f32 %v1557, 0.2
        %v1695 = vmul.f32 %v1446, 0.2
        %v1696 = vmul.f32 %v1448, 0.2
        %v1697 = vmul.f32 %v1559, 0.2
        %v1698 = vmul.f32 %v1561, 0.2
        %v1699 = vmul.f32 %v1452, 0.2
        %v1700 = vmul.f32 %v1454, 0.2
        %v1701 = vmul.f32 %v1565, 0.2
        %v1702 = vmul.f32 %v1567, 0.2
        %v1703 = vmul.f32 %v1456, 0.2
        %v1704 = vmul.f32 %v1458, 0.2
        %v1705 = vmul.f32 %v1569, 0.2
        %v1706 = vmul.f32 %v1571, 0.2
        %v1707 = vmul.f32 %v1462, 0.2
        %v1708 = vmul.f32 %v1464, 0.2
        %v1709 = vmul.f32 %v1575, 0.2
        %v1710 = vmul.f32 %v1577, 0.2
        %v1711 = vmul.f32 %v1466, 0.2
        %v1712 = vmul.f32 %v1468, 0.2
        %v1713 = vmul.f32 %v1579, 0.2
        %v1714 = vmul.f32 %v1581, 0.2
        %v1715 = vmul.f32 %v1472, 0.2
        %v1716 = vmul.f32 %v1474, 0.2
        %v1717 = vmul.f32 %v1585, 0.2
        %v1718 = vmul.f32 %v1587, 0.2
        %v1719 = vmul.f32 %v1476, 0.2
        %v1720 = vmul.f32 %v1478, 0.2
        %v1721 = vmul.f32 %v1589, 0.2
        %v1722 = vmul.f32 %v1591, 0.2
        %v1723 = vmul.f32 %v1482, 0.2
        %v1724 = vmul.f32 %v1484, 0.2
        %v1725 = vmul.f32 %v1595, 0.2
        %v1726 = vmul.f32 %v1597, 0.2
        %v1727 = vmul.f32 %v1486, 0.2
        %v1728 = vmul.f32 %v1488, 0.2
        %v1729 = vmul.f32 %v1599, 0.2
        %v1730 = vmul.f32 %v1601, 0.2
        %v1731 = vsel %vm1603, %v1412, %v1667
        %v1732 = vsel %vm1604, %v1414, %v1668
        %v1733 = vsel %vm1605, %v1525, %v1669
        %v1734 = vsel %vm1606, %v1527, %v1670
        %v1735 = vsel %vm1607, %v1416, %v1671
        %v1736 = vsel %vm1608, %v1418, %v1672
        %v1737 = vsel %vm1609, %v1529, %v1673
        %v1738 = vsel %vm1610, %v1531, %v1674
        %v1739 = vsel %vm1611, %v1422, %v1675
        %v1740 = vsel %vm1612, %v1424, %v1676
        %v1741 = vsel %vm1613, %v1535, %v1677
        %v1742 = vsel %vm1614, %v1537, %v1678
        %v1743 = vsel %vm1615, %v1426, %v1679
        %v1744 = vsel %vm1616, %v1428, %v1680
        %v1745 = vsel %vm1617, %v1539, %v1681
        %v1746 = vsel %vm1618, %v1541, %v1682
        %v1747 = vsel %vm1619, %v1432, %v1683
        %v1748 = vsel %vm1620, %v1434, %v1684
        %v1749 = vsel %vm1621, %v1545, %v1685
        %v1750 = vsel %vm1622, %v1547, %v1686
        %v1751 = vsel %vm1623, %v1436, %v1687
        %v1752 = vsel %vm1624, %v1438, %v1688
        %v1753 = vsel %vm1625, %v1549, %v1689
        %v1754 = vsel %vm1626, %v1551, %v1690
        %v1755 = vsel %vm1627, %v1442, %v1691
        %v1756 = vsel %vm1628, %v1444, %v1692
        %v1757 = vsel %vm1629, %v1555, %v1693
        %v1758 = vsel %vm1630, %v1557, %v1694
        %v1759 = vsel %vm1631, %v1446, %v1695
        %v1760 = vsel %vm1632, %v1448, %v1696
        %v1761 = vsel %vm1633, %v1559, %v1697
        %v1762 = vsel %vm1634, %v1561, %v1698
        %v1763 = vsel %vm1635, %v1452, %v1699
        %v1764 = vsel %vm1636, %v1454, %v1700
        %v1765 = vsel %vm1637, %v1565, %v1701
        %v1766 = vsel %vm1638, %v1567, %v1702
        %v1767 = vsel %vm1639, %v1456, %v1703
        %v1768 = vsel %vm1640, %v1458, %v1704
        %v1769 = vsel %vm1641, %v1569, %v1705
        %v1770 = vsel %vm1642, %v1571, %v1706
        %v1771 = vsel %vm1643, %v1462, %v1707
        %v1772 = vsel %vm1644, %v1464, %v1708
        %v1773 = vsel %vm1645, %v1575, %v1709
        %v1774 = vsel %vm1646, %v1577, %v1710
        %v1775 = vsel %vm1647, %v1466, %v1711
        %v1776 = vsel %vm1648, %v1468, %v1712
        %v1777 = vsel %vm1649, %v1579, %v1713
        %v1778 = vsel %vm1650, %v1581, %v1714
        %v1779 = vsel %vm1651, %v1472, %v1715
        %v1780 = vsel %vm1652, %v1474, %v1716
        %v1781 = vsel %vm1653, %v1585, %v1717
        %v1782 = vsel %vm1654, %v1587, %v1718
        %v1783 = vsel %vm1655, %v1476, %v1719
        %v1784 = vsel %vm1656, %v1478, %v1720
        %v1785 = vsel %vm1657, %v1589, %v1721
        %v1786 = vsel %vm1658, %v1591, %v1722
        %v1787 = vsel %vm1659, %v1482, %v1723
        %v1788 = vsel %vm1660, %v1484, %v1724
        %v1789 = vsel %vm1661, %v1595, %v1725
        %v1790 = vsel %vm1662, %v1597, %v1726
        %v1791 = vsel %vm1663, %v1486, %v1727
        %v1792 = vsel %vm1664, %v1488, %v1728
        %v1793 = vsel %vm1665, %v1599, %v1729
        %v1794 = vsel %vm1666, %v1601, %v1730
        %v1795 = vpack.c.bf16 %v1735, %v1731
        %v1796 = vpack.c.bf16 %v1736, %v1732
        %v1797 = vpack.c.bf16 %v1737, %v1733
        %v1798 = vpack.c.bf16 %v1738, %v1734
        %v1799 = vpack.c.bf16 %v1743, %v1739
        %v1800 = vpack.c.bf16 %v1744, %v1740
        %v1801 = vpack.c.bf16 %v1745, %v1741
        %v1802 = vpack.c.bf16 %v1746, %v1742
        %v1803 = vpack.c.bf16 %v1751, %v1747
        %v1804 = vpack.c.bf16 %v1752, %v1748
        %v1805 = vpack.c.bf16 %v1753, %v1749
        %v1806 = vpack.c.bf16 %v1754, %v1750
        %v1807 = vpack.c.bf16 %v1759, %v1755
        %v1808 = vpack.c.bf16 %v1760, %v1756
        %v1809 = vpack.c.bf16 %v1761, %v1757
        %v1810 = vpack.c.bf16 %v1762, %v1758
        %v1811 = vpack.c.bf16 %v1767, %v1763
        %v1812 = vpack.c.bf16 %v1768, %v1764
        %v1813 = vpack.c.bf16 %v1769, %v1765
        %v1814 = vpack.c.bf16 %v1770, %v1766
        %v1815 = vpack.c.bf16 %v1775, %v1771
        %v1816 = vpack.c.bf16 %v1776, %v1772
        %v1817 = vpack.c.bf16 %v1777, %v1773
        %v1818 = vpack.c.bf16 %v1778, %v1774
        %v1819 = vpack.c.bf16 %v1783, %v1779
        %v1820 = vpack.c.bf16 %v1784, %v1780
        %v1821 = vpack.c.bf16 %v1785, %v1781
        %v1822 = vpack.c.bf16 %v1786, %v1782
        %v1823 = vpack.c.bf16 %v1791, %v1787
        %v1824 = vpack.c.bf16 %v1792, %v1788
        %v1825 = vpack.c.bf16 %v1793, %v1789
        %v1826 = vpack.c.bf16 %v1794, %v1790
        %v1827 = vld [vmem:[%s7] sm:$0xf]
        %v1828 = vld [vmem:[%s7 + $0x4] sm:$0xf]
        %v1829 = vld [vmem:[%s7 + $0x8] sm:$0xf]
        %v1830 = vld [vmem:[%s7 + $0xc] sm:$0xf]
        %v1831 = vld [vmem:[%s7 + $0x10] sm:$0xf]
        %v1832 = vld [vmem:[%s7 + $0x14] sm:$0xf]
        %v1833 = vld [vmem:[%s7 + $0x18] sm:$0xf]
        %v1834 = vld [vmem:[%s7 + $0x1c] sm:$0xf]
        %v1835 = vld [vmem:[%s7 + $0x20] sm:$0xf]
        %v1836 = vld [vmem:[%s7 + $0x24] sm:$0xf]
        %v1837 = vld [vmem:[%s7 + $0x28] sm:$0xf]
        %v1838 = vld [vmem:[%s7 + $0x2c] sm:$0xf]
        %v1839 = vld [vmem:[%s7 + $0x30] sm:$0xf]
        %v1840 = vld [vmem:[%s7 + $0x34] sm:$0xf]
        %v1841 = vld [vmem:[%s7 + $0x38] sm:$0xf]
        %v1842 = vld [vmem:[%s7 + $0x3c] sm:$0xf]
        %v1843 = vld [vmem:[%s7 + $0x40] sm:$0xf]
        %v1844 = vld [vmem:[%s7 + $0x44] sm:$0xf]
        %v1845 = vld [vmem:[%s7 + $0x48] sm:$0xf]
        %v1846 = vld [vmem:[%s7 + $0x4c] sm:$0xf]
        %v1847 = vld [vmem:[%s7 + $0x50] sm:$0xf]
        %v1848 = vld [vmem:[%s7 + $0x54] sm:$0xf]
        %v1849 = vld [vmem:[%s7 + $0x58] sm:$0xf]
        %v1850 = vld [vmem:[%s7 + $0x5c] sm:$0xf]
        %v1851 = vld [vmem:[%s7 + $0x60] sm:$0xf]
        %v1852 = vld [vmem:[%s7 + $0x64] sm:$0xf]
        %v1853 = vld [vmem:[%s7 + $0x68] sm:$0xf]
        %v1854 = vld [vmem:[%s7 + $0x6c] sm:$0xf]
        %v1855 = vld [vmem:[%s7 + $0x70] sm:$0xf]
        %v1856 = vld [vmem:[%s7 + $0x74] sm:$0xf]
        %v1857 = vld [vmem:[%s7 + $0x78] sm:$0xf]
        %v1858 = vld [vmem:[%s7 + $0x7c] sm:$0xf]
        %v1859 = vld [vmem:[%s7 + $0x80] sm:$0xf]
        %v1860 = vld [vmem:[%s7 + $0x84] sm:$0xf]
        %v1861 = vld [vmem:[%s7 + $0x88] sm:$0xf]
        %v1862 = vld [vmem:[%s7 + $0x8c] sm:$0xf]
        %v1863 = vld [vmem:[%s7 + $0x90] sm:$0xf]
        %v1864 = vld [vmem:[%s7 + $0x94] sm:$0xf]
        %v1865 = vld [vmem:[%s7 + $0x98] sm:$0xf]
        %v1866 = vld [vmem:[%s7 + $0x9c] sm:$0xf]
        %v1867 = vld [vmem:[%s7 + $0xa0] sm:$0xf]
        %v1868 = vld [vmem:[%s7 + $0xa4] sm:$0xf]
        %v1869 = vld [vmem:[%s7 + $0xa8] sm:$0xf]
        %v1870 = vld [vmem:[%s7 + $0xac] sm:$0xf]
        %v1871 = vld [vmem:[%s7 + $0xb0] sm:$0xf]
        %v1872 = vld [vmem:[%s7 + $0xb4] sm:$0xf]
        %v1873 = vld [vmem:[%s7 + $0xb8] sm:$0xf]
        %v1874 = vld [vmem:[%s7 + $0xbc] sm:$0xf]
        %v1875 = vld [vmem:[%s7 + $0xc0] sm:$0xf]
        %v1876 = vld [vmem:[%s7 + $0xc4] sm:$0xf]
        %v1877 = vld [vmem:[%s7 + $0xc8] sm:$0xf]
        %v1878 = vld [vmem:[%s7 + $0xcc] sm:$0xf]
        %v1879 = vld [vmem:[%s7 + $0xd0] sm:$0xf]
        %v1880 = vld [vmem:[%s7 + $0xd4] sm:$0xf]
        %v1881 = vld [vmem:[%s7 + $0xd8] sm:$0xf]
        %v1882 = vld [vmem:[%s7 + $0xdc] sm:$0xf]
        %v1883 = vld [vmem:[%s7 + $0xe0] sm:$0xf]
        %v1884 = vld [vmem:[%s7 + $0xe4] sm:$0xf]
        %v1885 = vld [vmem:[%s7 + $0xe8] sm:$0xf]
        %v1886 = vld [vmem:[%s7 + $0xec] sm:$0xf]
        %v1887 = vld [vmem:[%s7 + $0xf0] sm:$0xf]
        %v1888 = vld [vmem:[%s7 + $0xf4] sm:$0xf]
        %v1889 = vld [vmem:[%s7 + $0xf8] sm:$0xf]
        %v1890 = vld [vmem:[%s7 + $0xfc] sm:$0xf]
        %v1891 = vld [vmem:[%s8] sm:$0x1]
        %v1893 = vlaneseq
        %v1894 = vshrl.u32 %v1893, 7
        %v1895 = vsub.s32 0, %v1894
        %v1896 = vrot.slane %v1891, %v1895
        %v1962 = vunpack.c.l.b16 %v1827
        %v1963 = vunpack.c.l.b16 %v1828
        %v1964 = vunpack.c.l.b16 %v1829
        %v1965 = vunpack.c.l.b16 %v1830
        %v1966 = vunpack.c.l.b16 %v1831
        %v1967 = vunpack.c.l.b16 %v1832
        %v1968 = vunpack.c.l.b16 %v1833
        %v1969 = vunpack.c.l.b16 %v1834
        %v1970 = vunpack.c.l.b16 %v1835
        %v1971 = vunpack.c.l.b16 %v1836
        %v1972 = vunpack.c.l.b16 %v1837
        %v1973 = vunpack.c.l.b16 %v1838
        %v1974 = vunpack.c.l.b16 %v1839
        %v1975 = vunpack.c.l.b16 %v1840
        %v1976 = vunpack.c.l.b16 %v1841
        %v1977 = vunpack.c.l.b16 %v1842
        %v1978 = vunpack.c.l.b16 %v1843
        %v1979 = vunpack.c.l.b16 %v1844
        %v1980 = vunpack.c.l.b16 %v1845
        %v1981 = vunpack.c.l.b16 %v1846
        %v1982 = vunpack.c.l.b16 %v1847
        %v1983 = vunpack.c.l.b16 %v1848
        %v1984 = vunpack.c.l.b16 %v1849
        %v1985 = vunpack.c.l.b16 %v1850
        %v1986 = vunpack.c.l.b16 %v1851
        %v1987 = vunpack.c.l.b16 %v1852
        %v1988 = vunpack.c.l.b16 %v1853
        %v1989 = vunpack.c.l.b16 %v1854
        %v1990 = vunpack.c.l.b16 %v1855
        %v1991 = vunpack.c.l.b16 %v1856
        %v1992 = vunpack.c.l.b16 %v1857
        %v1993 = vunpack.c.l.b16 %v1858
        %v1994 = vunpack.c.l.b16 %v1859
        %v1995 = vunpack.c.l.b16 %v1860
        %v1996 = vunpack.c.l.b16 %v1861
        %v1997 = vunpack.c.l.b16 %v1862
        %v1998 = vunpack.c.l.b16 %v1863
        %v1999 = vunpack.c.l.b16 %v1864
        %v2000 = vunpack.c.l.b16 %v1865
        %v2001 = vunpack.c.l.b16 %v1866
        %v2002 = vunpack.c.l.b16 %v1867
        %v2003 = vunpack.c.l.b16 %v1868
        %v2004 = vunpack.c.l.b16 %v1869
        %v2005 = vunpack.c.l.b16 %v1870
        %v2006 = vunpack.c.l.b16 %v1871
        %v2007 = vunpack.c.l.b16 %v1872
        %v2008 = vunpack.c.l.b16 %v1873
        %v2009 = vunpack.c.l.b16 %v1874
        %v2010 = vunpack.c.l.b16 %v1875
        %v2011 = vunpack.c.l.b16 %v1876
        %v2012 = vunpack.c.l.b16 %v1877
        %v2013 = vunpack.c.l.b16 %v1878
        %v2014 = vunpack.c.l.b16 %v1879
        %v2015 = vunpack.c.l.b16 %v1880
        %v2016 = vunpack.c.l.b16 %v1881
        %v2017 = vunpack.c.l.b16 %v1882
        %v2018 = vunpack.c.l.b16 %v1883
        %v2019 = vunpack.c.l.b16 %v1884
        %v2020 = vunpack.c.l.b16 %v1885
        %v2021 = vunpack.c.l.b16 %v1886
        %v2022 = vunpack.c.l.b16 %v1887
        %v2023 = vunpack.c.l.b16 %v1888
        %v2024 = vunpack.c.l.b16 %v1889
        %v2025 = vunpack.c.l.b16 %v1890
        %v2026 = vpack.c.b16 %v1963, %v1962
        %v2027 = vpack.c.b16 %v1965, %v1964
        %v2028 = vpack.c.b16 %v1967, %v1966
        %v2029 = vpack.c.b16 %v1969, %v1968
        %v2030 = vpack.c.b16 %v1971, %v1970
        %v2031 = vpack.c.b16 %v1973, %v1972
        %v2032 = vpack.c.b16 %v1975, %v1974
        %v2033 = vpack.c.b16 %v1977, %v1976
        %v2034 = vpack.c.b16 %v1979, %v1978
        %v2035 = vpack.c.b16 %v1981, %v1980
        %v2036 = vpack.c.b16 %v1983, %v1982
        %v2037 = vpack.c.b16 %v1985, %v1984
        %v2038 = vpack.c.b16 %v1987, %v1986
        %v2039 = vpack.c.b16 %v1989, %v1988
        %v2040 = vpack.c.b16 %v1991, %v1990
        %v2041 = vpack.c.b16 %v1993, %v1992
        %v2042 = vpack.c.b16 %v1995, %v1994
        %v2043 = vpack.c.b16 %v1997, %v1996
        %v2044 = vpack.c.b16 %v1999, %v1998
        %v2045 = vpack.c.b16 %v2001, %v2000
        %v2046 = vpack.c.b16 %v2003, %v2002
        %v2047 = vpack.c.b16 %v2005, %v2004
        %v2048 = vpack.c.b16 %v2007, %v2006
        %v2049 = vpack.c.b16 %v2009, %v2008
        %v2050 = vpack.c.b16 %v2011, %v2010
        %v2051 = vpack.c.b16 %v2013, %v2012
        %v2052 = vpack.c.b16 %v2015, %v2014
        %v2053 = vpack.c.b16 %v2017, %v2016
        %v2054 = vpack.c.b16 %v2019, %v2018
        %v2055 = vpack.c.b16 %v2021, %v2020
        %v2056 = vpack.c.b16 %v2023, %v2022
        %v2057 = vpack.c.b16 %v2025, %v2024
        %2090 = vmatprep.subr.bf16.mxu0 0
        %2091 = vmatpush1.bf16.msra.mxu0 %v2033
        %2092 = vmatprep.subr.bf16.mxu0 0
        %2093 = vmatpush1.bf16.msra.mxu0 %v2032
        %2094 = vmatprep.subr.bf16.mxu0 0
        %2095 = vmatpush1.bf16.msra.mxu0 %v2031
        %2096 = vmatprep.subr.bf16.mxu0 0
        %2097 = vmatpush1.bf16.msra.mxu0 %v2030
        %2098 = vmatprep.subr.bf16.mxu0 0
        %2099 = vmatpush1.bf16.msra.mxu0 %v2029
        %2100 = vmatprep.subr.bf16.mxu0 0
        %2101 = vmatpush1.bf16.msra.mxu0 %v2028
        %2102 = vmatprep.subr.bf16.mxu0 0
        %2103 = vmatpush1.bf16.msra.mxu0 %v2027
        %2104 = vmatprep.subr.bf16.mxu0 0
        %2105 = vmatpush1.bf16.msra.mxu0 %v2026
        %2106 = vmatprep.subr.bf16.mxu0 0
        %2107 = vmatpush2.bf16.msra.mxu0 %v2041
        %2108 = vmatprep.subr.bf16.mxu0 0
        %2109 = vmatpush2.bf16.msra.mxu0 %v2040
        %2110 = vmatprep.subr.bf16.mxu0 0
        %2111 = vmatpush2.bf16.msra.mxu0 %v2039
        %2112 = vmatprep.subr.bf16.mxu0 0
        %2113 = vmatpush2.bf16.msra.mxu0 %v2038
        %2114 = vmatprep.subr.bf16.mxu0 0
        %2115 = vmatpush2.bf16.msra.mxu0 %v2037
        %2116 = vmatprep.subr.bf16.mxu0 0
        %2117 = vmatpush2.bf16.msra.mxu0 %v2036
        %2118 = vmatprep.subr.bf16.mxu0 0
        %2119 = vmatpush2.bf16.msra.mxu0 %v2035
        %2120 = vmatprep.subr.bf16.mxu0 0
        %2121 = vmatpush2.bf16.msra.mxu0 %v2034
        %2122 = vmatprep.mubr.bf16.mxu0 %v1796
        %2123 = vmatmul.mubr.bf16.gmra.mxu0 %v1795
        %v2124 = vpop.f32.mrf.mxu0
        %v2125 = vadd.f32 %v1896, %v2124
        %v2126 = vpop.f32.mrf.mxu0
        %v2127 = vpop.f32.mrf.mxu0
        %v2128 = vadd.f32 %v1896, %v2127
        %v2129 = vpop.f32.mrf.mxu0
        %2130 = vmatprep.mubr.bf16.mxu0 %v1800
        %2131 = vmatmul.mubr.bf16.gmra.mxu0 %v1799
        %v2132 = vpop.f32.mrf.mxu0
        %v2133 = vadd.f32 %v1896, %v2132
        %v2134 = vpop.f32.mrf.mxu0
        %v2135 = vpop.f32.mrf.mxu0
        %v2136 = vadd.f32 %v1896, %v2135
        %v2137 = vpop.f32.mrf.mxu0
        %2138 = vmatprep.mubr.bf16.mxu0 %v1804
        %2139 = vmatmul.mubr.bf16.gmra.mxu0 %v1803
        %v2140 = vpop.f32.mrf.mxu0
        %v2141 = vadd.f32 %v1896, %v2140
        %v2142 = vpop.f32.mrf.mxu0
        %v2143 = vpop.f32.mrf.mxu0
        %v2144 = vadd.f32 %v1896, %v2143
        %v2145 = vpop.f32.mrf.mxu0
        %2146 = vmatprep.mubr.bf16.mxu0 %v1808
        %2147 = vmatmul.mubr.bf16.gmra.mxu0 %v1807
        %v2148 = vpop.f32.mrf.mxu0
        %v2149 = vadd.f32 %v1896, %v2148
        %v2150 = vpop.f32.mrf.mxu0
        %v2151 = vpop.f32.mrf.mxu0
        %v2152 = vadd.f32 %v1896, %v2151
        %v2153 = vpop.f32.mrf.mxu0
        %2154 = vmatprep.mubr.bf16.mxu0 %v1812
        %2155 = vmatmul.mubr.bf16.gmra.mxu0 %v1811
        %v2156 = vpop.f32.mrf.mxu0
        %v2157 = vadd.f32 %v1896, %v2156
        %v2158 = vpop.f32.mrf.mxu0
        %v2159 = vpop.f32.mrf.mxu0
        %v2160 = vadd.f32 %v1896, %v2159
        %v2161 = vpop.f32.mrf.mxu0
        %2162 = vmatprep.mubr.bf16.mxu0 %v1816
        %2163 = vmatmul.mubr.bf16.gmra.mxu0 %v1815
        %v2164 = vpop.f32.mrf.mxu0
        %v2165 = vadd.f32 %v1896, %v2164
        %v2166 = vpop.f32.mrf.mxu0
        %v2167 = vpop.f32.mrf.mxu0
        %v2168 = vadd.f32 %v1896, %v2167
        %v2169 = vpop.f32.mrf.mxu0
        %2170 = vmatprep.mubr.bf16.mxu0 %v1820
        %2171 = vmatmul.mubr.bf16.gmra.mxu0 %v1819
        %v2172 = vpop.f32.mrf.mxu0
        %v2173 = vadd.f32 %v1896, %v2172
        %v2174 = vpop.f32.mrf.mxu0
        %v2175 = vpop.f32.mrf.mxu0
        %v2176 = vadd.f32 %v1896, %v2175
        %v2177 = vpop.f32.mrf.mxu0
        %2178 = vmatprep.mubr.bf16.mxu0 %v1824
        %2179 = vmatmul.mubr.bf16.gmra.mxu0 %v1823
        %v2180 = vpop.f32.mrf.mxu0
        %v2181 = vadd.f32 %v1896, %v2180
        %v2182 = vpop.f32.mrf.mxu0
        %v2183 = vpop.f32.mrf.mxu0
        %v2184 = vadd.f32 %v1896, %v2183
        %v2185 = vpop.f32.mrf.mxu0
        %2186 = vdwg.mxu0
        %2187 = vmatprep.subr.bf16.mxu0 0
        %2188 = vmatpush1.bf16.msra.mxu0 %v2049
        %2189 = vmatprep.subr.bf16.mxu0 0
        %2190 = vmatpush1.bf16.msra.mxu0 %v2048
        %2191 = vmatprep.subr.bf16.mxu0 0
        %2192 = vmatpush1.bf16.msra.mxu0 %v2047
        %2193 = vmatprep.subr.bf16.mxu0 0
        %2194 = vmatpush1.bf16.msra.mxu0 %v2046
        %2195 = vmatprep.subr.bf16.mxu0 0
        %2196 = vmatpush1.bf16.msra.mxu0 %v2045
        %2197 = vmatprep.subr.bf16.mxu0 0
        %2198 = vmatpush1.bf16.msra.mxu0 %v2044
        %2199 = vmatprep.subr.bf16.mxu0 0
        %2200 = vmatpush1.bf16.msra.mxu0 %v2043
        %2201 = vmatprep.subr.bf16.mxu0 0
        %2202 = vmatpush1.bf16.msra.mxu0 %v2042
        %2203 = vmatprep.subr.bf16.mxu0 0
        %2204 = vmatpush2.bf16.msra.mxu0 %v2057
        %2205 = vmatprep.subr.bf16.mxu0 0
        %2206 = vmatpush2.bf16.msra.mxu0 %v2056
        %2207 = vmatprep.subr.bf16.mxu0 0
        %2208 = vmatpush2.bf16.msra.mxu0 %v2055
        %2209 = vmatprep.subr.bf16.mxu0 0
        %2210 = vmatpush2.bf16.msra.mxu0 %v2054
        %2211 = vmatprep.subr.bf16.mxu0 0
        %2212 = vmatpush2.bf16.msra.mxu0 %v2053
        %2213 = vmatprep.subr.bf16.mxu0 0
        %2214 = vmatpush2.bf16.msra.mxu0 %v2052
        %2215 = vmatprep.subr.bf16.mxu0 0
        %2216 = vmatpush2.bf16.msra.mxu0 %v2051
        %2217 = vmatprep.subr.bf16.mxu0 0
        %2218 = vmatpush2.bf16.msra.mxu0 %v2050
        %2219 = vmatprep.mubr.bf16.mxu0 %v1798
        %2220 = vmatmul.mubr.bf16.gmra.mxu0 %v1797
        %v2221 = vpop.f32.mrf.mxu0
        %v2222 = vadd.f32 %v2125, %v2221
        %v2223 = vpop.f32.mrf.mxu0
        %v2224 = vpop.f32.mrf.mxu0
        %v2225 = vadd.f32 %v2128, %v2224
        %v2226 = vpop.f32.mrf.mxu0
        %2227 = vmatprep.mubr.bf16.mxu0 %v1802
        %2228 = vmatmul.mubr.bf16.gmra.mxu0 %v1801
        %v2229 = vpop.f32.mrf.mxu0
        %v2230 = vadd.f32 %v2133, %v2229
        %v2231 = vpop.f32.mrf.mxu0
        %v2232 = vpop.f32.mrf.mxu0
        %v2233 = vadd.f32 %v2136, %v2232
        %v2234 = vpop.f32.mrf.mxu0
        %2235 = vmatprep.mubr.bf16.mxu0 %v1806
        %2236 = vmatmul.mubr.bf16.gmra.mxu0 %v1805
        %v2237 = vpop.f32.mrf.mxu0
        %v2238 = vadd.f32 %v2141, %v2237
        %v2239 = vpop.f32.mrf.mxu0
        %v2240 = vpop.f32.mrf.mxu0
        %v2241 = vadd.f32 %v2144, %v2240
        %v2242 = vpop.f32.mrf.mxu0
        %2243 = vmatprep.mubr.bf16.mxu0 %v1810
        %2244 = vmatmul.mubr.bf16.gmra.mxu0 %v1809
        %v2245 = vpop.f32.mrf.mxu0
        %v2246 = vadd.f32 %v2149, %v2245
        %v2247 = vpop.f32.mrf.mxu0
        %v2248 = vpop.f32.mrf.mxu0
        %v2249 = vadd.f32 %v2152, %v2248
        %v2250 = vpop.f32.mrf.mxu0
        %2251 = vmatprep.mubr.bf16.mxu0 %v1814
        %2252 = vmatmul.mubr.bf16.gmra.mxu0 %v1813
        %v2253 = vpop.f32.mrf.mxu0
        %v2254 = vadd.f32 %v2157, %v2253
        %v2255 = vpop.f32.mrf.mxu0
        %v2256 = vpop.f32.mrf.mxu0
        %v2257 = vadd.f32 %v2160, %v2256
        %v2258 = vpop.f32.mrf.mxu0
        %2259 = vmatprep.mubr.bf16.mxu0 %v1818
        %2260 = vmatmul.mubr.bf16.gmra.mxu0 %v1817
        %v2261 = vpop.f32.mrf.mxu0
        %v2262 = vadd.f32 %v2165, %v2261
        %v2263 = vpop.f32.mrf.mxu0
        %v2264 = vpop.f32.mrf.mxu0
        %v2265 = vadd.f32 %v2168, %v2264
        %v2266 = vpop.f32.mrf.mxu0
        %2267 = vmatprep.mubr.bf16.mxu0 %v1822
        %2268 = vmatmul.mubr.bf16.gmra.mxu0 %v1821
        %v2269 = vpop.f32.mrf.mxu0
        %v2270 = vadd.f32 %v2173, %v2269
        %v2271 = vpop.f32.mrf.mxu0
        %v2272 = vpop.f32.mrf.mxu0
        %v2273 = vadd.f32 %v2176, %v2272
        %v2274 = vpop.f32.mrf.mxu0
        %2275 = vmatprep.mubr.bf16.mxu0 %v1826
        %2276 = vmatmul.mubr.bf16.gmra.mxu0 %v1825
        %v2277 = vpop.f32.mrf.mxu0
        %v2278 = vadd.f32 %v2181, %v2277
        %v2279 = vpop.f32.mrf.mxu0
        %v2280 = vpop.f32.mrf.mxu0
        %v2281 = vadd.f32 %v2184, %v2280
        %v2282 = vpop.f32.mrf.mxu0
        %2283 = vdwg.mxu0
        %2284 = vmax.xlane.f32.xlu0 %v2222
        %v2285 = vpop.xlane.xlu0 %2284
        %2286 = vmax.xlane.f32.xlu0 %v2225
        %v2287 = vpop.xlane.xlu0 %2286
        %2288 = vmax.xlane.f32.xlu0 %v2230
        %v2289 = vpop.xlane.xlu0 %2288
        %2290 = vmax.xlane.f32.xlu0 %v2233
        %v2291 = vpop.xlane.xlu0 %2290
        %2292 = vmax.xlane.f32.xlu0 %v2238
        %v2293 = vpop.xlane.xlu0 %2292
        %2294 = vmax.xlane.f32.xlu0 %v2241
        %v2295 = vpop.xlane.xlu0 %2294
        %2296 = vmax.xlane.f32.xlu0 %v2246
        %v2297 = vpop.xlane.xlu0 %2296
        %2298 = vmax.xlane.f32.xlu0 %v2249
        %v2299 = vpop.xlane.xlu0 %2298
        %2300 = vmax.xlane.f32.xlu0 %v2254
        %v2301 = vpop.xlane.xlu0 %2300
        %2302 = vmax.xlane.f32.xlu0 %v2257
        %v2303 = vpop.xlane.xlu0 %2302
        %2304 = vmax.xlane.f32.xlu0 %v2262
        %v2305 = vpop.xlane.xlu0 %2304
        %2306 = vmax.xlane.f32.xlu0 %v2265
        %v2307 = vpop.xlane.xlu0 %2306
        %2308 = vmax.xlane.f32.xlu0 %v2270
        %v2309 = vpop.xlane.xlu0 %2308
        %2310 = vmax.xlane.f32.xlu0 %v2273
        %v2311 = vpop.xlane.xlu0 %2310
        %2312 = vmax.xlane.f32.xlu0 %v2278
        %v2313 = vpop.xlane.xlu0 %2312
        %2314 = vmax.xlane.f32.xlu0 %v2281
        %v2315 = vpop.xlane.xlu0 %2314
        %v2316 = vsub.f32 %v2222, %v2285
        %v2317 = vsub.f32 %v2225, %v2287
        %v2318 = vsub.f32 %v2230, %v2289
        %v2319 = vsub.f32 %v2233, %v2291
        %v2320 = vsub.f32 %v2238, %v2293
        %v2321 = vsub.f32 %v2241, %v2295
        %v2322 = vsub.f32 %v2246, %v2297
        %v2323 = vsub.f32 %v2249, %v2299
        %v2324 = vsub.f32 %v2254, %v2301
        %v2325 = vsub.f32 %v2257, %v2303
        %v2326 = vsub.f32 %v2262, %v2305
        %v2327 = vsub.f32 %v2265, %v2307
        %v2328 = vsub.f32 %v2270, %v2309
        %v2329 = vsub.f32 %v2273, %v2311
        %v2330 = vsub.f32 %v2278, %v2313
        %v2331 = vsub.f32 %v2281, %v2315
        %v2332 = vmul.f32 %v2316, 1.442695
        %v2333 = vpow.pop %v2332
        %v2334 = vmul.f32 %v2317, 1.442695
        %v2335 = vpow.pop %v2334
        %v2336 = vmul.f32 %v2318, 1.442695
        %v2337 = vpow.pop %v2336
        %v2338 = vmul.f32 %v2319, 1.442695
        %v2339 = vpow.pop %v2338
        %v2340 = vmul.f32 %v2320, 1.442695
        %v2341 = vpow.pop %v2340
        %v2342 = vmul.f32 %v2321, 1.442695
        %v2343 = vpow.pop %v2342
        %v2344 = vmul.f32 %v2322, 1.442695
        %v2345 = vpow.pop %v2344
        %v2346 = vmul.f32 %v2323, 1.442695
        %v2347 = vpow.pop %v2346
        %v2348 = vmul.f32 %v2324, 1.442695
        %v2349 = vpow.pop %v2348
        %v2350 = vmul.f32 %v2325, 1.442695
        %v2351 = vpow.pop %v2350
        %v2352 = vmul.f32 %v2326, 1.442695
        %v2353 = vpow.pop %v2352
        %v2354 = vmul.f32 %v2327, 1.442695
        %v2355 = vpow.pop %v2354
        %v2356 = vmul.f32 %v2328, 1.442695
        %v2357 = vpow.pop %v2356
        %v2358 = vmul.f32 %v2329, 1.442695
        %v2359 = vpow.pop %v2358
        %v2360 = vmul.f32 %v2330, 1.442695
        %v2361 = vpow.pop %v2360
        %v2362 = vmul.f32 %v2331, 1.442695
        %v2363 = vpow.pop %v2362
        %2364 = vadd.xlane.f32.xlu0 %v2333
        %v2365 = vpop.xlane.xlu0 %2364
        %2366 = vadd.xlane.f32.xlu0 %v2335
        %v2367 = vpop.xlane.xlu0 %2366
        %2368 = vadd.xlane.f32.xlu0 %v2337
        %v2369 = vpop.xlane.xlu0 %2368
        %2370 = vadd.xlane.f32.xlu0 %v2339
        %v2371 = vpop.xlane.xlu0 %2370
        %2372 = vadd.xlane.f32.xlu0 %v2341
        %v2373 = vpop.xlane.xlu0 %2372
        %2374 = vadd.xlane.f32.xlu0 %v2343
        %v2375 = vpop.xlane.xlu0 %2374
        %2376 = vadd.xlane.f32.xlu0 %v2345
        %v2377 = vpop.xlane.xlu0 %2376
        %2378 = vadd.xlane.f32.xlu0 %v2347
        %v2379 = vpop.xlane.xlu0 %2378
        %2380 = vadd.xlane.f32.xlu0 %v2349
        %v2381 = vpop.xlane.xlu0 %2380
        %2382 = vadd.xlane.f32.xlu0 %v2351
        %v2383 = vpop.xlane.xlu0 %2382
        %2384 = vadd.xlane.f32.xlu0 %v2353
        %v2385 = vpop.xlane.xlu0 %2384
        %2386 = vadd.xlane.f32.xlu0 %v2355
        %v2387 = vpop.xlane.xlu0 %2386
        %2388 = vadd.xlane.f32.xlu0 %v2357
        %v2389 = vpop.xlane.xlu0 %2388
        %2390 = vadd.xlane.f32.xlu0 %v2359
        %v2391 = vpop.xlane.xlu0 %2390
        %2392 = vadd.xlane.f32.xlu0 %v2361
        %v2393 = vpop.xlane.xlu0 %2392
        %2394 = vadd.xlane.f32.xlu0 %v2363
        %v2395 = vpop.xlane.xlu0 %2394
        %v2396 = vlog2.pop %v2365
        %v2397 = vmul.f32 %v2396, 0.6931472
        %v2398 = vlog2.pop %v2367
        %v2399 = vmul.f32 %v2398, 0.6931472
        %v2400 = vlog2.pop %v2369
        %v2401 = vmul.f32 %v2400, 0.6931472
        %v2402 = vlog2.pop %v2371
        %v2403 = vmul.f32 %v2402, 0.6931472
        %v2404 = vlog2.pop %v2373
        %v2405 = vmul.f32 %v2404, 0.6931472
        %v2406 = vlog2.pop %v2375
        %v2407 = vmul.f32 %v2406, 0.6931472
        %v2408 = vlog2.pop %v2377
        %v2409 = vmul.f32 %v2408, 0.6931472
        %v2410 = vlog2.pop %v2379
        %v2411 = vmul.f32 %v2410, 0.6931472
        %v2412 = vlog2.pop %v2381
        %v2413 = vmul.f32 %v2412, 0.6931472
        %v2414 = vlog2.pop %v2383
        %v2415 = vmul.f32 %v2414, 0.6931472
        %v2416 = vlog2.pop %v2385
        %v2417 = vmul.f32 %v2416, 0.6931472
        %v2418 = vlog2.pop %v2387
        %v2419 = vmul.f32 %v2418, 0.6931472
        %v2420 = vlog2.pop %v2389
        %v2421 = vmul.f32 %v2420, 0.6931472
        %v2422 = vlog2.pop %v2391
        %v2423 = vmul.f32 %v2422, 0.6931472
        %v2424 = vlog2.pop %v2393
        %v2425 = vmul.f32 %v2424, 0.6931472
        %v2426 = vlog2.pop %v2395
        %v2427 = vmul.f32 %v2426, 0.6931472
        %v2428 = vsub.f32 %v2316, %v2397
        %v2429 = vsub.f32 %v2317, %v2399
        %v2430 = vsub.f32 %v2318, %v2401
        %v2431 = vsub.f32 %v2319, %v2403
        %v2432 = vsub.f32 %v2320, %v2405
        %v2433 = vsub.f32 %v2321, %v2407
        %v2434 = vsub.f32 %v2322, %v2409
        %v2435 = vsub.f32 %v2323, %v2411
        %v2436 = vsub.f32 %v2324, %v2413
        %v2437 = vsub.f32 %v2325, %v2415
        %v2438 = vsub.f32 %v2326, %v2417
        %v2439 = vsub.f32 %v2327, %v2419
        %v2440 = vsub.f32 %v2328, %v2421
        %v2441 = vsub.f32 %v2329, %v2423
        %v2442 = vsub.f32 %v2330, %v2425
        %v2443 = vsub.f32 %v2331, %v2427
        %2444 = vst [vmem:[%s378] sm:$0xff] %v2428
        %2445 = vst [vmem:[%s378 + $0x8] sm:$0xff] %v2429
        %2446 = vst [vmem:[%s378 + $0x10] sm:$0xff] %v2430
        %2447 = vst [vmem:[%s378 + $0x18] sm:$0xff] %v2431
        %2448 = vst [vmem:[%s378 + $0x20] sm:$0xff] %v2432
        %2449 = vst [vmem:[%s378 + $0x28] sm:$0xff] %v2433
        %2450 = vst [vmem:[%s378 + $0x30] sm:$0xff] %v2434
        %2451 = vst [vmem:[%s378 + $0x38] sm:$0xff] %v2435
        %2452 = vst [vmem:[%s378 + $0x40] sm:$0xff] %v2436
        %2453 = vst [vmem:[%s378 + $0x48] sm:$0xff] %v2437
        %2454 = vst [vmem:[%s378 + $0x50] sm:$0xff] %v2438
        %2455 = vst [vmem:[%s378 + $0x58] sm:$0xff] %v2439
        %2456 = vst [vmem:[%s378 + $0x60] sm:$0xff] %v2440
        %2457 = vst [vmem:[%s378 + $0x68] sm:$0xff] %v2441
        %2458 = vst [vmem:[%s378 + $0x70] sm:$0xff] %v2442
        %2459 = vst [vmem:[%s378 + $0x78] sm:$0xff] %v2443
        %s2460 = smul.u32 16, %s22
        %p2461 = scmp.lt.s32.totalorder %s2460, 31
        %s2462 = scalar_select %p2461, %s2460, 31
        %s2463 = smul.addr %s2462, 8
        %s2464 = scalar_lea.vmem %s9, %s2463
        // Predicated region
        $region69: #{_mlp_forward_jit.1} parent=55 // pred_check
          %p2465 = pneg %p234
        $region70: #{_mlp_forward_jit.1} parent=55 // pred_check_branch
          %2467 = sbr.rel (%p2465) target = $region72
        $region71: #{_mlp_forward_jit.1} parent=55 // pred_region
          %s2468 = smul.u32 16, %s22
        $region72: #{_mlp_forward_jit.1} parent=55 // pred_fallthru
          _
      $region56: #{_mlp_forward_jit.1} parent=5 // pred_fallthru
        _
      %p2469 = scmp.le.s32.totalorder 2, %s17
      // Predicated region
      $region73: #{_mlp_forward_jit.1} parent=5 // pred_check
        %p2470 = pneg %p2469
      $region74: #{_mlp_forward_jit.1} parent=5 // pred_check_branch
        %2472 = sbr.rel (%p2470) target = $region76
      $region75: #{_mlp_forward_jit.1} parent=5 // pred_region
        %s2473 = ssub.s32 %s17, 2
        // Predicated region
        $region77: #{_mlp_forward_jit.1} parent=75 // pred_check
          %p2474 = pneg %p240
        $region78: #{_mlp_forward_jit.1} parent=75 // pred_check_branch
          %2476 = sbr.rel (%p2474) target = $region80
        $region79: #{_mlp_forward_jit.1} parent=75 // pred_region
          %s2477 = smul.u32 16, %s23
          %p2478 = scmp.lt.s32.totalorder %s2477, 31
          %s2479 = scalar_select %p2478, %s2477, 31
          %s2480 = smul.addr %s2479, 8
          %s2481 = scalar_lea.vmem %s9, %s2480
        $region80: #{_mlp_forward_jit.1} parent=75 // pred_fallthru
          _
      $region76: #{_mlp_forward_jit.1} parent=5 // pred_fallthru
        _
    $region6: #{_mlp_forward_jit.1} parent=1 // loop_footer
      %s21 = sadd.s32 1, %s17
    $region7: #{_mlp_forward_jit.1} parent=1 // loop_footer_branch
      %16 = sbr.rel target = $region3
    $region8: #{_mlp_forward_jit.1} parent=1 // loop_exit
      _
    %2482 = vsyncpa [#allocation3], 1
    %s2483 = scalar_lea.sflag [#allocation3], 1
    %2484 = vsyncpa %s2483, 1
    %2485 = vsyncpa [#allocation5], 1

// kernel: _mlp_forward_jit.1
$region0: #{_mlp_forward_jit.1}
  #allocation0 [shape = 'u32[]', space=smem, size = 0x4, offset = 0x4, fixed_abs, tag = 'smem constant byte address 0x4 - core index']
  #allocation1 [shape = 'u32[144,128]{1,0:T(1,128)}', space=vmem, size = 0x12000, scoped, tag = 'internal scratch']
  %s0 = inlined_call_operand.vmem [shape: bf16[256,32], index: 0, kind: input, shape index: {}]
  %s1 = inlined_call_operand.hbm [shape: bf16[32,128], index: 1, kind: input, shape index: {}]
  %s2 = inlined_call_operand.vmem [shape: f32[1,128], index: 2, kind: input, shape index: {}]
  %s3 = inlined_call_operand.hbm [shape: bf16[128,256], index: 3, kind: input, shape index: {}]
  %s4 = inlined_call_operand.vmem [shape: f32[1,256], index: 4, kind: input, shape index: {}]
  %s5 = inlined_call_operand.hbm [shape: bf16[256,512], index: 5, kind: input, shape index: {}]
  %s6 = inlined_call_operand.vmem [shape: f32[1,512], index: 6, kind: input, shape index: {}]
  %s7 = inlined_call_operand.vmem [shape: bf16[512,128], index: 7, kind: input, shape index: {}]
  %s8 = inlined_call_operand.vmem [shape: f32[1,128], index: 8, kind: input, shape index: {}]
  %s9 = inlined_call_operand.vmem [shape: f32[256,128], index: 9, kind: output, shape index: {}]
  %s10 = sld [smem:[#allocation0]]
  $region81: #{_mlp_forward_jit.1} parent=0
    _
  %s12 = ssub.s32 1, %s10
  %s13 = scalar_select 0, %s12, %s10
  $region1: #{_mlp_forward_jit.1} parent=0
    #allocation2 [shape = 'u8[8192]{0}', space=vmem, size = 0x2000, scoped, tag = 'input window, operand 1, single buffered']
    #allocation3 [shape = 's32[2]{0}', space=sflag, size = 0x8, scoped, tag = 'scoped memory for _mlp_forward_jit.1']
    #allocation4 [shape = 'u8[65536]{0}', space=vmem, size = 0x10000, scoped, tag = 'input window, operand 3, single buffered']
    #allocation5 [shape = 's32[1]{0}', space=sflag, size = 0x4, scoped, tag = 'scoped memory for _mlp_forward_jit.1']
    #allocation6 [shape = 'u8[262144]{0}', space=vmem, size = 0x40000, scoped, tag = 'input window, operand 5, single buffered']
    %14 = vsyncpa [#allocation3], 0
    %15 = vsyncpa [#allocation5], 0
    loop: start=0, step=1, limit=4
    $region2: #{_mlp_forward_jit.1} parent=1 // loop_pre_header
      _
    $region3: #{_mlp_forward_jit.1} parent=1 // loop_header
      %s17 = sphi 0, %s21
      %p18 = scmp.ge.s32.totalorder %s17, 4
      %s27 = sphi 0, %s29
      %s30 = sphi 0, %s27
      %s31 = sphi 0, %s30
      %s47 = sphi 0, %s31
      %s51 = sphi 0, %s51
      %s53 = sphi 0, %s51
      %s54 = sphi 0, %s53
      %s68 = sphi 0, %s54
      %s72 = sphi 0, %s72
      %s74 = sphi 0, %s72
      %s75 = sphi 0, %s74
      %s89 = sphi 0, %s75
      %s93 = sphi 0, %s93
      %s95 = sphi 0, %s93
      %s96 = sphi 0, %s95
      %s110 = sphi 0, %s96
      %s114 = sphi 0, %s114
      %s116 = sphi 0, %s114
      %s117 = sphi 0, %s116
      %s131 = sphi 0, %s117
      %s135 = sphi 0, %s135
      %s137 = sphi 0, %s135
      %s138 = sphi 0, %s137
      %s152 = sphi 0, %s138
      %s156 = sphi 0, %s156
      %s158 = sphi 0, %s156
      %s159 = sphi 0, %s158
      %s173 = sphi 0, %s159
      %s177 = sphi 0, %s177
      %s179 = sphi 0, %s177
      %s180 = sphi 0, %s179
      %s194 = sphi 0, %s180
      %s198 = sphi 0, %s198
      %s200 = sphi 0, %s198
      %s201 = sphi 0, %s200
      %s215 = sphi 0, %s201
      %s221 = sphi 0, %s223
      %s224 = sphi 0, %s221
      %s225 = sphi 0, %s224
      %s241 = sphi 0, %s225
    $region4: #{_mlp_forward_jit.1} parent=1 // loop_header_branch
      %20 = sbr.rel (%p18) target = $region8
    $region5: #{_mlp_forward_jit.1} parent=1 // loop_body
      %s22 = ssub.s32 %s17, 1
      %s23 = ssub.s32 %s17, 2
      %s24 = sadd.s32 %s17, 1
      %s25 = ssub.s32 %s17, %s24
      %p26 = scmp.eq.s32.totalorder %s25, 0
      %s28 = sadd.s32 %s27, 1
      %s29 = scalar_select %p26, %s27, %s28
      %p32 = pneg %p26
      %p33 = scmp.eq.s32.totalorder %s17, 1
      %p34 = por %p32, %p33
      %p35 = scmp.ne.s32.totalorder %s27, %s30
      %p36 = scmp.eq.s32.totalorder %s17, 0
      %p37 = por %p35, %p36
      %p38 = scmp.ne.s32.totalorder %s27, %s30
      %p39 = scmp.eq.s32.totalorder %s22, 1
      %p40 = por %p38, %p39
      %p41 = scmp.ne.s32.totalorder %s30, %s31
      %p42 = scmp.eq.s32.totalorder %s22, 0
      %p43 = por %p41, %p42
      %p44 = scmp.ne.s32.totalorder %s30, %s31
      %p45 = scmp.eq.s32.totalorder %s23, 1
      %p46 = por %p44, %p45
      %p48 = scmp.ne.s32.totalorder %s31, %s47
      %p49 = scmp.eq.s32.totalorder %s23, 0
      %p50 = por %p48, %p49
      %s52 = sadd.s32 %s51, 1
      %p55 = scmp.eq.s32.totalorder %s17, 1
      %p56 = scmp.ne.s32.totalorder %s51, %s53
      %p57 = scmp.eq.s32.totalorder %s17, 0
      %p58 = por %p56, %p57
      %p59 = scmp.ne.s32.totalorder %s51, %s53
      %p60 = scmp.eq.s32.totalorder %s22, 1
      %p61 = por %p59, %p60
      %p62 = scmp.ne.s32.totalorder %s53, %s54
      %p63 = scmp.eq.s32.totalorder %s22, 0
      %p64 = por %p62, %p63
      %p65 = scmp.ne.s32.totalorder %s53, %s54
      %p66 = scmp.eq.s32.totalorder %s23, 1
      %p67 = por %p65, %p66
      %p69 = scmp.ne.s32.totalorder %s54, %s68
      %p70 = scmp.eq.s32.totalorder %s23, 0
      %p71 = por %p69, %p70
      %s73 = sadd.s32 %s72, 1
      %p76 = scmp.eq.s32.totalorder %s17, 1
      %p77 = scmp.ne.s32.totalorder %s72, %s74
      %p78 = scmp.eq.s32.totalorder %s17, 0
      %p79 = por %p77, %p78
      %p80 = scmp.ne.s32.totalorder %s72, %s74
      %p81 = scmp.eq.s32.totalorder %s22, 1
      %p82 = por %p80, %p81
      %p83 = scmp.ne.s32.totalorder %s74, %s75
      %p84 = scmp.eq.s32.totalorder %s22, 0
      %p85 = por %p83, %p84
      %p86 = scmp.ne.s32.totalorder %s74, %s75
      %p87 = scmp.eq.s32.totalorder %s23, 1
      %p88 = por %p86, %p87
      %p90 = scmp.ne.s32.totalorder %s75, %s89
      %p91 = scmp.eq.s32.totalorder %s23, 0
      %p92 = por %p90, %p91
      %s94 = sadd.s32 %s93, 1
      %p97 = scmp.eq.s32.totalorder %s17, 1
      %p98 = scmp.ne.s32.totalorder %s93, %s95
      %p99 = scmp.eq.s32.totalorder %s17, 0
      %p100 = por %p98, %p99
      %p101 = scmp.ne.s32.totalorder %s93, %s95
      %p102 = scmp.eq.s32.totalorder %s22, 1
      %p103 = por %p101, %p102
      %p104 = scmp.ne.s32.totalorder %s95, %s96
      %p105 = scmp.eq.s32.totalorder %s22, 0
      %p106 = por %p104, %p105
      %p107 = scmp.ne.s32.totalorder %s95, %s96
      %p108 = scmp.eq.s32.totalorder %s23, 1
      %p109 = por %p107, %p108
      %p111 = scmp.ne.s32.totalorder %s96, %s110
      %p112 = scmp.eq.s32.totalorder %s23, 0
      %p113 = por %p111, %p112
      %s115 = sadd.s32 %s114, 1
      %p118 = scmp.eq.s32.totalorder %s17, 1
      %p119 = scmp.ne.s32.totalorder %s114, %s116
      %p120 = scmp.eq.s32.totalorder %s17, 0
      %p121 = por %p119, %p120
      %p122 = scmp.ne.s32.totalorder %s114, %s116
      %p123 = scmp.eq.s32.totalorder %s22, 1
      %p124 = por %p122, %p123
      %p125 = scmp.ne.s32.totalorder %s116, %s117
      %p126 = scmp.eq.s32.totalorder %s22, 0
      %p127 = por %p125, %p126
      %p128 = scmp.ne.s32.totalorder %s116, %s117
      %p129 = scmp.eq.s32.totalorder %s23, 1
      %p130 = por %p128, %p129
      %p132 = scmp.ne.s32.totalorder %s117, %s131
      %p133 = scmp.eq.s32.totalorder %s23, 0
      %p134 = por %p132, %p133
      %s136 = sadd.s32 %s135, 1
      %p139 = scmp.eq.s32.totalorder %s17, 1
      %p140 = scmp.ne.s32.totalorder %s135, %s137
      %p141 = scmp.eq.s32.totalorder %s17, 0
      %p142 = por %p140, %p141
      %p143 = scmp.ne.s32.totalorder %s135, %s137
      %p144 = scmp.eq.s32.totalorder %s22, 1
      %p145 = por %p143, %p144
      %p146 = scmp.ne.s32.totalorder %s137, %s138
      %p147 = scmp.eq.s32.totalorder %s22, 0
      %p148 = por %p146, %p147
      %p149 = scmp.ne.s32.totalorder %s137, %s138
      %p150 = scmp.eq.s32.totalorder %s23, 1
      %p151 = por %p149, %p150
      %p153 = scmp.ne.s32.totalorder %s138, %s152
      %p154 = scmp.eq.s32.totalorder %s23, 0
      %p155 = por %p153, %p154
      %s157 = sadd.s32 %s156, 1
      %p160 = scmp.eq.s32.totalorder %s17, 1
      %p161 = scmp.ne.s32.totalorder %s156, %s158
      %p162 = scmp.eq.s32.totalorder %s17, 0
      %p163 = por %p161, %p162
      %p164 = scmp.ne.s32.totalorder %s156, %s158
      %p165 = scmp.eq.s32.totalorder %s22, 1
      %p166 = por %p164, %p165
      %p167 = scmp.ne.s32.totalorder %s158, %s159
      %p168 = scmp.eq.s32.totalorder %s22, 0
      %p169 = por %p167, %p168
      %p170 = scmp.ne.s32.totalorder %s158, %s159
      %p171 = scmp.eq.s32.totalorder %s23, 1
      %p172 = por %p170, %p171
      %p174 = scmp.ne.s32.totalorder %s159, %s173
      %p175 = scmp.eq.s32.totalorder %s23, 0
      %p176 = por %p174, %p175
      %s178 = sadd.s32 %s177, 1
      %p181 = scmp.eq.s32.totalorder %s17, 1
      %p182 = scmp.ne.s32.totalorder %s177, %s179
      %p183 = scmp.eq.s32.totalorder %s17, 0
      %p184 = por %p182, %p183
      %p185 = scmp.ne.s32.totalorder %s177, %s179
      %p186 = scmp.eq.s32.totalorder %s22, 1
      %p187 = por %p185, %p186
      %p188 = scmp.ne.s32.totalorder %s179, %s180
      %p189 = scmp.eq.s32.totalorder %s22, 0
      %p190 = por %p188, %p189
      %p191 = scmp.ne.s32.totalorder %s179, %s180
      %p192 = scmp.eq.s32.totalorder %s23, 1
      %p193 = por %p191, %p192
      %p195 = scmp.ne.s32.totalorder %s180, %s194
      %p196 = scmp.eq.s32.totalorder %s23, 0
      %p197 = por %p195, %p196
      %s199 = sadd.s32 %s198, 1
      %p202 = scmp.eq.s32.totalorder %s17, 1
      %p203 = scmp.ne.s32.totalorder %s198, %s200
      %p204 = scmp.eq.s32.totalorder %s17, 0
      %p205 = por %p203, %p204
      %p206 = scmp.ne.s32.totalorder %s198, %s200
      %p207 = scmp.eq.s32.totalorder %s22, 1
      %p208 = por %p206, %p207
      %p209 = scmp.ne.s32.totalorder %s200, %s201
      %p210 = scmp.eq.s32.totalorder %s22, 0
      %p211 = por %p209, %p210
      %p212 = scmp.ne.s32.totalorder %s200, %s201
      %p213 = scmp.eq.s32.totalorder %s23, 1
      %p214 = por %p212, %p213
      %p216 = scmp.ne.s32.totalorder %s201, %s215
      %p217 = scmp.eq.s32.totalorder %s23, 0
      %p218 = por %p216, %p217
      %s219 = ssub.s32 %s17, %s24
      %p220 = scmp.eq.s32.totalorder %s219, 0
      %s222 = sadd.s32 %s221, 1
      %s223 = scalar_select %p220, %s221, %s222
      %p226 = pneg %p220
      %p227 = scmp.eq.s32.totalorder %s17, 1
      %p228 = por %p226, %p227
      %p229 = scmp.ne.s32.totalorder %s221, %s224
      %p230 = scmp.eq.s32.totalorder %s17, 0
      %p231 = por %p229, %p230
      %p232 = scmp.ne.s32.totalorder %s221, %s224
      %p233 = scmp.eq.s32.totalorder %s22, 1
      %p234 = por %p232, %p233
      %p235 = scmp.ne.s32.totalorder %s224, %s225
      %p236 = scmp.eq.s32.totalorder %s22, 0
      %p237 = por %p235, %p236
      %p238 = scmp.ne.s32.totalorder %s224, %s225
      %p239 = scmp.eq.s32.totalorder %s23, 1
      %p240 = por %p238, %p239
      %p242 = scmp.ne.s32.totalorder %s225, %s241
      %p243 = scmp.eq.s32.totalorder %s23, 0
      %p244 = por %p242, %p243
      %p245 = scmp.le.s32.totalorder 1, %s17
      %p246 = scmp.lt.s32.totalorder %s17, 3
      %p247 = pnand %p245, %p246
      %p248 = pneg %p247
      // Predicated region
      $region9: #{_mlp_forward_jit.1} parent=5 // pred_check
        _
      $region10: #{_mlp_forward_jit.1} parent=5 // pred_check_branch
        %250 = sbr.rel (%p247) target = $region12
      $region11: #{_mlp_forward_jit.1} parent=5 // pred_region
        %s251 = ssub.s32 %s17, 1
        // Predicated region
        $region13: #{_mlp_forward_jit.1} parent=11 // pred_check
          %p252 = pneg %p64
        $region14: #{_mlp_forward_jit.1} parent=11 // pred_check_branch
          %254 = sbr.rel (%p252) target = $region16
        $region15: #{_mlp_forward_jit.1} parent=11 // pred_region
          %s256 = ssub.s32 256, 256
          %257 = vsyncadd [#allocation3], %s256
          %s258 = sshll.u32 [#allocation2], 4
          %s259 = int_to_ptr.vmem [resolvable:$true] %s258
          %264 = dma.hbm_to_vmem [thread:$0]  %s1, 256, %s259, [#allocation3], 64, 64, 4
        $region16: #{_mlp_forward_jit.1} parent=11 // pred_fallthru
          _
        // Predicated region
        $region17: #{_mlp_forward_jit.1} parent=11 // pred_check
          %p265 = pneg %p85
        $region18: #{_mlp_forward_jit.1} parent=11 // pred_check_branch
          %267 = sbr.rel (%p265) target = $region20
        $region19: #{_mlp_forward_jit.1} parent=11 // pred_region
          _
        $region20: #{_mlp_forward_jit.1} parent=11 // pred_fallthru
          _
        // Predicated region
        $region21: #{_mlp_forward_jit.1} parent=11 // pred_check
          %p268 = pneg %p106
        $region22: #{_mlp_forward_jit.1} parent=11 // pred_check_branch
          %270 = sbr.rel (%p268) target = $region24
        $region23: #{_mlp_forward_jit.1} parent=11 // pred_region
          %s272 = ssub.s32 2048, 2048
          %273 = vsyncadd [#allocation5], %s272
          %s274 = sshll.u32 [#allocation4], 4
          %s275 = int_to_ptr.vmem [resolvable:$true] %s274
          %280 = dma.hbm_to_vmem [thread:$0]  %s3, 2048, %s275, [#allocation5], 128, 128, 8
        $region24: #{_mlp_forward_jit.1} parent=11 // pred_fallthru
          _
        // Predicated region
        $region25: #{_mlp_forward_jit.1} parent=11 // pred_check
          %p281 = pneg %p127
        $region26: #{_mlp_forward_jit.1} parent=11 // pred_check_branch
          %283 = sbr.rel (%p281) target = $region28
        $region27: #{_mlp_forward_jit.1} parent=11 // pred_region
          _
        $region28: #{_mlp_forward_jit.1} parent=11 // pred_fallthru
          _
        // Predicated region
        $region29: #{_mlp_forward_jit.1} parent=11 // pred_check
          %p284 = pneg %p148
        $region30: #{_mlp_forward_jit.1} parent=11 // pred_check_branch
          %286 = sbr.rel (%p284) target = $region32
        $region31: #{_mlp_forward_jit.1} parent=11 // pred_region
          %s288 = ssub.s32 8192, 8192
          %289 = vsyncadd [#allocation5], %s288
          %s290 = sshll.u32 [#allocation6], 4
          %s291 = int_to_ptr.vmem [resolvable:$true] %s290
          %296 = dma.hbm_to_vmem [thread:$0]  %s5, 8192, %s291, [#allocation5], 256, 256, 16
        $region32: #{_mlp_forward_jit.1} parent=11 // pred_fallthru
          _
        // Predicated region
        $region33: #{_mlp_forward_jit.1} parent=11 // pred_check
          %p297 = pneg %p169
        $region34: #{_mlp_forward_jit.1} parent=11 // pred_check_branch
          %299 = sbr.rel (%p297) target = $region36
        $region35: #{_mlp_forward_jit.1} parent=11 // pred_region
          _
        $region36: #{_mlp_forward_jit.1} parent=11 // pred_fallthru
          _
        // Predicated region
        $region37: #{_mlp_forward_jit.1} parent=11 // pred_check
          %p300 = pneg %p190
        $region38: #{_mlp_forward_jit.1} parent=11 // pred_check_branch
          %302 = sbr.rel (%p300) target = $region40
        $region39: #{_mlp_forward_jit.1} parent=11 // pred_region
          _
        $region40: #{_mlp_forward_jit.1} parent=11 // pred_fallthru
          _
        // Predicated region
        $region41: #{_mlp_forward_jit.1} parent=11 // pred_check
          %p303 = pneg %p211
        $region42: #{_mlp_forward_jit.1} parent=11 // pred_check_branch
          %305 = sbr.rel (%p303) target = $region44
        $region43: #{_mlp_forward_jit.1} parent=11 // pred_region
          _
        $region44: #{_mlp_forward_jit.1} parent=11 // pred_fallthru
          _
      $region12: #{_mlp_forward_jit.1} parent=5 // pred_fallthru
        _
      %p306 = scmp.lt.s32.totalorder %s17, 2
      // Predicated region
      $region45: #{_mlp_forward_jit.1} parent=5 // pred_check
        %p307 = pneg %p306
      $region46: #{_mlp_forward_jit.1} parent=5 // pred_check_branch
        %309 = sbr.rel (%p307) target = $region48
      $region47: #{_mlp_forward_jit.1} parent=5 // pred_region
        // Predicated region
        $region49: #{_mlp_forward_jit.1} parent=47 // pred_check
          %p310 = pneg %p37
        $region50: #{_mlp_forward_jit.1} parent=47 // pred_check_branch
          %312 = sbr.rel (%p310) target = $region52
        $region51: #{_mlp_forward_jit.1} parent=47 // pred_region
          %s313 = smul.u32 16, %s17
          %p314 = scmp.lt.s32.totalorder %s313, 31
          %s315 = scalar_select %p314, %s313, 31
          %s316 = smul.addr %s315, 4
          %s317 = scalar_lea.vmem %s0, %s316
          %s318 = smul.u32 16, %s17
        $region52: #{_mlp_forward_jit.1} parent=47 // pred_fallthru
          _
      $region48: #{_mlp_forward_jit.1} parent=5 // pred_fallthru
        _
      %p319 = scmp.le.s32.totalorder 1, %s17
      %p320 = scmp.lt.s32.totalorder %s17, 3
      %p321 = pnand %p319, %p320
      %p322 = pneg %p321
      // Predicated region
      $region53: #{_mlp_forward_jit.1} parent=5 // pred_check
        _
      $region54: #{_mlp_forward_jit.1} parent=5 // pred_check_branch
        %324 = sbr.rel (%p321) target = $region56
      $region55: #{_mlp_forward_jit.1} parent=5 // pred_region
        %s325 = ssub.s32 %s17, 1
        // Predicated region
        $region57: #{_mlp_forward_jit.1} parent=55 // pred_check
          %p326 = pneg %p64
        $region58: #{_mlp_forward_jit.1} parent=55 // pred_check_branch
          %328 = sbr.rel (%p326) target = $region60
        $region59: #{_mlp_forward_jit.1} parent=55 // pred_region
          %329 = dma.done [#allocation3], 256
        $region60: #{_mlp_forward_jit.1} parent=55 // pred_fallthru
          _
        // Predicated region
        $region61: #{_mlp_forward_jit.1} parent=55 // pred_check
          %p330 = pneg %p106
        $region62: #{_mlp_forward_jit.1} parent=55 // pred_check_branch
          %332 = sbr.rel (%p330) target = $region64
        $region63: #{_mlp_forward_jit.1} parent=55 // pred_region
          %333 = dma.done [#allocation5], 2048
        $region64: #{_mlp_forward_jit.1} parent=55 // pred_fallthru
          _
        // Predicated region
        $region65: #{_mlp_forward_jit.1} parent=55 // pred_check
          %p334 = pneg %p148
        $region66: #{_mlp_forward_jit.1} parent=55 // pred_check_branch
          %336 = sbr.rel (%p334) target = $region68
        $region67: #{_mlp_forward_jit.1} parent=55 // pred_region
          %337 = dma.done [#allocation5], 8192
        $region68: #{_mlp_forward_jit.1} parent=55 // pred_fallthru
          _
        %s338 = smul.u32 16, %s22
        %p339 = scmp.lt.s32.totalorder %s338, 31
        %s340 = scalar_select %p339, %s338, 31
        %s341 = smul.addr %s340, 4
        %s342 = scalar_lea.vmem %s0, %s341
        %p343 = pneg %p43
        %p344 = pneg %p40
        %p345 = pneg %p64
        %p346 = pneg %p61
        %p347 = pneg %p85
        %p348 = pneg %p82
        %p349 = pneg %p106
        %p350 = pneg %p103
        %p351 = pneg %p127
        %p352 = pneg %p124
        %p353 = pneg %p148
        %p354 = pneg %p145
        %p355 = pneg %p169
        %p356 = pneg %p166
        %p357 = pneg %p190
        %p358 = pneg %p187
        %p359 = pneg %p211
        %p360 = pneg %p208
        %p361 = pneg %p237
        %p362 = pneg %p234
        %s363 = smul.u32 16, %s22
        %p364 = scmp.lt.s32.totalorder %s363, 31
        %s365 = scalar_select %p364, %s363, 31
        %s366 = smul.addr %s365, 8
        %s367 = scalar_lea.vmem %s9, %s366
        %s368 = smul.u32 16, %s22
        %p369 = scmp.lt.s32.totalorder %s368, 31
        %s370 = scalar_select %p369, %s368, 31
        %s371 = smul.addr %s370, 4
        %s372 = scalar_lea.vmem %s0, %s371
        %s373 = smul.u32 16, %s22
        %s374 = smul.u32 16, %s22
        %p375 = scmp.lt.s32.totalorder %s374, 31
        %s376 = scalar_select %p375, %s374, 31
        %s377 = smul.addr %s376, 8
        %s378 = scalar_lea.vmem %s9, %s377
        %s379 = smul.u32 16, %s22
        %v381 = vld [vmem:[%s372] sm:$0xf]
        %v382 = vld [vmem:[%s372 + $0x4] sm:$0xf]
        %v383 = vld [vmem:[%s372 + $0x8] sm:$0xf]
        %v384 = vld [vmem:[%s372 + $0xc] sm:$0xf]
        %v385 = vld [vmem:[%s372 + $0x10] sm:$0xf]
        %v386 = vld [vmem:[%s372 + $0x14] sm:$0xf]
        %v387 = vld [vmem:[%s372 + $0x18] sm:$0xf]
        %v388 = vld [vmem:[%s372 + $0x1c] sm:$0xf]
        %v389 = vld [vmem:[%s372 + $0x20] sm:$0xf]
        %v390 = vld [vmem:[%s372 + $0x24] sm:$0xf]
        %v391 = vld [vmem:[%s372 + $0x28] sm:$0xf]
        %v392 = vld [vmem:[%s372 + $0x2c] sm:$0xf]
        %v393 = vld [vmem:[%s372 + $0x30] sm:$0xf]
        %v394 = vld [vmem:[%s372 + $0x34] sm:$0xf]
        %v395 = vld [vmem:[%s372 + $0x38] sm:$0xf]
        %v396 = vld [vmem:[%s372 + $0x3c] sm:$0xf]
        %v397 = vld [vmem:[#allocation2] sm:$0xf]
        %v398 = vld [vmem:[#allocation2 + $0x4] sm:$0xf]
        %v399 = vld [vmem:[#allocation2 + $0x8] sm:$0xf]
        %v400 = vld [vmem:[#allocation2 + $0xc] sm:$0xf]
        %v401 = vld [vmem:[%s2] sm:$0x1]
        %v403 = vlaneseq
        %v404 = vshrl.u32 %v403, 7
        %v405 = vsub.s32 0, %v404
        %v406 = vrot.slane %v401, %v405
        %v424 = vunpack.c.l.b16 %v381
        %v425 = vunpack.c.l.b16 %v382
        %v426 = vunpack.c.l.b16 %v383
        %v427 = vunpack.c.l.b16 %v384
        %v428 = vunpack.c.l.b16 %v385
        %v429 = vunpack.c.l.b16 %v386
        %v430 = vunpack.c.l.b16 %v387
        %v431 = vunpack.c.l.b16 %v388
        %v432 = vunpack.c.l.b16 %v389
        %v433 = vunpack.c.l.b16 %v390
        %v434 = vunpack.c.l.b16 %v391
        %v435 = vunpack.c.l.b16 %v392
        %v436 = vunpack.c.l.b16 %v393
        %v437 = vunpack.c.l.b16 %v394
        %v438 = vunpack.c.l.b16 %v395
        %v439 = vunpack.c.l.b16 %v396
        %v440 = vpack.c.b16 %v425, %v424
        %v441 = vpack.c.b16 %v427, %v426
        %v442 = vpack.c.b16 %v429, %v428
        %v443 = vpack.c.b16 %v431, %v430
        %v444 = vpack.c.b16 %v433, %v432
        %v445 = vpack.c.b16 %v435, %v434
        %v446 = vpack.c.b16 %v437, %v436
        %v447 = vpack.c.b16 %v439, %v438
        %v452 = vunpack.c.l.b16 %v397
        %v453 = vunpack.c.l.b16 %v398
        %v454 = vunpack.c.l.b16 %v399
        %v455 = vunpack.c.l.b16 %v400
        %v456 = vpack.c.b16 %v453, %v452
        %v457 = vpack.c.b16 %v455, %v454
        %vm460 = vcmask 261120
        %v462 = vsel %vm460, %v440, 0
        %v465 = vsel %vm460, %v441, 0
        %v468 = vsel %vm460, %v442, 0
        %v471 = vsel %vm460, %v443, 0
        %v474 = vsel %vm460, %v444, 0
        %v477 = vsel %vm460, %v445, 0
        %v480 = vsel %vm460, %v446, 0
        %v483 = vsel %vm460, %v447, 0
        %485 = vmatprep.subr.bf16.mxu0 0
        %486 = vmatpush1.bf16.msra.mxu0 0
        %487 = vmatprep.subr.bf16.mxu0 0
        %488 = vmatpush1.bf16.msra.mxu0 0
        %489 = vmatprep.subr.bf16.mxu0 0
        %490 = vmatpush1.bf16.msra.mxu0 0
        %491 = vmatprep.subr.bf16.mxu0 0
        %492 = vmatpush1.bf16.msra.mxu0 0
        %493 = vmatprep.subr.bf16.mxu0 0
        %494 = vmatpush1.bf16.msra.mxu0 0
        %495 = vmatprep.subr.bf16.mxu0 0
        %496 = vmatpush1.bf16.msra.mxu0 0
        %497 = vmatprep.subr.bf16.mxu0 0
        %498 = vmatpush1.bf16.msra.mxu0 %v457
        %499 = vmatprep.subr.bf16.mxu0 0
        %500 = vmatpush1.bf16.msra.mxu0 %v456
        %501 = vmatprep.subr.bf16.mxu0 0
        %502 = vmatpush2.bf16.msra.mxu0 0
        %503 = vmatprep.subr.bf16.mxu0 0
        %504 = vmatpush2.bf16.msra.mxu0 0
        %505 = vmatprep.subr.bf16.mxu0 0
        %506 = vmatpush2.bf16.msra.mxu0 0
        %507 = vmatprep.subr.bf16.mxu0 0
        %508 = vmatpush2.bf16.msra.mxu0 0
        %509 = vmatprep.subr.bf16.mxu0 0
        %510 = vmatpush2.bf16.msra.mxu0 0
        %511 = vmatprep.subr.bf16.mxu0 0
        %512 = vmatpush2.bf16.msra.mxu0 0
        %513 = vmatprep.subr.bf16.mxu0 0
        %514 = vmatpush2.bf16.msra.mxu0 0
        %515 = vmatprep.subr.bf16.mxu0 0
        %516 = vmatpush2.bf16.msra.mxu0 0
        %517 = vmatprep.mubr.bf16.mxu0 0
        %518 = vmatmul.mubr.bf16.gmra.mxu0 %v462
        %v519 = vpop.f32.mrf.mxu0
        %v520 = vadd.f32 %v406, %v519
        %v521 = vpop.f32.mrf.mxu0
        %v522 = vpop.f32.mrf.mxu0
        %v523 = vadd.f32 %v406, %v522
        %v524 = vpop.f32.mrf.mxu0
        %525 = vmatprep.mubr.bf16.mxu0 0
        %526 = vmatmul.mubr.bf16.gmra.mxu0 %v465
        %v527 = vpop.f32.mrf.mxu0
        %v528 = vadd.f32 %v406, %v527
        %v529 = vpop.f32.mrf.mxu0
        %v530 = vpop.f32.mrf.mxu0
        %v531 = vadd.f32 %v406, %v530
        %v532 = vpop.f32.mrf.mxu0
        %533 = vmatprep.mubr.bf16.mxu0 0
        %534 = vmatmul.mubr.bf16.gmra.mxu0 %v468
        %v535 = vpop.f32.mrf.mxu0
        %v536 = vadd.f32 %v406, %v535
        %v537 = vpop.f32.mrf.mxu0
        %v538 = vpop.f32.mrf.mxu0
        %v539 = vadd.f32 %v406, %v538
        %v540 = vpop.f32.mrf.mxu0
        %541 = vmatprep.mubr.bf16.mxu0 0
        %542 = vmatmul.mubr.bf16.gmra.mxu0 %v471
        %v543 = vpop.f32.mrf.mxu0
        %v544 = vadd.f32 %v406, %v543
        %v545 = vpop.f32.mrf.mxu0
        %v546 = vpop.f32.mrf.mxu0
        %v547 = vadd.f32 %v406, %v546
        %v548 = vpop.f32.mrf.mxu0
        %549 = vmatprep.mubr.bf16.mxu0 0
        %550 = vmatmul.mubr.bf16.gmra.mxu0 %v474
        %v551 = vpop.f32.mrf.mxu0
        %v552 = vadd.f32 %v406, %v551
        %v553 = vpop.f32.mrf.mxu0
        %v554 = vpop.f32.mrf.mxu0
        %v555 = vadd.f32 %v406, %v554
        %v556 = vpop.f32.mrf.mxu0
        %557 = vmatprep.mubr.bf16.mxu0 0
        %558 = vmatmul.mubr.bf16.gmra.mxu0 %v477
        %v559 = vpop.f32.mrf.mxu0
        %v560 = vadd.f32 %v406, %v559
        %v561 = vpop.f32.mrf.mxu0
        %v562 = vpop.f32.mrf.mxu0
        %v563 = vadd.f32 %v406, %v562
        %v564 = vpop.f32.mrf.mxu0
        %565 = vmatprep.mubr.bf16.mxu0 0
        %566 = vmatmul.mubr.bf16.gmra.mxu0 %v480
        %v567 = vpop.f32.mrf.mxu0
        %v568 = vadd.f32 %v406, %v567
        %v569 = vpop.f32.mrf.mxu0
        %v570 = vpop.f32.mrf.mxu0
        %v571 = vadd.f32 %v406, %v570
        %v572 = vpop.f32.mrf.mxu0
        %573 = vmatprep.mubr.bf16.mxu0 0
        %574 = vmatmul.mubr.bf16.gmra.mxu0 %v483
        %v575 = vpop.f32.mrf.mxu0
        %v576 = vadd.f32 %v406, %v575
        %v577 = vpop.f32.mrf.mxu0
        %v578 = vpop.f32.mrf.mxu0
        %v579 = vadd.f32 %v406, %v578
        %v580 = vpop.f32.mrf.mxu0
        %581 = vdwg.mxu0
        %vm582 = vcmp.gt.f32.partialorder %v520, 0.0
        %vm583 = vcmp.gt.f32.partialorder %v523, 0.0
        %vm584 = vcmp.gt.f32.partialorder %v528, 0.0
        %vm585 = vcmp.gt.f32.partialorder %v531, 0.0
        %vm586 = vcmp.gt.f32.partialorder %v536, 0.0
        %vm587 = vcmp.gt.f32.partialorder %v539, 0.0
        %vm588 = vcmp.gt.f32.partialorder %v544, 0.0
        %vm589 = vcmp.gt.f32.partialorder %v547, 0.0
        %vm590 = vcmp.gt.f32.partialorder %v552, 0.0
        %vm591 = vcmp.gt.f32.partialorder %v555, 0.0
        %vm592 = vcmp.gt.f32.partialorder %v560, 0.0
        %vm593 = vcmp.gt.f32.partialorder %v563, 0.0
        %vm594 = vcmp.gt.f32.partialorder %v568, 0.0
        %vm595 = vcmp.gt.f32.partialorder %v571, 0.0
        %vm596 = vcmp.gt.f32.partialorder %v576, 0.0
        %vm597 = vcmp.gt.f32.partialorder %v579, 0.0
        %v598 = vmul.f32 %v520, 0.2
        %v599 = vmul.f32 %v523, 0.2
        %v600 = vmul.f32 %v528, 0.2
        %v601 = vmul.f32 %v531, 0.2
        %v602 = vmul.f32 %v536, 0.2
        %v603 = vmul.f32 %v539, 0.2
        %v604 = vmul.f32 %v544, 0.2
        %v605 = vmul.f32 %v547, 0.2
        %v606 = vmul.f32 %v552, 0.2
        %v607 = vmul.f32 %v555, 0.2
        %v608 = vmul.f32 %v560, 0.2
        %v609 = vmul.f32 %v563, 0.2
        %v610 = vmul.f32 %v568, 0.2
        %v611 = vmul.f32 %v571, 0.2
        %v612 = vmul.f32 %v576, 0.2
        %v613 = vmul.f32 %v579, 0.2
        %v614 = vsel %vm582, %v520, %v598
        %v615 = vsel %vm583, %v523, %v599
        %v616 = vsel %vm584, %v528, %v600
        %v617 = vsel %vm585, %v531, %v601
        %v618 = vsel %vm586, %v536, %v602
        %v619 = vsel %vm587, %v539, %v603
        %v620 = vsel %vm588, %v544, %v604
        %v621 = vsel %vm589, %v547, %v605
        %v622 = vsel %vm590, %v552, %v606
        %v623 = vsel %vm591, %v555, %v607
        %v624 = vsel %vm592, %v560, %v608
        %v625 = vsel %vm593, %v563, %v609
        %v626 = vsel %vm594, %v568, %v610
        %v627 = vsel %vm595, %v571, %v611
        %v628 = vsel %vm596, %v576, %v612
        %v629 = vsel %vm597, %v579, %v613
        %v630 = vpack.c.bf16 %v615, %v614
        %v631 = vpack.c.bf16 %v617, %v616
        %v632 = vpack.c.bf16 %v619, %v618
        %v633 = vpack.c.bf16 %v621, %v620
        %v634 = vpack.c.bf16 %v623, %v622
        %v635 = vpack.c.bf16 %v625, %v624
        %v636 = vpack.c.bf16 %v627, %v626
        %v637 = vpack.c.bf16 %v629, %v628
        %v638 = vld [vmem:[#allocation4] sm:$0xff]
        %v639 = vld [vmem:[#allocation4 + $0x8] sm:$0xff]
        %v640 = vld [vmem:[#allocation4 + $0x10] sm:$0xff]
        %v641 = vld [vmem:[#allocation4 + $0x18] sm:$0xff]
        %v642 = vld [vmem:[#allocation4 + $0x20] sm:$0xff]
        %v643 = vld [vmem:[#allocation4 + $0x28] sm:$0xff]
        %v644 = vld [vmem:[#allocation4 + $0x30] sm:$0xff]
        %v645 = vld [vmem:[#allocation4 + $0x38] sm:$0xff]
        %v646 = vld [vmem:[#allocation4 + $0x40] sm:$0xff]
        %v647 = vld [vmem:[#allocation4 + $0x48] sm:$0xff]
        %v648 = vld [vmem:[#allocation4 + $0x50] sm:$0xff]
        %v649 = vld [vmem:[#allocation4 + $0x58] sm:$0xff]
        %v650 = vld [vmem:[#allocation4 + $0x60] sm:$0xff]
        %v651 = vld [vmem:[#allocation4 + $0x68] sm:$0xff]
        %v652 = vld [vmem:[#allocation4 + $0x70] sm:$0xff]
        %v653 = vld [vmem:[#allocation4 + $0x78] sm:$0xff]
        %v654 = vld [vmem:[%s4] sm:$0x3]
        %v656 = vlaneseq
        %v657 = vshrl.u32 %v656, 7
        %v658 = vsub.s32 0, %v657
        %v659 = vrot.slane %v654, %v658
        %v660 = vlaneseq
        %v661 = vshrl.u32 %v660, 7
        %v662 = vsub.s32 1, %v661
        %v663 = vrot.slane %v654, %v662
        %v682 = vunpack.c.l.b16 %v638
        %v683 = vunpack.c.h.b16 %v638
        %v684 = vunpack.c.l.b16 %v639
        %v685 = vunpack.c.h.b16 %v639
        %v686 = vunpack.c.l.b16 %v640
        %v687 = vunpack.c.h.b16 %v640
        %v688 = vunpack.c.l.b16 %v641
        %v689 = vunpack.c.h.b16 %v641
        %v690 = vunpack.c.l.b16 %v642
        %v691 = vunpack.c.h.b16 %v642
        %v692 = vunpack.c.l.b16 %v643
        %v693 = vunpack.c.h.b16 %v643
        %v694 = vunpack.c.l.b16 %v644
        %v695 = vunpack.c.h.b16 %v644
        %v696 = vunpack.c.l.b16 %v645
        %v697 = vunpack.c.h.b16 %v645
        %v698 = vunpack.c.l.b16 %v646
        %v699 = vunpack.c.h.b16 %v646
        %v700 = vunpack.c.l.b16 %v647
        %v701 = vunpack.c.h.b16 %v647
        %v702 = vunpack.c.l.b16 %v648
        %v703 = vunpack.c.h.b16 %v648
        %v704 = vunpack.c.l.b16 %v649
        %v705 = vunpack.c.h.b16 %v649
        %v706 = vunpack.c.l.b16 %v650
        %v707 = vunpack.c.h.b16 %v650
        %v708 = vunpack.c.l.b16 %v651
        %v709 = vunpack.c.h.b16 %v651
        %v710 = vunpack.c.l.b16 %v652
        %v711 = vunpack.c.h.b16 %v652
        %v712 = vunpack.c.l.b16 %v653
        %v713 = vunpack.c.h.b16 %v653
        %v714 = vpack.c.b16 %v684, %v682
        %v715 = vpack.c.b16 %v685, %v683
        %v716 = vpack.c.b16 %v688, %v686
        %v717 = vpack.c.b16 %v689, %v687
        %v718 = vpack.c.b16 %v692, %v690
        %v719 = vpack.c.b16 %v693, %v691
        %v720 = vpack.c.b16 %v696, %v694
        %v721 = vpack.c.b16 %v697, %v695
        %v722 = vpack.c.b16 %v700, %v698
        %v723 = vpack.c.b16 %v701, %v699
        %v724 = vpack.c.b16 %v704, %v702
        %v725 = vpack.c.b16 %v705, %v703
        %v726 = vpack.c.b16 %v708, %v706
        %v727 = vpack.c.b16 %v709, %v707
        %v728 = vpack.c.b16 %v712, %v710
        %v729 = vpack.c.b16 %v713, %v711
        %746 = vmatprep.subr.bf16.mxu0 %v729
        %747 = vmatpush1.bf16.msra.mxu0 %v728
        %748 = vmatprep.subr.bf16.mxu0 %v727
        %749 = vmatpush1.bf16.msra.mxu0 %v726
        %750 = vmatprep.subr.bf16.mxu0 %v725
        %751 = vmatpush1.bf16.msra.mxu0 %v724
        %752 = vmatprep.subr.bf16.mxu0 %v723
        %753 = vmatpush1.bf16.msra.mxu0 %v722
        %754 = vmatprep.subr.bf16.mxu0 %v721
        %755 = vmatpush1.bf16.msra.mxu0 %v720
        %756 = vmatprep.subr.bf16.mxu0 %v719
        %757 = vmatpush1.bf16.msra.mxu0 %v718
        %758 = vmatprep.subr.bf16.mxu0 %v717
        %759 = vmatpush1.bf16.msra.mxu0 %v716
        %760 = vmatprep.subr.bf16.mxu0 %v715
        %761 = vmatpush1.bf16.msra.mxu0 %v714
        %762 = vmatprep.subr.bf16.mxu0 0
        %763 = vmatpush2.bf16.msra.mxu0 0
        %764 = vmatprep.subr.bf16.mxu0 0
        %765 = vmatpush2.bf16.msra.mxu0 0
        %766 = vmatprep.subr.bf16.mxu0 0
        %767 = vmatpush2.bf16.msra.mxu0 0
        %768 = vmatprep.subr.bf16.mxu0 0
        %769 = vmatpush2.bf16.msra.mxu0 0
        %770 = vmatprep.subr.bf16.mxu0 0
        %771 = vmatpush2.bf16.msra.mxu0 0
        %772 = vmatprep.subr.bf16.mxu0 0
        %773 = vmatpush2.bf16.msra.mxu0 0
        %774 = vmatprep.subr.bf16.mxu0 0
        %775 = vmatpush2.bf16.msra.mxu0 0
        %776 = vmatprep.subr.bf16.mxu0 0
        %777 = vmatpush2.bf16.msra.mxu0 0
        %778 = vmatprep.mubr.bf16.mxu0 0
        %779 = vmatmul.mubr.bf16.gmra.mxu0 %v630
        %v780 = vpop.f32.mrf.mxu0
        %v781 = vadd.f32 %v659, %v780
        %v782 = vpop.f32.mrf.mxu0
        %v783 = vadd.f32 %v663, %v782
        %v784 = vpop.f32.mrf.mxu0
        %v785 = vadd.f32 %v659, %v784
        %v786 = vpop.f32.mrf.mxu0
        %v787 = vadd.f32 %v663, %v786
        %788 = vmatprep.mubr.bf16.mxu0 0
        %789 = vmatmul.mubr.bf16.gmra.mxu0 %v631
        %v790 = vpop.f32.mrf.mxu0
        %v791 = vadd.f32 %v659, %v790
        %v792 = vpop.f32.mrf.mxu0
        %v793 = vadd.f32 %v663, %v792
        %v794 = vpop.f32.mrf.mxu0
        %v795 = vadd.f32 %v659, %v794
        %v796 = vpop.f32.mrf.mxu0
        %v797 = vadd.f32 %v663, %v796
        %798 = vmatprep.mubr.bf16.mxu0 0
        %799 = vmatmul.mubr.bf16.gmra.mxu0 %v632
        %v800 = vpop.f32.mrf.mxu0
        %v801 = vadd.f32 %v659, %v800
        %v802 = vpop.f32.mrf.mxu0
        %v803 = vadd.f32 %v663, %v802
        %v804 = vpop.f32.mrf.mxu0
        %v805 = vadd.f32 %v659, %v804
        %v806 = vpop.f32.mrf.mxu0
        %v807 = vadd.f32 %v663, %v806
        %808 = vmatprep.mubr.bf16.mxu0 0
        %809 = vmatmul.mubr.bf16.gmra.mxu0 %v633
        %v810 = vpop.f32.mrf.mxu0
        %v811 = vadd.f32 %v659, %v810
        %v812 = vpop.f32.mrf.mxu0
        %v813 = vadd.f32 %v663, %v812
        %v814 = vpop.f32.mrf.mxu0
        %v815 = vadd.f32 %v659, %v814
        %v816 = vpop.f32.mrf.mxu0
        %v817 = vadd.f32 %v663, %v816
        %818 = vmatprep.mubr.bf16.mxu0 0
        %819 = vmatmul.mubr.bf16.gmra.mxu0 %v634
        %v820 = vpop.f32.mrf.mxu0
        %v821 = vadd.f32 %v659, %v820
        %v822 = vpop.f32.mrf.mxu0
        %v823 = vadd.f32 %v663, %v822
        %v824 = vpop.f32.mrf.mxu0
        %v825 = vadd.f32 %v659, %v824
        %v826 = vpop.f32.mrf.mxu0
        %v827 = vadd.f32 %v663, %v826
        %828 = vmatprep.mubr.bf16.mxu0 0
        %829 = vmatmul.mubr.bf16.gmra.mxu0 %v635
        %v830 = vpop.f32.mrf.mxu0
        %v831 = vadd.f32 %v659, %v830
        %v832 = vpop.f32.mrf.mxu0
        %v833 = vadd.f32 %v663, %v832
        %v834 = vpop.f32.mrf.mxu0
        %v835 = vadd.f32 %v659, %v834
        %v836 = vpop.f32.mrf.mxu0
        %v837 = vadd.f32 %v663, %v836
        %838 = vmatprep.mubr.bf16.mxu0 0
        %839 = vmatmul.mubr.bf16.gmra.mxu0 %v636
        %v840 = vpop.f32.mrf.mxu0
        %v841 = vadd.f32 %v659, %v840
        %v842 = vpop.f32.mrf.mxu0
        %v843 = vadd.f32 %v663, %v842
        %v844 = vpop.f32.mrf.mxu0
        %v845 = vadd.f32 %v659, %v844
        %v846 = vpop.f32.mrf.mxu0
        %v847 = vadd.f32 %v663, %v846
        %848 = vmatprep.mubr.bf16.mxu0 0
        %849 = vmatmul.mubr.bf16.gmra.mxu0 %v637
        %v850 = vpop.f32.mrf.mxu0
        %v851 = vadd.f32 %v659, %v850
        %v852 = vpop.f32.mrf.mxu0
        %v853 = vadd.f32 %v663, %v852
        %v854 = vpop.f32.mrf.mxu0
        %v855 = vadd.f32 %v659, %v854
        %v856 = vpop.f32.mrf.mxu0
        %v857 = vadd.f32 %v663, %v856
        %858 = vdwg.mxu0
        %vm859 = vcmp.gt.f32.partialorder %v781, 0.0
        %vm860 = vcmp.gt.f32.partialorder %v783, 0.0
        %vm861 = vcmp.gt.f32.partialorder %v785, 0.0
        %vm862 = vcmp.gt.f32.partialorder %v787, 0.0
        %vm863 = vcmp.gt.f32.partialorder %v791, 0.0
        %vm864 = vcmp.gt.f32.partialorder %v793, 0.0
        %vm865 = vcmp.gt.f32.partialorder %v795, 0.0
        %vm866 = vcmp.gt.f32.partialorder %v797, 0.0
        %vm867 = vcmp.gt.f32.partialorder %v801, 0.0
        %vm868 = vcmp.gt.f32.partialorder %v803, 0.0
        %vm869 = vcmp.gt.f32.partialorder %v805, 0.0
        %vm870 = vcmp.gt.f32.partialorder %v807, 0.0
        %vm871 = vcmp.gt.f32.partialorder %v811, 0.0
        %vm872 = vcmp.gt.f32.partialorder %v813, 0.0
        %vm873 = vcmp.gt.f32.partialorder %v815, 0.0
        %vm874 = vcmp.gt.f32.partialorder %v817, 0.0
        %vm875 = vcmp.gt.f32.partialorder %v821, 0.0
        %vm876 = vcmp.gt.f32.partialorder %v823, 0.0
        %vm877 = vcmp.gt.f32.partialorder %v825, 0.0
        %vm878 = vcmp.gt.f32.partialorder %v827, 0.0
        %vm879 = vcmp.gt.f32.partialorder %v831, 0.0
        %vm880 = vcmp.gt.f32.partialorder %v833, 0.0
        %vm881 = vcmp.gt.f32.partialorder %v835, 0.0
        %vm882 = vcmp.gt.f32.partialorder %v837, 0.0
        %vm883 = vcmp.gt.f32.partialorder %v841, 0.0
        %vm884 = vcmp.gt.f32.partialorder %v843, 0.0
        %vm885 = vcmp.gt.f32.partialorder %v845, 0.0
        %vm886 = vcmp.gt.f32.partialorder %v847, 0.0
        %vm887 = vcmp.gt.f32.partialorder %v851, 0.0
        %vm888 = vcmp.gt.f32.partialorder %v853, 0.0
        %vm889 = vcmp.gt.f32.partialorder %v855, 0.0
        %vm890 = vcmp.gt.f32.partialorder %v857, 0.0
        %v891 = vmul.f32 %v781, 0.2
        %v892 = vmul.f32 %v783, 0.2
        %v893 = vmul.f32 %v785, 0.2
        %v894 = vmul.f32 %v787, 0.2
        %v895 = vmul.f32 %v791, 0.2
        %v896 = vmul.f32 %v793, 0.2
        %v897 = vmul.f32 %v795, 0.2
        %v898 = vmul.f32 %v797, 0.2
        %v899 = vmul.f32 %v801, 0.2
        %v900 = vmul.f32 %v803, 0.2
        %v901 = vmul.f32 %v805, 0.2
        %v902 = vmul.f32 %v807, 0.2
        %v903 = vmul.f32 %v811, 0.2
        %v904 = vmul.f32 %v813, 0.2
        %v905 = vmul.f32 %v815, 0.2
        %v906 = vmul.f32 %v817, 0.2
        %v907 = vmul.f32 %v821, 0.2
        %v908 = vmul.f32 %v823, 0.2
        %v909 = vmul.f32 %v825, 0.2
        %v910 = vmul.f32 %v827, 0.2
        %v911 = vmul.f32 %v831, 0.2
        %v912 = vmul.f32 %v833, 0.2
        %v913 = vmul.f32 %v835, 0.2
        %v914 = vmul.f32 %v837, 0.2
        %v915 = vmul.f32 %v841, 0.2
        %v916 = vmul.f32 %v843, 0.2
        %v917 = vmul.f32 %v845, 0.2
        %v918 = vmul.f32 %v847, 0.2
        %v919 = vmul.f32 %v851, 0.2
        %v920 = vmul.f32 %v853, 0.2
        %v921 = vmul.f32 %v855, 0.2
        %v922 = vmul.f32 %v857, 0.2
        %v923 = vsel %vm859, %v781, %v891
        %v924 = vsel %vm860, %v783, %v892
        %v925 = vsel %vm861, %v785, %v893
        %v926 = vsel %vm862, %v787, %v894
        %v927 = vsel %vm863, %v791, %v895
        %v928 = vsel %vm864, %v793, %v896
        %v929 = vsel %vm865, %v795, %v897
        %v930 = vsel %vm866, %v797, %v898
        %v931 = vsel %vm867, %v801, %v899
        %v932 = vsel %vm868, %v803, %v900
        %v933 = vsel %vm869, %v805, %v901
        %v934 = vsel %vm870, %v807, %v902
        %v935 = vsel %vm871, %v811, %v903
        %v936 = vsel %vm872, %v813, %v904
        %v937 = vsel %vm873, %v815, %v905
        %v938 = vsel %vm874, %v817, %v906
        %v939 = vsel %vm875, %v821, %v907
        %v940 = vsel %vm876, %v823, %v908
        %v941 = vsel %vm877, %v825, %v909
        %v942 = vsel %vm878, %v827, %v910
        %v943 = vsel %vm879, %v831, %v911
        %v944 = vsel %vm880, %v833, %v912
        %v945 = vsel %vm881, %v835, %v913
        %v946 = vsel %vm882, %v837, %v914
        %v947 = vsel %vm883, %v841, %v915
        %v948 = vsel %vm884, %v843, %v916
        %v949 = vsel %vm885, %v845, %v917
        %v950 = vsel %vm886, %v847, %v918
        %v951 = vsel %vm887, %v851, %v919
        %v952 = vsel %vm888, %v853, %v920
        %v953 = vsel %vm889, %v855, %v921
        %v954 = vsel %vm890, %v857, %v922
        %v955 = vpack.c.bf16 %v925, %v923
        %v956 = vpack.c.bf16 %v926, %v924
        %v957 = vpack.c.bf16 %v929, %v927
        %v958 = vpack.c.bf16 %v930, %v928
        %v959 = vpack.c.bf16 %v933, %v931
        %v960 = vpack.c.bf16 %v934, %v932
        %v961 = vpack.c.bf16 %v937, %v935
        %v962 = vpack.c.bf16 %v938, %v936
        %v963 = vpack.c.bf16 %v941, %v939
        %v964 = vpack.c.bf16 %v942, %v940
        %v965 = vpack.c.bf16 %v945, %v943
        %v966 = vpack.c.bf16 %v946, %v944
        %v967 = vpack.c.bf16 %v949, %v947
        %v968 = vpack.c.bf16 %v950, %v948
        %v969 = vpack.c.bf16 %v953, %v951
        %v970 = vpack.c.bf16 %v954, %v952
        %v971 = vld [vmem:[#allocation6] sm:$0xff]
        %v972 = vld [vmem:[#allocation6 + $0x8] sm:$0xff]
        %v973 = vld [vmem:[#allocation6 + $0x10] sm:$0xff]
        %v974 = vld [vmem:[#allocation6 + $0x18] sm:$0xff]
        %v975 = vld [vmem:[#allocation6 + $0x20] sm:$0xff]
        %v976 = vld [vmem:[#allocation6 + $0x28] sm:$0xff]
        %v977 = vld [vmem:[#allocation6 + $0x30] sm:$0xff]
        %v978 = vld [vmem:[#allocation6 + $0x38] sm:$0xff]
        %v979 = vld [vmem:[#allocation6 + $0x40] sm:$0xff]
        %v980 = vld [vmem:[#allocation6 + $0x48] sm:$0xff]
        %v981 = vld [vmem:[#allocation6 + $0x50] sm:$0xff]
        %v982 = vld [vmem:[#allocation6 + $0x58] sm:$0xff]
        %v983 = vld [vmem:[#allocation6 + $0x60] sm:$0xff]
        %v984 = vld [vmem:[#allocation6 + $0x68] sm:$0xff]
        %v985 = vld [vmem:[#allocation6 + $0x70] sm:$0xff]
        %v986 = vld [vmem:[#allocation6 + $0x78] sm:$0xff]
        %v987 = vld [vmem:[#allocation6 + $0x80] sm:$0xff]
        %v988 = vld [vmem:[#allocation6 + $0x88] sm:$0xff]
        %v989 = vld [vmem:[#allocation6 + $0x90] sm:$0xff]
        %v990 = vld [vmem:[#allocation6 + $0x98] sm:$0xff]
        %v991 = vld [vmem:[#allocation6 + $0xa0] sm:$0xff]
        %v992 = vld [vmem:[#allocation6 + $0xa8] sm:$0xff]
        %v993 = vld [vmem:[#allocation6 + $0xb0] sm:$0xff]
        %v994 = vld [vmem:[#allocation6 + $0xb8] sm:$0xff]
        %v995 = vld [vmem:[#allocation6 + $0xc0] sm:$0xff]
        %v996 = vld [vmem:[#allocation6 + $0xc8] sm:$0xff]
        %v997 = vld [vmem:[#allocation6 + $0xd0] sm:$0xff]
        %v998 = vld [vmem:[#allocation6 + $0xd8] sm:$0xff]
        %v999 = vld [vmem:[#allocation6 + $0xe0] sm:$0xff]
        %v1000 = vld [vmem:[#allocation6 + $0xe8] sm:$0xff]
        %v1001 = vld [vmem:[#allocation6 + $0xf0] sm:$0xff]
        %v1002 = vld [vmem:[#allocation6 + $0xf8] sm:$0xff]
        %v1003 = vld [vmem:[#allocation6 + $0x100] sm:$0xff]
        %v1004 = vld [vmem:[#allocation6 + $0x108] sm:$0xff]
        %v1005 = vld [vmem:[#allocation6 + $0x110] sm:$0xff]
        %v1006 = vld [vmem:[#allocation6 + $0x118] sm:$0xff]
        %v1007 = vld [vmem:[#allocation6 + $0x120] sm:$0xff]
        %v1008 = vld [vmem:[#allocation6 + $0x128] sm:$0xff]
        %v1009 = vld [vmem:[#allocation6 + $0x130] sm:$0xff]
        %v1010 = vld [vmem:[#allocation6 + $0x138] sm:$0xff]
        %v1011 = vld [vmem:[#allocation6 + $0x140] sm:$0xff]
        %v1012 = vld [vmem:[#allocation6 + $0x148] sm:$0xff]
        %v1013 = vld [vmem:[#allocation6 + $0x150] sm:$0xff]
        %v1014 = vld [vmem:[#allocation6 + $0x158] sm:$0xff]
        %v1015 = vld [vmem:[#allocation6 + $0x160] sm:$0xff]
        %v1016 = vld [vmem:[#allocation6 + $0x168] sm:$0xff]
        %v1017 = vld [vmem:[#allocation6 + $0x170] sm:$0xff]
        %v1018 = vld [vmem:[#allocation6 + $0x178] sm:$0xff]
        %v1019 = vld [vmem:[#allocation6 + $0x180] sm:$0xff]
        %v1020 = vld [vmem:[#allocation6 + $0x188] sm:$0xff]
        %v1021 = vld [vmem:[#allocation6 + $0x190] sm:$0xff]
        %v1022 = vld [vmem:[#allocation6 + $0x198] sm:$0xff]
        %v1023 = vld [vmem:[#allocation6 + $0x1a0] sm:$0xff]
        %v1024 = vld [vmem:[#allocation6 + $0x1a8] sm:$0xff]
        %v1025 = vld [vmem:[#allocation6 + $0x1b0] sm:$0xff]
        %v1026 = vld [vmem:[#allocation6 + $0x1b8] sm:$0xff]
        %v1027 = vld [vmem:[#allocation6 + $0x1c0] sm:$0xff]
        %v1028 = vld [vmem:[#allocation6 + $0x1c8] sm:$0xff]
        %v1029 = vld [vmem:[#allocation6 + $0x1d0] sm:$0xff]
        %v1030 = vld [vmem:[#allocation6 + $0x1d8] sm:$0xff]
        %v1031 = vld [vmem:[#allocation6 + $0x1e0] sm:$0xff]
        %v1032 = vld [vmem:[#allocation6 + $0x1e8] sm:$0xff]
        %v1033 = vld [vmem:[#allocation6 + $0x1f0] sm:$0xff]
        %v1034 = vld [vmem:[#allocation6 + $0x1f8] sm:$0xff]
        %v1035 = vld [vmem:[%s6] sm:$0xf]
        %v1037 = vlaneseq
        %v1038 = vshrl.u32 %v1037, 7
        %v1039 = vsub.s32 0, %v1038
        %v1040 = vrot.slane %v1035, %v1039
        %v1041 = vlaneseq
        %v1042 = vshrl.u32 %v1041, 7
        %v1043 = vsub.s32 1, %v1042
        %v1044 = vrot.slane %v1035, %v1043
        %v1045 = vlaneseq
        %v1046 = vshrl.u32 %v1045, 7
        %v1047 = vsub.s32 2, %v1046
        %v1048 = vrot.slane %v1035, %v1047
        %v1049 = vlaneseq
        %v1050 = vshrl.u32 %v1049, 7
        %v1051 = vsub.s32 3, %v1050
        %v1052 = vrot.slane %v1035, %v1051
        %v1121 = vunpack.c.l.b16 %v971
        %v1122 = vunpack.c.h.b16 %v971
        %v1123 = vunpack.c.l.b16 %v972
        %v1124 = vunpack.c.h.b16 %v972
        %v1125 = vunpack.c.l.b16 %v973
        %v1126 = vunpack.c.h.b16 %v973
        %v1127 = vunpack.c.l.b16 %v974
        %v1128 = vunpack.c.h.b16 %v974
        %v1129 = vunpack.c.l.b16 %v975
        %v1130 = vunpack.c.h.b16 %v975
        %v1131 = vunpack.c.l.b16 %v976
        %v1132 = vunpack.c.h.b16 %v976
        %v1133 = vunpack.c.l.b16 %v977
        %v1134 = vunpack.c.h.b16 %v977
        %v1135 = vunpack.c.l.b16 %v978
        %v1136 = vunpack.c.h.b16 %v978
        %v1137 = vunpack.c.l.b16 %v979
        %v1138 = vunpack.c.h.b16 %v979
        %v1139 = vunpack.c.l.b16 %v980
        %v1140 = vunpack.c.h.b16 %v980
        %v1141 = vunpack.c.l.b16 %v981
        %v1142 = vunpack.c.h.b16 %v981
        %v1143 = vunpack.c.l.b16 %v982
        %v1144 = vunpack.c.h.b16 %v982
        %v1145 = vunpack.c.l.b16 %v983
        %v1146 = vunpack.c.h.b16 %v983
        %v1147 = vunpack.c.l.b16 %v984
        %v1148 = vunpack.c.h.b16 %v984
        %v1149 = vunpack.c.l.b16 %v985
        %v1150 = vunpack.c.h.b16 %v985
        %v1151 = vunpack.c.l.b16 %v986
        %v1152 = vunpack.c.h.b16 %v986
        %v1153 = vunpack.c.l.b16 %v987
        %v1154 = vunpack.c.h.b16 %v987
        %v1155 = vunpack.c.l.b16 %v988
        %v1156 = vunpack.c.h.b16 %v988
        %v1157 = vunpack.c.l.b16 %v989
        %v1158 = vunpack.c.h.b16 %v989
        %v1159 = vunpack.c.l.b16 %v990
        %v1160 = vunpack.c.h.b16 %v990
        %v1161 = vunpack.c.l.b16 %v991
        %v1162 = vunpack.c.h.b16 %v991
        %v1163 = vunpack.c.l.b16 %v992
        %v1164 = vunpack.c.h.b16 %v992
        %v1165 = vunpack.c.l.b16 %v993
        %v1166 = vunpack.c.h.b16 %v993
        %v1167 = vunpack.c.l.b16 %v994
        %v1168 = vunpack.c.h.b16 %v994
        %v1169 = vunpack.c.l.b16 %v995
        %v1170 = vunpack.c.h.b16 %v995
        %v1171 = vunpack.c.l.b16 %v996
        %v1172 = vunpack.c.h.b16 %v996
        %v1173 = vunpack.c.l.b16 %v997
        %v1174 = vunpack.c.h.b16 %v997
        %v1175 = vunpack.c.l.b16 %v998
        %v1176 = vunpack.c.h.b16 %v998
        %v1177 = vunpack.c.l.b16 %v999
        %v1178 = vunpack.c.h.b16 %v999
        %v1179 = vunpack.c.l.b16 %v1000
        %v1180 = vunpack.c.h.b16 %v1000
        %v1181 = vunpack.c.l.b16 %v1001
        %v1182 = vunpack.c.h.b16 %v1001
        %v1183 = vunpack.c.l.b16 %v1002
        %v1184 = vunpack.c.h.b16 %v1002
        %v1185 = vunpack.c.l.b16 %v1003
        %v1186 = vunpack.c.h.b16 %v1003
        %v1187 = vunpack.c.l.b16 %v1004
        %v1188 = vunpack.c.h.b16 %v1004
        %v1189 = vunpack.c.l.b16 %v1005
        %v1190 = vunpack.c.h.b16 %v1005
        %v1191 = vunpack.c.l.b16 %v1006
        %v1192 = vunpack.c.h.b16 %v1006
        %v1193 = vunpack.c.l.b16 %v1007
        %v1194 = vunpack.c.h.b16 %v1007
        %v1195 = vunpack.c.l.b16 %v1008
        %v1196 = vunpack.c.h.b16 %v1008
        %v1197 = vunpack.c.l.b16 %v1009
        %v1198 = vunpack.c.h.b16 %v1009
        %v1199 = vunpack.c.l.b16 %v1010
        %v1200 = vunpack.c.h.b16 %v1010
        %v1201 = vunpack.c.l.b16 %v1011
        %v1202 = vunpack.c.h.b16 %v1011
        %v1203 = vunpack.c.l.b16 %v1012
        %v1204 = vunpack.c.h.b16 %v1012
        %v1205 = vunpack.c.l.b16 %v1013
        %v1206 = vunpack.c.h.b16 %v1013
        %v1207 = vunpack.c.l.b16 %v1014
        %v1208 = vunpack.c.h.b16 %v1014
        %v1209 = vunpack.c.l.b16 %v1015
        %v1210 = vunpack.c.h.b16 %v1015
        %v1211 = vunpack.c.l.b16 %v1016
        %v1212 = vunpack.c.h.b16 %v1016
        %v1213 = vunpack.c.l.b16 %v1017
        %v1214 = vunpack.c.h.b16 %v1017
        %v1215 = vunpack.c.l.b16 %v1018
        %v1216 = vunpack.c.h.b16 %v1018
        %v1217 = vunpack.c.l.b16 %v1019
        %v1218 = vunpack.c.h.b16 %v1019
        %v1219 = vunpack.c.l.b16 %v1020
        %v1220 = vunpack.c.h.b16 %v1020
        %v1221 = vunpack.c.l.b16 %v1021
        %v1222 = vunpack.c.h.b16 %v1021
        %v1223 = vunpack.c.l.b16 %v1022
        %v1224 = vunpack.c.h.b16 %v1022
        %v1225 = vunpack.c.l.b16 %v1023
        %v1226 = vunpack.c.h.b16 %v1023
        %v1227 = vunpack.c.l.b16 %v1024
        %v1228 = vunpack.c.h.b16 %v1024
        %v1229 = vunpack.c.l.b16 %v1025
        %v1230 = vunpack.c.h.b16 %v1025
        %v1231 = vunpack.c.l.b16 %v1026
        %v1232 = vunpack.c.h.b16 %v1026
        %v1233 = vunpack.c.l.b16 %v1027
        %v1234 = vunpack.c.h.b16 %v1027
        %v1235 = vunpack.c.l.b16 %v1028
        %v1236 = vunpack.c.h.b16 %v1028
        %v1237 = vunpack.c.l.b16 %v1029
        %v1238 = vunpack.c.h.b16 %v1029
        %v1239 = vunpack.c.l.b16 %v1030
        %v1240 = vunpack.c.h.b16 %v1030
        %v1241 = vunpack.c.l.b16 %v1031
        %v1242 = vunpack.c.h.b16 %v1031
        %v1243 = vunpack.c.l.b16 %v1032
        %v1244 = vunpack.c.h.b16 %v1032
        %v1245 = vunpack.c.l.b16 %v1033
        %v1246 = vunpack.c.h.b16 %v1033
        %v1247 = vunpack.c.l.b16 %v1034
        %v1248 = vunpack.c.h.b16 %v1034
        %v1249 = vpack.c.b16 %v1125, %v1121
        %v1250 = vpack.c.b16 %v1126, %v1122
        %v1251 = vpack.c.b16 %v1127, %v1123
        %v1252 = vpack.c.b16 %v1128, %v1124
        %v1253 = vpack.c.b16 %v1133, %v1129
        %v1254 = vpack.c.b16 %v1134, %v1130
        %v1255 = vpack.c.b16 %v1135, %v1131
        %v1256 = vpack.c.b16 %v1136, %v1132
        %v1257 = vpack.c.b16 %v1141, %v1137
        %v1258 = vpack.c.b16 %v1142, %v1138
        %v1259 = vpack.c.b16 %v1143, %v1139
        %v1260 = vpack.c.b16 %v1144, %v1140
        %v1261 = vpack.c.b16 %v1149, %v1145
        %v1262 = vpack.c.b16 %v1150, %v1146
        %v1263 = vpack.c.b16 %v1151, %v1147
        %v1264 = vpack.c.b16 %v1152, %v1148
        %v1265 = vpack.c.b16 %v1157, %v1153
        %v1266 = vpack.c.b16 %v1158, %v1154
        %v1267 = vpack.c.b16 %v1159, %v1155
        %v1268 = vpack.c.b16 %v1160, %v1156
        %v1269 = vpack.c.b16 %v1165, %v1161
        %v1270 = vpack.c.b16 %v1166, %v1162
        %v1271 = vpack.c.b16 %v1167, %v1163
        %v1272 = vpack.c.b16 %v1168, %v1164
        %v1273 = vpack.c.b16 %v1173, %v1169
        %v1274 = vpack.c.b16 %v1174, %v1170
        %v1275 = vpack.c.b16 %v1175, %v1171
        %v1276 = vpack.c.b16 %v1176, %v1172
        %v1277 = vpack.c.b16 %v1181, %v1177
        %v1278 = vpack.c.b16 %v1182, %v1178
        %v1279 = vpack.c.b16 %v1183, %v1179
        %v1280 = vpack.c.b16 %v1184, %v1180
        %v1281 = vpack.c.b16 %v1189, %v1185
        %v1282 = vpack.c.b16 %v1190, %v1186
        %v1283 = vpack.c.b16 %v1191, %v1187
        %v1284 = vpack.c.b16 %v1192, %v1188
        %v1285 = vpack.c.b16 %v1197, %v1193
        %v1286 = vpack.c.b16 %v1198, %v1194
        %v1287 = vpack.c.b16 %v1199, %v1195
        %v1288 = vpack.c.b16 %v1200, %v1196
        %v1289 = vpack.c.b16 %v1205, %v1201
        %v1290 = vpack.c.b16 %v1206, %v1202
        %v1291 = vpack.c.b16 %v1207, %v1203
        %v1292 = vpack.c.b16 %v1208, %v1204
        %v1293 = vpack.c.b16 %v1213, %v1209
        %v1294 = vpack.c.b16 %v1214, %v1210
        %v1295 = vpack.c.b16 %v1215, %v1211
        %v1296 = vpack.c.b16 %v1216, %v1212
        %v1297 = vpack.c.b16 %v1221, %v1217
        %v1298 = vpack.c.b16 %v1222, %v1218
        %v1299 = vpack.c.b16 %v1223, %v1219
        %v1300 = vpack.c.b16 %v1224, %v1220
        %v1301 = vpack.c.b16 %v1229, %v1225
        %v1302 = vpack.c.b16 %v1230, %v1226
        %v1303 = vpack.c.b16 %v1231, %v1227
        %v1304 = vpack.c.b16 %v1232, %v1228
        %v1305 = vpack.c.b16 %v1237, %v1233
        %v1306 = vpack.c.b16 %v1238, %v1234
        %v1307 = vpack.c.b16 %v1239, %v1235
        %v1308 = vpack.c.b16 %v1240, %v1236
        %v1309 = vpack.c.b16 %v1245, %v1241
        %v1310 = vpack.c.b16 %v1246, %v1242
        %v1311 = vpack.c.b16 %v1247, %v1243
        %v1312 = vpack.c.b16 %v1248, %v1244
        %1377 = vmatprep.subr.bf16.mxu0 %v1278
        %1378 = vmatpush1.bf16.msra.mxu0 %v1277
        %1379 = vmatprep.subr.bf16.mxu0 %v1274
        %1380 = vmatpush1.bf16.msra.mxu0 %v1273
        %1381 = vmatprep.subr.bf16.mxu0 %v1270
        %1382 = vmatpush1.bf16.msra.mxu0 %v1269
        %1383 = vmatprep.subr.bf16.mxu0 %v1266
        %1384 = vmatpush1.bf16.msra.mxu0 %v1265
        %1385 = vmatprep.subr.bf16.mxu0 %v1262
        %1386 = vmatpush1.bf16.msra.mxu0 %v1261
        %1387 = vmatprep.subr.bf16.mxu0 %v1258
        %1388 = vmatpush1.bf16.msra.mxu0 %v1257
        %1389 = vmatprep.subr.bf16.mxu0 %v1254
        %1390 = vmatpush1.bf16.msra.mxu0 %v1253
        %1391 = vmatprep.subr.bf16.mxu0 %v1250
        %1392 = vmatpush1.bf16.msra.mxu0 %v1249
        %1393 = vmatprep.subr.bf16.mxu0 %v1310
        %1394 = vmatpush2.bf16.msra.mxu0 %v1309
        %1395 = vmatprep.subr.bf16.mxu0 %v1306
        %1396 = vmatpush2.bf16.msra.mxu0 %v1305
        %1397 = vmatprep.subr.bf16.mxu0 %v1302
        %1398 = vmatpush2.bf16.msra.mxu0 %v1301
        %1399 = vmatprep.subr.bf16.mxu0 %v1298
        %1400 = vmatpush2.bf16.msra.mxu0 %v1297
        %1401 = vmatprep.subr.bf16.mxu0 %v1294
        %1402 = vmatpush2.bf16.msra.mxu0 %v1293
        %1403 = vmatprep.subr.bf16.mxu0 %v1290
        %1404 = vmatpush2.bf16.msra.mxu0 %v1289
        %1405 = vmatprep.subr.bf16.mxu0 %v1286
        %1406 = vmatpush2.bf16.msra.mxu0 %v1285
        %1407 = vmatprep.subr.bf16.mxu0 %v1282
        %1408 = vmatpush2.bf16.msra.mxu0 %v1281
        %1409 = vmatprep.mubr.bf16.mxu0 %v956
        %1410 = vmatmul.mubr.bf16.gmra.mxu0 %v955
        %v1411 = vpop.f32.mrf.mxu0
        %v1412 = vadd.f32 %v1040, %v1411
        %v1413 = vpop.f32.mrf.mxu0
        %v1414 = vadd.f32 %v1044, %v1413
        %v1415 = vpop.f32.mrf.mxu0
        %v1416 = vadd.f32 %v1040, %v1415
        %v1417 = vpop.f32.mrf.mxu0
        %v1418 = vadd.f32 %v1044, %v1417
        %1419 = vmatprep.mubr.bf16.mxu0 %v958
        %1420 = vmatmul.mubr.bf16.gmra.mxu0 %v957
        %v1421 = vpop.f32.mrf.mxu0
        %v1422 = vadd.f32 %v1040, %v1421
        %v1423 = vpop.f32.mrf.mxu0
        %v1424 = vadd.f32 %v1044, %v1423
        %v1425 = vpop.f32.mrf.mxu0
        %v1426 = vadd.f32 %v1040, %v1425
        %v1427 = vpop.f32.mrf.mxu0
        %v1428 = vadd.f32 %v1044, %v1427
        %1429 = vmatprep.mubr.bf16.mxu0 %v960
        %1430 = vmatmul.mubr.bf16.gmra.mxu0 %v959
        %v1431 = vpop.f32.mrf.mxu0
        %v1432 = vadd.f32 %v1040, %v1431
        %v1433 = vpop.f32.mrf.mxu0
        %v1434 = vadd.f32 %v1044, %v1433
        %v1435 = vpop.f32.mrf.mxu0
        %v1436 = vadd.f32 %v1040, %v1435
        %v1437 = vpop.f32.mrf.mxu0
        %v1438 = vadd.f32 %v1044, %v1437
        %1439 = vmatprep.mubr.bf16.mxu0 %v962
        %1440 = vmatmul.mubr.bf16.gmra.mxu0 %v961
        %v1441 = vpop.f32.mrf.mxu0
        %v1442 = vadd.f32 %v1040, %v1441
        %v1443 = vpop.f32.mrf.mxu0
        %v1444 = vadd.f32 %v1044, %v1443
        %v1445 = vpop.f32.mrf.mxu0
        %v1446 = vadd.f32 %v1040, %v1445
        %v1447 = vpop.f32.mrf.mxu0
        %v1448 = vadd.f32 %v1044, %v1447
        %1449 = vmatprep.mubr.bf16.mxu0 %v964
        %1450 = vmatmul.mubr.bf16.gmra.mxu0 %v963
        %v1451 = vpop.f32.mrf.mxu0
        %v1452 = vadd.f32 %v1040, %v1451
        %v1453 = vpop.f32.mrf.mxu0
        %v1454 = vadd.f32 %v1044, %v1453
        %v1455 = vpop.f32.mrf.mxu0
        %v1456 = vadd.f32 %v1040, %v1455
        %v1457 = vpop.f32.mrf.mxu0
        %v1458 = vadd.f32 %v1044, %v1457
        %1459 = vmatprep.mubr.bf16.mxu0 %v966
        %1460 = vmatmul.mubr.bf16.gmra.mxu0 %v965
        %v1461 = vpop.f32.mrf.mxu0
        %v1462 = vadd.f32 %v1040, %v1461
        %v1463 = vpop.f32.mrf.mxu0
        %v1464 = vadd.f32 %v1044, %v1463
        %v1465 = vpop.f32.mrf.mxu0
        %v1466 = vadd.f32 %v1040, %v1465
        %v1467 = vpop.f32.mrf.mxu0
        %v1468 = vadd.f32 %v1044, %v1467
        %1469 = vmatprep.mubr.bf16.mxu0 %v968
        %1470 = vmatmul.mubr.bf16.gmra.mxu0 %v967
        %v1471 = vpop.f32.mrf.mxu0
        %v1472 = vadd.f32 %v1040, %v1471
        %v1473 = vpop.f32.mrf.mxu0
        %v1474 = vadd.f32 %v1044, %v1473
        %v1475 = vpop.f32.mrf.mxu0
        %v1476 = vadd.f32 %v1040, %v1475
        %v1477 = vpop.f32.mrf.mxu0
        %v1478 = vadd.f32 %v1044, %v1477
        %1479 = vmatprep.mubr.bf16.mxu0 %v970
        %1480 = vmatmul.mubr.bf16.gmra.mxu0 %v969
        %v1481 = vpop.f32.mrf.mxu0
        %v1482 = vadd.f32 %v1040, %v1481
        %v1483 = vpop.f32.mrf.mxu0
        %v1484 = vadd.f32 %v1044, %v1483
        %v1485 = vpop.f32.mrf.mxu0
        %v1486 = vadd.f32 %v1040, %v1485
        %v1487 = vpop.f32.mrf.mxu0
        %v1488 = vadd.f32 %v1044, %v1487
        %1489 = vdwg.mxu0
        %1490 = vmatprep.subr.bf16.mxu0 %v1280
        %1491 = vmatpush1.bf16.msra.mxu0 %v1279
        %1492 = vmatprep.subr.bf16.mxu0 %v1276
        %1493 = vmatpush1.bf16.msra.mxu0 %v1275
        %1494 = vmatprep.subr.bf16.mxu0 %v1272
        %1495 = vmatpush1.bf16.msra.mxu0 %v1271
        %1496 = vmatprep.subr.bf16.mxu0 %v1268
        %1497 = vmatpush1.bf16.msra.mxu0 %v1267
        %1498 = vmatprep.subr.bf16.mxu0 %v1264
        %1499 = vmatpush1.bf16.msra.mxu0 %v1263
        %1500 = vmatprep.subr.bf16.mxu0 %v1260
        %1501 = vmatpush1.bf16.msra.mxu0 %v1259
        %1502 = vmatprep.subr.bf16.mxu0 %v1256
        %1503 = vmatpush1.bf16.msra.mxu0 %v1255
        %1504 = vmatprep.subr.bf16.mxu0 %v1252
        %1505 = vmatpush1.bf16.msra.mxu0 %v1251
        %1506 = vmatprep.subr.bf16.mxu0 %v1312
        %1507 = vmatpush2.bf16.msra.mxu0 %v1311
        %1508 = vmatprep.subr.bf16.mxu0 %v1308
        %1509 = vmatpush2.bf16.msra.mxu0 %v1307
        %1510 = vmatprep.subr.bf16.mxu0 %v1304
        %1511 = vmatpush2.bf16.msra.mxu0 %v1303
        %1512 = vmatprep.subr.bf16.mxu0 %v1300
        %1513 = vmatpush2.bf16.msra.mxu0 %v1299
        %1514 = vmatprep.subr.bf16.mxu0 %v1296
        %1515 = vmatpush2.bf16.msra.mxu0 %v1295
        %1516 = vmatprep.subr.bf16.mxu0 %v1292
        %1517 = vmatpush2.bf16.msra.mxu0 %v1291
        %1518 = vmatprep.subr.bf16.mxu0 %v1288
        %1519 = vmatpush2.bf16.msra.mxu0 %v1287
        %1520 = vmatprep.subr.bf16.mxu0 %v1284
        %1521 = vmatpush2.bf16.msra.mxu0 %v1283
        %1522 = vmatprep.mubr.bf16.mxu0 %v956
        %1523 = vmatmul.mubr.bf16.gmra.mxu0 %v955
        %v1524 = vpop.f32.mrf.mxu0
        %v1525 = vadd.f32 %v1048, %v1524
        %v1526 = vpop.f32.mrf.mxu0
        %v1527 = vadd.f32 %v1052, %v1526
        %v1528 = vpop.f32.mrf.mxu0
        %v1529 = vadd.f32 %v1048, %v1528
        %v1530 = vpop.f32.mrf.mxu0
        %v1531 = vadd.f32 %v1052, %v1530
        %1532 = vmatprep.mubr.bf16.mxu0 %v958
        %1533 = vmatmul.mubr.bf16.gmra.mxu0 %v957
        %v1534 = vpop.f32.mrf.mxu0
        %v1535 = vadd.f32 %v1048, %v1534
        %v1536 = vpop.f32.mrf.mxu0
        %v1537 = vadd.f32 %v1052, %v1536
        %v1538 = vpop.f32.mrf.mxu0
        %v1539 = vadd.f32 %v1048, %v1538
        %v1540 = vpop.f32.mrf.mxu0
        %v1541 = vadd.f32 %v1052, %v1540
        %1542 = vmatprep.mubr.bf16.mxu0 %v960
        %1543 = vmatmul.mubr.bf16.gmra.mxu0 %v959
        %v1544 = vpop.f32.mrf.mxu0
        %v1545 = vadd.f32 %v1048, %v1544
        %v1546 = vpop.f32.mrf.mxu0
        %v1547 = vadd.f32 %v1052, %v1546
        %v1548 = vpop.f32.mrf.mxu0
        %v1549 = vadd.f32 %v1048, %v1548
        %v1550 = vpop.f32.mrf.mxu0
        %v1551 = vadd.f32 %v1052, %v1550
        %1552 = vmatprep.mubr.bf16.mxu0 %v962
        %1553 = vmatmul.mubr.bf16.gmra.mxu0 %v961
        %v1554 = vpop.f32.mrf.mxu0
        %v1555 = vadd.f32 %v1048, %v1554
        %v1556 = vpop.f32.mrf.mxu0
        %v1557 = vadd.f32 %v1052, %v1556
        %v1558 = vpop.f32.mrf.mxu0
        %v1559 = vadd.f32 %v1048, %v1558
        %v1560 = vpop.f32.mrf.mxu0
        %v1561 = vadd.f32 %v1052, %v1560
        %1562 = vmatprep.mubr.bf16.mxu0 %v964
        %1563 = vmatmul.mubr.bf16.gmra.mxu0 %v963
        %v1564 = vpop.f32.mrf.mxu0
        %v1565 = vadd.f32 %v1048, %v1564
        %v1566 = vpop.f32.mrf.mxu0
        %v1567 = vadd.f32 %v1052, %v1566
        %v1568 = vpop.f32.mrf.mxu0
        %v1569 = vadd.f32 %v1048, %v1568
        %v1570 = vpop.f32.mrf.mxu0
        %v1571 = vadd.f32 %v1052, %v1570
        %1572 = vmatprep.mubr.bf16.mxu0 %v966
        %1573 = vmatmul.mubr.bf16.gmra.mxu0 %v965
        %v1574 = vpop.f32.mrf.mxu0
        %v1575 = vadd.f32 %v1048, %v1574
        %v1576 = vpop.f32.mrf.mxu0
        %v1577 = vadd.f32 %v1052, %v1576
        %v1578 = vpop.f32.mrf.mxu0
        %v1579 = vadd.f32 %v1048, %v1578
        %v1580 = vpop.f32.mrf.mxu0
        %v1581 = vadd.f32 %v1052, %v1580
        %1582 = vmatprep.mubr.bf16.mxu0 %v968
        %1583 = vmatmul.mubr.bf16.gmra.mxu0 %v967
        %v1584 = vpop.f32.mrf.mxu0
        %v1585 = vadd.f32 %v1048, %v1584
        %v1586 = vpop.f32.mrf.mxu0
        %v1587 = vadd.f32 %v1052, %v1586
        %v1588 = vpop.f32.mrf.mxu0
        %v1589 = vadd.f32 %v1048, %v1588
        %v1590 = vpop.f32.mrf.mxu0
        %v1591 = vadd.f32 %v1052, %v1590
        %1592 = vmatprep.mubr.bf16.mxu0 %v970
        %1593 = vmatmul.mubr.bf16.gmra.mxu0 %v969
        %v1594 = vpop.f32.mrf.mxu0
        %v1595 = vadd.f32 %v1048, %v1594
        %v1596 = vpop.f32.mrf.mxu0
        %v1597 = vadd.f32 %v1052, %v1596
        %v1598 = vpop.f32.mrf.mxu0
        %v1599 = vadd.f32 %v1048, %v1598
        %v1600 = vpop.f32.mrf.mxu0
        %v1601 = vadd.f32 %v1052, %v1600
        %1602 = vdwg.mxu0
        %vm1603 = vcmp.gt.f32.partialorder %v1412, 0.0
        %vm1604 = vcmp.gt.f32.partialorder %v1414, 0.0
        %vm1605 = vcmp.gt.f32.partialorder %v1525, 0.0
        %vm1606 = vcmp.gt.f32.partialorder %v1527, 0.0
        %vm1607 = vcmp.gt.f32.partialorder %v1416, 0.0
        %vm1608 = vcmp.gt.f32.partialorder %v1418, 0.0
        %vm1609 = vcmp.gt.f32.partialorder %v1529, 0.0
        %vm1610 = vcmp.gt.f32.partialorder %v1531, 0.0
        %vm1611 = vcmp.gt.f32.partialorder %v1422, 0.0
        %vm1612 = vcmp.gt.f32.partialorder %v1424, 0.0
        %vm1613 = vcmp.gt.f32.partialorder %v1535, 0.0
        %vm1614 = vcmp.gt.f32.partialorder %v1537, 0.0
        %vm1615 = vcmp.gt.f32.partialorder %v1426, 0.0
        %vm1616 = vcmp.gt.f32.partialorder %v1428, 0.0
        %vm1617 = vcmp.gt.f32.partialorder %v1539, 0.0
        %vm1618 = vcmp.gt.f32.partialorder %v1541, 0.0
        %vm1619 = vcmp.gt.f32.partialorder %v1432, 0.0
        %vm1620 = vcmp.gt.f32.partialorder %v1434, 0.0
        %vm1621 = vcmp.gt.f32.partialorder %v1545, 0.0
        %vm1622 = vcmp.gt.f32.partialorder %v1547, 0.0
        %vm1623 = vcmp.gt.f32.partialorder %v1436, 0.0
        %vm1624 = vcmp.gt.f32.partialorder %v1438, 0.0
        %vm1625 = vcmp.gt.f32.partialorder %v1549, 0.0
        %vm1626 = vcmp.gt.f32.partialorder %v1551, 0.0
        %vm1627 = vcmp.gt.f32.partialorder %v1442, 0.0
        %vm1628 = vcmp.gt.f32.partialorder %v1444, 0.0
        %vm1629 = vcmp.gt.f32.partialorder %v1555, 0.0
        %vm1630 = vcmp.gt.f32.partialorder %v1557, 0.0
        %vm1631 = vcmp.gt.f32.partialorder %v1446, 0.0
        %vm1632 = vcmp.gt.f32.partialorder %v1448, 0.0
        %vm1633 = vcmp.gt.f32.partialorder %v1559, 0.0
        %vm1634 = vcmp.gt.f32.partialorder %v1561, 0.0
        %vm1635 = vcmp.gt.f32.partialorder %v1452, 0.0
        %vm1636 = vcmp.gt.f32.partialorder %v1454, 0.0
        %vm1637 = vcmp.gt.f32.partialorder %v1565, 0.0
        %vm1638 = vcmp.gt.f32.partialorder %v1567, 0.0
        %vm1639 = vcmp.gt.f32.partialorder %v1456, 0.0
        %vm1640 = vcmp.gt.f32.partialorder %v1458, 0.0
        %vm1641 = vcmp.gt.f32.partialorder %v1569, 0.0
        %vm1642 = vcmp.gt.f32.partialorder %v1571, 0.0
        %vm1643 = vcmp.gt.f32.partialorder %v1462, 0.0
        %vm1644 = vcmp.gt.f32.partialorder %v1464, 0.0
        %vm1645 = vcmp.gt.f32.partialorder %v1575, 0.0
        %vm1646 = vcmp.gt.f32.partialorder %v1577, 0.0
        %vm1647 = vcmp.gt.f32.partialorder %v1466, 0.0
        %vm1648 = vcmp.gt.f32.partialorder %v1468, 0.0
        %vm1649 = vcmp.gt.f32.partialorder %v1579, 0.0
        %vm1650 = vcmp.gt.f32.partialorder %v1581, 0.0
        %vm1651 = vcmp.gt.f32.partialorder %v1472, 0.0
        %vm1652 = vcmp.gt.f32.partialorder %v1474, 0.0
        %vm1653 = vcmp.gt.f32.partialorder %v1585, 0.0
        %vm1654 = vcmp.gt.f32.partialorder %v1587, 0.0
        %vm1655 = vcmp.gt.f32.partialorder %v1476, 0.0
        %vm1656 = vcmp.gt.f32.partialorder %v1478, 0.0
        %vm1657 = vcmp.gt.f32.partialorder %v1589, 0.0
        %vm1658 = vcmp.gt.f32.partialorder %v1591, 0.0
        %vm1659 = vcmp.gt.f32.partialorder %v1482, 0.0
        %vm1660 = vcmp.gt.f32.partialorder %v1484, 0.0
        %vm1661 = vcmp.gt.f32.partialorder %v1595, 0.0
        %vm1662 = vcmp.gt.f32.partialorder %v1597, 0.0
        %vm1663 = vcmp.gt.f32.partialorder %v1486, 0.0
        %vm1664 = vcmp.gt.f32.partialorder %v1488, 0.0
        %vm1665 = vcmp.gt.f32.partialorder %v1599, 0.0
        %vm1666 = vcmp.gt.f32.partialorder %v1601, 0.0
        %v1667 = vmul.f32 %v1412, 0.2
        %v1668 = vmul.f32 %v1414, 0.2
        %v1669 = vmul.f32 %v1525, 0.2
        %v1670 = vmul.f32 %v1527, 0.2
        %v1671 = vmul.f32 %v1416, 0.2
        %v1672 = vmul.f32 %v1418, 0.2
        %v1673 = vmul.f32 %v1529, 0.2
        %v1674 = vmul.f32 %v1531, 0.2
        %v1675 = vmul.f32 %v1422, 0.2
        %v1676 = vmul.f32 %v1424, 0.2
        %v1677 = vmul.f32 %v1535, 0.2
        %v1678 = vmul.f32 %v1537, 0.2
        %v1679 = vmul.f32 %v1426, 0.2
        %v1680 = vmul.f32 %v1428, 0.2
        %v1681 = vmul.f32 %v1539, 0.2
        %v1682 = vmul.f32 %v1541, 0.2
        %v1683 = vmul.f32 %v1432, 0.2
        %v1684 = vmul.f32 %v1434, 0.2
        %v1685 = vmul.f32 %v1545, 0.2
        %v1686 = vmul.f32 %v1547, 0.2
        %v1687 = vmul.f32 %v1436, 0.2
        %v1688 = vmul.f32 %v1438, 0.2
        %v1689 = vmul.f32 %v1549, 0.2
        %v1690 = vmul.f32 %v1551, 0.2
        %v1691 = vmul.f32 %v1442, 0.2
        %v1692 = vmul.f32 %v1444, 0.2
        %v1693 = vmul.f32 %v1555, 0.2
        %v1694 = vmul.f32 %v1557, 0.2
        %v1695 = vmul.f32 %v1446, 0.2
        %v1696 = vmul.f32 %v1448, 0.2
        %v1697 = vmul.f32 %v1559, 0.2
        %v1698 = vmul.f32 %v1561, 0.2
        %v1699 = vmul.f32 %v1452, 0.2
        %v1700 = vmul.f32 %v1454, 0.2
        %v1701 = vmul.f32 %v1565, 0.2
        %v1702 = vmul.f32 %v1567, 0.2
        %v1703 = vmul.f32 %v1456, 0.2
        %v1704 = vmul.f32 %v1458, 0.2
        %v1705 = vmul.f32 %v1569, 0.2
        %v1706 = vmul.f32 %v1571, 0.2
        %v1707 = vmul.f32 %v1462, 0.2
        %v1708 = vmul.f32 %v1464, 0.2
        %v1709 = vmul.f32 %v1575, 0.2
        %v1710 = vmul.f32 %v1577, 0.2
        %v1711 = vmul.f32 %v1466, 0.2
        %v1712 = vmul.f32 %v1468, 0.2
        %v1713 = vmul.f32 %v1579, 0.2
        %v1714 = vmul.f32 %v1581, 0.2
        %v1715 = vmul.f32 %v1472, 0.2
        %v1716 = vmul.f32 %v1474, 0.2
        %v1717 = vmul.f32 %v1585, 0.2
        %v1718 = vmul.f32 %v1587, 0.2
        %v1719 = vmul.f32 %v1476, 0.2
        %v1720 = vmul.f32 %v1478, 0.2
        %v1721 = vmul.f32 %v1589, 0.2
        %v1722 = vmul.f32 %v1591, 0.2
        %v1723 = vmul.f32 %v1482, 0.2
        %v1724 = vmul.f32 %v1484, 0.2
        %v1725 = vmul.f32 %v1595, 0.2
        %v1726 = vmul.f32 %v1597, 0.2
        %v1727 = vmul.f32 %v1486, 0.2
        %v1728 = vmul.f32 %v1488, 0.2
        %v1729 = vmul.f32 %v1599, 0.2
        %v1730 = vmul.f32 %v1601, 0.2
        %v1731 = vsel %vm1603, %v1412, %v1667
        %v1732 = vsel %vm1604, %v1414, %v1668
        %v1733 = vsel %vm1605, %v1525, %v1669
        %v1734 = vsel %vm1606, %v1527, %v1670
        %v1735 = vsel %vm1607, %v1416, %v1671
        %v1736 = vsel %vm1608, %v1418, %v1672
        %v1737 = vsel %vm1609, %v1529, %v1673
        %v1738 = vsel %vm1610, %v1531, %v1674
        %v1739 = vsel %vm1611, %v1422, %v1675
        %v1740 = vsel %vm1612, %v1424, %v1676
        %v1741 = vsel %vm1613, %v1535, %v1677
        %v1742 = vsel %vm1614, %v1537, %v1678
        %v1743 = vsel %vm1615, %v1426, %v1679
        %v1744 = vsel %vm1616, %v1428, %v1680
        %v1745 = vsel %vm1617, %v1539, %v1681
        %v1746 = vsel %vm1618, %v1541, %v1682
        %v1747 = vsel %vm1619, %v1432, %v1683
        %v1748 = vsel %vm1620, %v1434, %v1684
        %v1749 = vsel %vm1621, %v1545, %v1685
        %v1750 = vsel %vm1622, %v1547, %v1686
        %v1751 = vsel %vm1623, %v1436, %v1687
        %v1752 = vsel %vm1624, %v1438, %v1688
        %v1753 = vsel %vm1625, %v1549, %v1689
        %v1754 = vsel %vm1626, %v1551, %v1690
        %v1755 = vsel %vm1627, %v1442, %v1691
        %v1756 = vsel %vm1628, %v1444, %v1692
        %v1757 = vsel %vm1629, %v1555, %v1693
        %v1758 = vsel %vm1630, %v1557, %v1694
        %v1759 = vsel %vm1631, %v1446, %v1695
        %v1760 = vsel %vm1632, %v1448, %v1696
        %v1761 = vsel %vm1633, %v1559, %v1697
        %v1762 = vsel %vm1634, %v1561, %v1698
        %v1763 = vsel %vm1635, %v1452, %v1699
        %v1764 = vsel %vm1636, %v1454, %v1700
        %v1765 = vsel %vm1637, %v1565, %v1701
        %v1766 = vsel %vm1638, %v1567, %v1702
        %v1767 = vsel %vm1639, %v1456, %v1703
        %v1768 = vsel %vm1640, %v1458, %v1704
        %v1769 = vsel %vm1641, %v1569, %v1705
        %v1770 = vsel %vm1642, %v1571, %v1706
        %v1771 = vsel %vm1643, %v1462, %v1707
        %v1772 = vsel %vm1644, %v1464, %v1708
        %v1773 = vsel %vm1645, %v1575, %v1709
        %v1774 = vsel %vm1646, %v1577, %v1710
        %v1775 = vsel %vm1647, %v1466, %v1711
        %v1776 = vsel %vm1648, %v1468, %v1712
        %v1777 = vsel %vm1649, %v1579, %v1713
        %v1778 = vsel %vm1650, %v1581, %v1714
        %v1779 = vsel %vm1651, %v1472, %v1715
        %v1780 = vsel %vm1652, %v1474, %v1716
        %v1781 = vsel %vm1653, %v1585, %v1717
        %v1782 = vsel %vm1654, %v1587, %v1718
        %v1783 = vsel %vm1655, %v1476, %v1719
        %v1784 = vsel %vm1656, %v1478, %v1720
        %v1785 = vsel %vm1657, %v1589, %v1721
        %v1786 = vsel %vm1658, %v1591, %v1722
        %v1787 = vsel %vm1659, %v1482, %v1723
        %v1788 = vsel %vm1660, %v1484, %v1724
        %v1789 = vsel %vm1661, %v1595, %v1725
        %v1790 = vsel %vm1662, %v1597, %v1726
        %v1791 = vsel %vm1663, %v1486, %v1727
        %v1792 = vsel %vm1664, %v1488, %v1728
        %v1793 = vsel %vm1665, %v1599, %v1729
        %v1794 = vsel %vm1666, %v1601, %v1730
        %v1795 = vpack.c.bf16 %v1735, %v1731
        %v1796 = vpack.c.bf16 %v1736, %v1732
        %v1797 = vpack.c.bf16 %v1737, %v1733
        %v1798 = vpack.c.bf16 %v1738, %v1734
        %v1799 = vpack.c.bf16 %v1743, %v1739
        %v1800 = vpack.c.bf16 %v1744, %v1740
        %v1801 = vpack.c.bf16 %v1745, %v1741
        %v1802 = vpack.c.bf16 %v1746, %v1742
        %v1803 = vpack.c.bf16 %v1751, %v1747
        %v1804 = vpack.c.bf16 %v1752, %v1748
        %v1805 = vpack.c.bf16 %v1753, %v1749
        %v1806 = vpack.c.bf16 %v1754, %v1750
        %v1807 = vpack.c.bf16 %v1759, %v1755
        %v1808 = vpack.c.bf16 %v1760, %v1756
        %v1809 = vpack.c.bf16 %v1761, %v1757
        %v1810 = vpack.c.bf16 %v1762, %v1758
        %v1811 = vpack.c.bf16 %v1767, %v1763
        %v1812 = vpack.c.bf16 %v1768, %v1764
        %v1813 = vpack.c.bf16 %v1769, %v1765
        %v1814 = vpack.c.bf16 %v1770, %v1766
        %v1815 = vpack.c.bf16 %v1775, %v1771
        %v1816 = vpack.c.bf16 %v1776, %v1772
        %v1817 = vpack.c.bf16 %v1777, %v1773
        %v1818 = vpack.c.bf16 %v1778, %v1774
        %v1819 = vpack.c.bf16 %v1783, %v1779
        %v1820 = vpack.c.bf16 %v1784, %v1780
        %v1821 = vpack.c.bf16 %v1785, %v1781
        %v1822 = vpack.c.bf16 %v1786, %v1782
        %v1823 = vpack.c.bf16 %v1791, %v1787
        %v1824 = vpack.c.bf16 %v1792, %v1788
        %v1825 = vpack.c.bf16 %v1793, %v1789
        %v1826 = vpack.c.bf16 %v1794, %v1790
        %v1827 = vld [vmem:[%s7] sm:$0xf]
        %v1828 = vld [vmem:[%s7 + $0x4] sm:$0xf]
        %v1829 = vld [vmem:[%s7 + $0x8] sm:$0xf]
        %v1830 = vld [vmem:[%s7 + $0xc] sm:$0xf]
        %v1831 = vld [vmem:[%s7 + $0x10] sm:$0xf]
        %v1832 = vld [vmem:[%s7 + $0x14] sm:$0xf]
        %v1833 = vld [vmem:[%s7 + $0x18] sm:$0xf]
        %v1834 = vld [vmem:[%s7 + $0x1c] sm:$0xf]
        %v1835 = vld [vmem:[%s7 + $0x20] sm:$0xf]
        %v1836 = vld [vmem:[%s7 + $0x24] sm:$0xf]
        %v1837 = vld [vmem:[%s7 + $0x28] sm:$0xf]
        %v1838 = vld [vmem:[%s7 + $0x2c] sm:$0xf]
        %v1839 = vld [vmem:[%s7 + $0x30] sm:$0xf]
        %v1840 = vld [vmem:[%s7 + $0x34] sm:$0xf]
        %v1841 = vld [vmem:[%s7 + $0x38] sm:$0xf]
        %v1842 = vld [vmem:[%s7 + $0x3c] sm:$0xf]
        %v1843 = vld [vmem:[%s7 + $0x40] sm:$0xf]
        %v1844 = vld [vmem:[%s7 + $0x44] sm:$0xf]
        %v1845 = vld [vmem:[%s7 + $0x48] sm:$0xf]
        %v1846 = vld [vmem:[%s7 + $0x4c] sm:$0xf]
        %v1847 = vld [vmem:[%s7 + $0x50] sm:$0xf]
        %v1848 = vld [vmem:[%s7 + $0x54] sm:$0xf]
        %v1849 = vld [vmem:[%s7 + $0x58] sm:$0xf]
        %v1850 = vld [vmem:[%s7 + $0x5c] sm:$0xf]
        %v1851 = vld [vmem:[%s7 + $0x60] sm:$0xf]
        %v1852 = vld [vmem:[%s7 + $0x64] sm:$0xf]
        %v1853 = vld [vmem:[%s7 + $0x68] sm:$0xf]
        %v1854 = vld [vmem:[%s7 + $0x6c] sm:$0xf]
        %v1855 = vld [vmem:[%s7 + $0x70] sm:$0xf]
        %v1856 = vld [vmem:[%s7 + $0x74] sm:$0xf]
        %v1857 = vld [vmem:[%s7 + $0x78] sm:$0xf]
        %v1858 = vld [vmem:[%s7 + $0x7c] sm:$0xf]
        %v1859 = vld [vmem:[%s7 + $0x80] sm:$0xf]
        %v1860 = vld [vmem:[%s7 + $0x84] sm:$0xf]
        %v1861 = vld [vmem:[%s7 + $0x88] sm:$0xf]
        %v1862 = vld [vmem:[%s7 + $0x8c] sm:$0xf]
        %v1863 = vld [vmem:[%s7 + $0x90] sm:$0xf]
        %v1864 = vld [vmem:[%s7 + $0x94] sm:$0xf]
        %v1865 = vld [vmem:[%s7 + $0x98] sm:$0xf]
        %v1866 = vld [vmem:[%s7 + $0x9c] sm:$0xf]
        %v1867 = vld [vmem:[%s7 + $0xa0] sm:$0xf]
        %v1868 = vld [vmem:[%s7 + $0xa4] sm:$0xf]
        %v1869 = vld [vmem:[%s7 + $0xa8] sm:$0xf]
        %v1870 = vld [vmem:[%s7 + $0xac] sm:$0xf]
        %v1871 = vld [vmem:[%s7 + $0xb0] sm:$0xf]
        %v1872 = vld [vmem:[%s7 + $0xb4] sm:$0xf]
        %v1873 = vld [vmem:[%s7 + $0xb8] sm:$0xf]
        %v1874 = vld [vmem:[%s7 + $0xbc] sm:$0xf]
        %v1875 = vld [vmem:[%s7 + $0xc0] sm:$0xf]
        %v1876 = vld [vmem:[%s7 + $0xc4] sm:$0xf]
        %v1877 = vld [vmem:[%s7 + $0xc8] sm:$0xf]
        %v1878 = vld [vmem:[%s7 + $0xcc] sm:$0xf]
        %v1879 = vld [vmem:[%s7 + $0xd0] sm:$0xf]
        %v1880 = vld [vmem:[%s7 + $0xd4] sm:$0xf]
        %v1881 = vld [vmem:[%s7 + $0xd8] sm:$0xf]
        %v1882 = vld [vmem:[%s7 + $0xdc] sm:$0xf]
        %v1883 = vld [vmem:[%s7 + $0xe0] sm:$0xf]
        %v1884 = vld [vmem:[%s7 + $0xe4] sm:$0xf]
        %v1885 = vld [vmem:[%s7 + $0xe8] sm:$0xf]
        %v1886 = vld [vmem:[%s7 + $0xec] sm:$0xf]
        %v1887 = vld [vmem:[%s7 + $0xf0] sm:$0xf]
        %v1888 = vld [vmem:[%s7 + $0xf4] sm:$0xf]
        %v1889 = vld [vmem:[%s7 + $0xf8] sm:$0xf]
        %v1890 = vld [vmem:[%s7 + $0xfc] sm:$0xf]
        %v1891 = vld [vmem:[%s8] sm:$0x1]
        %v1893 = vlaneseq
        %v1894 = vshrl.u32 %v1893, 7
        %v1895 = vsub.s32 0, %v1894
        %v1896 = vrot.slane %v1891, %v1895
        %v1962 = vunpack.c.l.b16 %v1827
        %v1963 = vunpack.c.l.b16 %v1828
        %v1964 = vunpack.c.l.b16 %v1829
        %v1965 = vunpack.c.l.b16 %v1830
        %v1966 = vunpack.c.l.b16 %v1831
        %v1967 = vunpack.c.l.b16 %v1832
        %v1968 = vunpack.c.l.b16 %v1833
        %v1969 = vunpack.c.l.b16 %v1834
        %v1970 = vunpack.c.l.b16 %v1835
        %v1971 = vunpack.c.l.b16 %v1836
        %v1972 = vunpack.c.l.b16 %v1837
        %v1973 = vunpack.c.l.b16 %v1838
        %v1974 = vunpack.c.l.b16 %v1839
        %v1975 = vunpack.c.l.b16 %v1840
        %v1976 = vunpack.c.l.b16 %v1841
        %v1977 = vunpack.c.l.b16 %v1842
        %v1978 = vunpack.c.l.b16 %v1843
        %v1979 = vunpack.c.l.b16 %v1844
        %v1980 = vunpack.c.l.b16 %v1845
        %v1981 = vunpack.c.l.b16 %v1846
        %v1982 = vunpack.c.l.b16 %v1847
        %v1983 = vunpack.c.l.b16 %v1848
        %v1984 = vunpack.c.l.b16 %v1849
        %v1985 = vunpack.c.l.b16 %v1850
        %v1986 = vunpack.c.l.b16 %v1851
        %v1987 = vunpack.c.l.b16 %v1852
        %v1988 = vunpack.c.l.b16 %v1853
        %v1989 = vunpack.c.l.b16 %v1854
        %v1990 = vunpack.c.l.b16 %v1855
        %v1991 = vunpack.c.l.b16 %v1856
        %v1992 = vunpack.c.l.b16 %v1857
        %v1993 = vunpack.c.l.b16 %v1858
        %v1994 = vunpack.c.l.b16 %v1859
        %v1995 = vunpack.c.l.b16 %v1860
        %v1996 = vunpack.c.l.b16 %v1861
        %v1997 = vunpack.c.l.b16 %v1862
        %v1998 = vunpack.c.l.b16 %v1863
        %v1999 = vunpack.c.l.b16 %v1864
        %v2000 = vunpack.c.l.b16 %v1865
        %v2001 = vunpack.c.l.b16 %v1866
        %v2002 = vunpack.c.l.b16 %v1867
        %v2003 = vunpack.c.l.b16 %v1868
        %v2004 = vunpack.c.l.b16 %v1869
        %v2005 = vunpack.c.l.b16 %v1870
        %v2006 = vunpack.c.l.b16 %v1871
        %v2007 = vunpack.c.l.b16 %v1872
        %v2008 = vunpack.c.l.b16 %v1873
        %v2009 = vunpack.c.l.b16 %v1874
        %v2010 = vunpack.c.l.b16 %v1875
        %v2011 = vunpack.c.l.b16 %v1876
        %v2012 = vunpack.c.l.b16 %v1877
        %v2013 = vunpack.c.l.b16 %v1878
        %v2014 = vunpack.c.l.b16 %v1879
        %v2015 = vunpack.c.l.b16 %v1880
        %v2016 = vunpack.c.l.b16 %v1881
        %v2017 = vunpack.c.l.b16 %v1882
        %v2018 = vunpack.c.l.b16 %v1883
        %v2019 = vunpack.c.l.b16 %v1884
        %v2020 = vunpack.c.l.b16 %v1885
        %v2021 = vunpack.c.l.b16 %v1886
        %v2022 = vunpack.c.l.b16 %v1887
        %v2023 = vunpack.c.l.b16 %v1888
        %v2024 = vunpack.c.l.b16 %v1889
        %v2025 = vunpack.c.l.b16 %v1890
        %v2026 = vpack.c.b16 %v1963, %v1962
        %v2027 = vpack.c.b16 %v1965, %v1964
        %v2028 = vpack.c.b16 %v1967, %v1966
        %v2029 = vpack.c.b16 %v1969, %v1968
        %v2030 = vpack.c.b16 %v1971, %v1970
        %v2031 = vpack.c.b16 %v1973, %v1972
        %v2032 = vpack.c.b16 %v1975, %v1974
        %v2033 = vpack.c.b16 %v1977, %v1976
        %v2034 = vpack.c.b16 %v1979, %v1978
        %v2035 = vpack.c.b16 %v1981, %v1980
        %v2036 = vpack.c.b16 %v1983, %v1982
        %v2037 = vpack.c.b16 %v1985, %v1984
        %v2038 = vpack.c.b16 %v1987, %v1986
        %v2039 = vpack.c.b16 %v1989, %v1988
        %v2040 = vpack.c.b16 %v1991, %v1990
        %v2041 = vpack.c.b16 %v1993, %v1992
        %v2042 = vpack.c.b16 %v1995, %v1994
        %v2043 = vpack.c.b16 %v1997, %v1996
        %v2044 = vpack.c.b16 %v1999, %v1998
        %v2045 = vpack.c.b16 %v2001, %v2000
        %v2046 = vpack.c.b16 %v2003, %v2002
        %v2047 = vpack.c.b16 %v2005, %v2004
        %v2048 = vpack.c.b16 %v2007, %v2006
        %v2049 = vpack.c.b16 %v2009, %v2008
        %v2050 = vpack.c.b16 %v2011, %v2010
        %v2051 = vpack.c.b16 %v2013, %v2012
        %v2052 = vpack.c.b16 %v2015, %v2014
        %v2053 = vpack.c.b16 %v2017, %v2016
        %v2054 = vpack.c.b16 %v2019, %v2018
        %v2055 = vpack.c.b16 %v2021, %v2020
        %v2056 = vpack.c.b16 %v2023, %v2022
        %v2057 = vpack.c.b16 %v2025, %v2024
        %2090 = vmatprep.subr.bf16.mxu0 0
        %2091 = vmatpush1.bf16.msra.mxu0 %v2033
        %2092 = vmatprep.subr.bf16.mxu0 0
        %2093 = vmatpush1.bf16.msra.mxu0 %v2032
        %2094 = vmatprep.subr.bf16.mxu0 0
        %2095 = vmatpush1.bf16.msra.mxu0 %v2031
        %2096 = vmatprep.subr.bf16.mxu0 0
        %2097 = vmatpush1.bf16.msra.mxu0 %v2030
        %2098 = vmatprep.subr.bf16.mxu0 0
        %2099 = vmatpush1.bf16.msra.mxu0 %v2029
        %2100 = vmatprep.subr.bf16.mxu0 0
        %2101 = vmatpush1.bf16.msra.mxu0 %v2028
        %2102 = vmatprep.subr.bf16.mxu0 0
        %2103 = vmatpush1.bf16.msra.mxu0 %v2027
        %2104 = vmatprep.subr.bf16.mxu0 0
        %2105 = vmatpush1.bf16.msra.mxu0 %v2026
        %2106 = vmatprep.subr.bf16.mxu0 0
        %2107 = vmatpush2.bf16.msra.mxu0 %v2041
        %2108 = vmatprep.subr.bf16.mxu0 0
        %2109 = vmatpush2.bf16.msra.mxu0 %v2040
        %2110 = vmatprep.subr.bf16.mxu0 0
        %2111 = vmatpush2.bf16.msra.mxu0 %v2039
        %2112 = vmatprep.subr.bf16.mxu0 0
        %2113 = vmatpush2.bf16.msra.mxu0 %v2038
        %2114 = vmatprep.subr.bf16.mxu0 0
        %2115 = vmatpush2.bf16.msra.mxu0 %v2037
        %2116 = vmatprep.subr.bf16.mxu0 0
        %2117 = vmatpush2.bf16.msra.mxu0 %v2036
        %2118 = vmatprep.subr.bf16.mxu0 0
        %2119 = vmatpush2.bf16.msra.mxu0 %v2035
        %2120 = vmatprep.subr.bf16.mxu0 0
        %2121 = vmatpush2.bf16.msra.mxu0 %v2034
        %2122 = vmatprep.mubr.bf16.mxu0 %v1796
        %2123 = vmatmul.mubr.bf16.gmra.mxu0 %v1795
        %v2124 = vpop.f32.mrf.mxu0
        %v2125 = vadd.f32 %v1896, %v2124
        %v2126 = vpop.f32.mrf.mxu0
        %v2127 = vpop.f32.mrf.mxu0
        %v2128 = vadd.f32 %v1896, %v2127
        %v2129 = vpop.f32.mrf.mxu0
        %2130 = vmatprep.mubr.bf16.mxu0 %v1800
        %2131 = vmatmul.mubr.bf16.gmra.mxu0 %v1799
        %v2132 = vpop.f32.mrf.mxu0
        %v2133 = vadd.f32 %v1896, %v2132
        %v2134 = vpop.f32.mrf.mxu0
        %v2135 = vpop.f32.mrf.mxu0
        %v2136 = vadd.f32 %v1896, %v2135
        %v2137 = vpop.f32.mrf.mxu0
        %2138 = vmatprep.mubr.bf16.mxu0 %v1804
        %2139 = vmatmul.mubr.bf16.gmra.mxu0 %v1803
        %v2140 = vpop.f32.mrf.mxu0
        %v2141 = vadd.f32 %v1896, %v2140
        %v2142 = vpop.f32.mrf.mxu0
        %v2143 = vpop.f32.mrf.mxu0
        %v2144 = vadd.f32 %v1896, %v2143
        %v2145 = vpop.f32.mrf.mxu0
        %2146 = vmatprep.mubr.bf16.mxu0 %v1808
        %2147 = vmatmul.mubr.bf16.gmra.mxu0 %v1807
        %v2148 = vpop.f32.mrf.mxu0
        %v2149 = vadd.f32 %v1896, %v2148
        %v2150 = vpop.f32.mrf.mxu0
        %v2151 = vpop.f32.mrf.mxu0
        %v2152 = vadd.f32 %v1896, %v2151
        %v2153 = vpop.f32.mrf.mxu0
        %2154 = vmatprep.mubr.bf16.mxu0 %v1812
        %2155 = vmatmul.mubr.bf16.gmra.mxu0 %v1811
        %v2156 = vpop.f32.mrf.mxu0
        %v2157 = vadd.f32 %v1896, %v2156
        %v2158 = vpop.f32.mrf.mxu0
        %v2159 = vpop.f32.mrf.mxu0
        %v2160 = vadd.f32 %v1896, %v2159
        %v2161 = vpop.f32.mrf.mxu0
        %2162 = vmatprep.mubr.bf16.mxu0 %v1816
        %2163 = vmatmul.mubr.bf16.gmra.mxu0 %v1815
        %v2164 = vpop.f32.mrf.mxu0
        %v2165 = vadd.f32 %v1896, %v2164
        %v2166 = vpop.f32.mrf.mxu0
        %v2167 = vpop.f32.mrf.mxu0
        %v2168 = vadd.f32 %v1896, %v2167
        %v2169 = vpop.f32.mrf.mxu0
        %2170 = vmatprep.mubr.bf16.mxu0 %v1820
        %2171 = vmatmul.mubr.bf16.gmra.mxu0 %v1819
        %v2172 = vpop.f32.mrf.mxu0
        %v2173 = vadd.f32 %v1896, %v2172
        %v2174 = vpop.f32.mrf.mxu0
        %v2175 = vpop.f32.mrf.mxu0
        %v2176 = vadd.f32 %v1896, %v2175
        %v2177 = vpop.f32.mrf.mxu0
        %2178 = vmatprep.mubr.bf16.mxu0 %v1824
        %2179 = vmatmul.mubr.bf16.gmra.mxu0 %v1823
        %v2180 = vpop.f32.mrf.mxu0
        %v2181 = vadd.f32 %v1896, %v2180
        %v2182 = vpop.f32.mrf.mxu0
        %v2183 = vpop.f32.mrf.mxu0
        %v2184 = vadd.f32 %v1896, %v2183
        %v2185 = vpop.f32.mrf.mxu0
        %2186 = vdwg.mxu0
        %2187 = vmatprep.subr.bf16.mxu0 0
        %2188 = vmatpush1.bf16.msra.mxu0 %v2049
        %2189 = vmatprep.subr.bf16.mxu0 0
        %2190 = vmatpush1.bf16.msra.mxu0 %v2048
        %2191 = vmatprep.subr.bf16.mxu0 0
        %2192 = vmatpush1.bf16.msra.mxu0 %v2047
        %2193 = vmatprep.subr.bf16.mxu0 0
        %2194 = vmatpush1.bf16.msra.mxu0 %v2046
        %2195 = vmatprep.subr.bf16.mxu0 0
        %2196 = vmatpush1.bf16.msra.mxu0 %v2045
        %2197 = vmatprep.subr.bf16.mxu0 0
        %2198 = vmatpush1.bf16.msra.mxu0 %v2044
        %2199 = vmatprep.subr.bf16.mxu0 0
        %2200 = vmatpush1.bf16.msra.mxu0 %v2043
        %2201 = vmatprep.subr.bf16.mxu0 0
        %2202 = vmatpush1.bf16.msra.mxu0 %v2042
        %2203 = vmatprep.subr.bf16.mxu0 0
        %2204 = vmatpush2.bf16.msra.mxu0 %v2057
        %2205 = vmatprep.subr.bf16.mxu0 0
        %2206 = vmatpush2.bf16.msra.mxu0 %v2056
        %2207 = vmatprep.subr.bf16.mxu0 0
        %2208 = vmatpush2.bf16.msra.mxu0 %v2055
        %2209 = vmatprep.subr.bf16.mxu0 0
        %2210 = vmatpush2.bf16.msra.mxu0 %v2054
        %2211 = vmatprep.subr.bf16.mxu0 0
        %2212 = vmatpush2.bf16.msra.mxu0 %v2053
        %2213 = vmatprep.subr.bf16.mxu0 0
        %2214 = vmatpush2.bf16.msra.mxu0 %v2052
        %2215 = vmatprep.subr.bf16.mxu0 0
        %2216 = vmatpush2.bf16.msra.mxu0 %v2051
        %2217 = vmatprep.subr.bf16.mxu0 0
        %2218 = vmatpush2.bf16.msra.mxu0 %v2050
        %2219 = vmatprep.mubr.bf16.mxu0 %v1798
        %2220 = vmatmul.mubr.bf16.gmra.mxu0 %v1797
        %v2221 = vpop.f32.mrf.mxu0
        %v2222 = vadd.f32 %v2125, %v2221
        %v2223 = vpop.f32.mrf.mxu0
        %v2224 = vpop.f32.mrf.mxu0
        %v2225 = vadd.f32 %v2128, %v2224
        %v2226 = vpop.f32.mrf.mxu0
        %2227 = vmatprep.mubr.bf16.mxu0 %v1802
        %2228 = vmatmul.mubr.bf16.gmra.mxu0 %v1801
        %v2229 = vpop.f32.mrf.mxu0
        %v2230 = vadd.f32 %v2133, %v2229
        %v2231 = vpop.f32.mrf.mxu0
        %v2232 = vpop.f32.mrf.mxu0
        %v2233 = vadd.f32 %v2136, %v2232
        %v2234 = vpop.f32.mrf.mxu0
        %2235 = vmatprep.mubr.bf16.mxu0 %v1806
        %2236 = vmatmul.mubr.bf16.gmra.mxu0 %v1805
        %v2237 = vpop.f32.mrf.mxu0
        %v2238 = vadd.f32 %v2141, %v2237
        %v2239 = vpop.f32.mrf.mxu0
        %v2240 = vpop.f32.mrf.mxu0
        %v2241 = vadd.f32 %v2144, %v2240
        %v2242 = vpop.f32.mrf.mxu0
        %2243 = vmatprep.mubr.bf16.mxu0 %v1810
        %2244 = vmatmul.mubr.bf16.gmra.mxu0 %v1809
        %v2245 = vpop.f32.mrf.mxu0
        %v2246 = vadd.f32 %v2149, %v2245
        %v2247 = vpop.f32.mrf.mxu0
        %v2248 = vpop.f32.mrf.mxu0
        %v2249 = vadd.f32 %v2152, %v2248
        %v2250 = vpop.f32.mrf.mxu0
        %2251 = vmatprep.mubr.bf16.mxu0 %v1814
        %2252 = vmatmul.mubr.bf16.gmra.mxu0 %v1813
        %v2253 = vpop.f32.mrf.mxu0
        %v2254 = vadd.f32 %v2157, %v2253
        %v2255 = vpop.f32.mrf.mxu0
        %v2256 = vpop.f32.mrf.mxu0
        %v2257 = vadd.f32 %v2160, %v2256
        %v2258 = vpop.f32.mrf.mxu0
        %2259 = vmatprep.mubr.bf16.mxu0 %v1818
        %2260 = vmatmul.mubr.bf16.gmra.mxu0 %v1817
        %v2261 = vpop.f32.mrf.mxu0
        %v2262 = vadd.f32 %v2165, %v2261
        %v2263 = vpop.f32.mrf.mxu0
        %v2264 = vpop.f32.mrf.mxu0
        %v2265 = vadd.f32 %v2168, %v2264
        %v2266 = vpop.f32.mrf.mxu0
        %2267 = vmatprep.mubr.bf16.mxu0 %v1822
        %2268 = vmatmul.mubr.bf16.gmra.mxu0 %v1821
        %v2269 = vpop.f32.mrf.mxu0
        %v2270 = vadd.f32 %v2173, %v2269
        %v2271 = vpop.f32.mrf.mxu0
        %v2272 = vpop.f32.mrf.mxu0
        %v2273 = vadd.f32 %v2176, %v2272
        %v2274 = vpop.f32.mrf.mxu0
        %2275 = vmatprep.mubr.bf16.mxu0 %v1826
        %2276 = vmatmul.mubr.bf16.gmra.mxu0 %v1825
        %v2277 = vpop.f32.mrf.mxu0
        %v2278 = vadd.f32 %v2181, %v2277
        %v2279 = vpop.f32.mrf.mxu0
        %v2280 = vpop.f32.mrf.mxu0
        %v2281 = vadd.f32 %v2184, %v2280
        %v2282 = vpop.f32.mrf.mxu0
        %2283 = vdwg.mxu0
        %2284 = vmax.xlane.f32.xlu0 %v2222
        %v2285 = vpop.xlane.xlu0 %2284
        %2286 = vmax.xlane.f32.xlu0 %v2225
        %v2287 = vpop.xlane.xlu0 %2286
        %2288 = vmax.xlane.f32.xlu0 %v2230
        %v2289 = vpop.xlane.xlu0 %2288
        %2290 = vmax.xlane.f32.xlu0 %v2233
        %v2291 = vpop.xlane.xlu0 %2290
        %2292 = vmax.xlane.f32.xlu0 %v2238
        %v2293 = vpop.xlane.xlu0 %2292
        %2294 = vmax.xlane.f32.xlu0 %v2241
        %v2295 = vpop.xlane.xlu0 %2294
        %2296 = vmax.xlane.f32.xlu0 %v2246
        %v2297 = vpop.xlane.xlu0 %2296
        %2298 = vmax.xlane.f32.xlu0 %v2249
        %v2299 = vpop.xlane.xlu0 %2298
        %2300 = vmax.xlane.f32.xlu0 %v2254
        %v2301 = vpop.xlane.xlu0 %2300
        %2302 = vmax.xlane.f32.xlu0 %v2257
        %v2303 = vpop.xlane.xlu0 %2302
        %2304 = vmax.xlane.f32.xlu0 %v2262
        %v2305 = vpop.xlane.xlu0 %2304
        %2306 = vmax.xlane.f32.xlu0 %v2265
        %v2307 = vpop.xlane.xlu0 %2306
        %2308 = vmax.xlane.f32.xlu0 %v2270
        %v2309 = vpop.xlane.xlu0 %2308
        %2310 = vmax.xlane.f32.xlu0 %v2273
        %v2311 = vpop.xlane.xlu0 %2310
        %2312 = vmax.xlane.f32.xlu0 %v2278
        %v2313 = vpop.xlane.xlu0 %2312
        %2314 = vmax.xlane.f32.xlu0 %v2281
        %v2315 = vpop.xlane.xlu0 %2314
        %v2316 = vsub.f32 %v2222, %v2285
        %v2317 = vsub.f32 %v2225, %v2287
        %v2318 = vsub.f32 %v2230, %v2289
        %v2319 = vsub.f32 %v2233, %v2291
        %v2320 = vsub.f32 %v2238, %v2293
        %v2321 = vsub.f32 %v2241, %v2295
        %v2322 = vsub.f32 %v2246, %v2297
        %v2323 = vsub.f32 %v2249, %v2299
        %v2324 = vsub.f32 %v2254, %v2301
        %v2325 = vsub.f32 %v2257, %v2303
        %v2326 = vsub.f32 %v2262, %v2305
        %v2327 = vsub.f32 %v2265, %v2307
        %v2328 = vsub.f32 %v2270, %v2309
        %v2329 = vsub.f32 %v2273, %v2311
        %v2330 = vsub.f32 %v2278, %v2313
        %v2331 = vsub.f32 %v2281, %v2315
        %v2332 = vmul.f32 %v2316, 1.442695
        %v2333 = vpow.pop %v2332
        %v2334 = vmul.f32 %v2317, 1.442695
        %v2335 = vpow.pop %v2334
        %v2336 = vmul.f32 %v2318, 1.442695
        %v2337 = vpow.pop %v2336
        %v2338 = vmul.f32 %v2319, 1.442695
        %v2339 = vpow.pop %v2338
        %v2340 = vmul.f32 %v2320, 1.442695
        %v2341 = vpow.pop %v2340
        %v2342 = vmul.f32 %v2321, 1.442695
        %v2343 = vpow.pop %v2342
        %v2344 = vmul.f32 %v2322, 1.442695
        %v2345 = vpow.pop %v2344
        %v2346 = vmul.f32 %v2323, 1.442695
        %v2347 = vpow.pop %v2346
        %v2348 = vmul.f32 %v2324, 1.442695
        %v2349 = vpow.pop %v2348
        %v2350 = vmul.f32 %v2325, 1.442695
        %v2351 = vpow.pop %v2350
        %v2352 = vmul.f32 %v2326, 1.442695
        %v2353 = vpow.pop %v2352
        %v2354 = vmul.f32 %v2327, 1.442695
        %v2355 = vpow.pop %v2354
        %v2356 = vmul.f32 %v2328, 1.442695
        %v2357 = vpow.pop %v2356
        %v2358 = vmul.f32 %v2329, 1.442695
        %v2359 = vpow.pop %v2358
        %v2360 = vmul.f32 %v2330, 1.442695
        %v2361 = vpow.pop %v2360
        %v2362 = vmul.f32 %v2331, 1.442695
        %v2363 = vpow.pop %v2362
        %2364 = vadd.xlane.f32.xlu0 %v2333
        %v2365 = vpop.xlane.xlu0 %2364
        %2366 = vadd.xlane.f32.xlu0 %v2335
        %v2367 = vpop.xlane.xlu0 %2366
        %2368 = vadd.xlane.f32.xlu0 %v2337
        %v2369 = vpop.xlane.xlu0 %2368
        %2370 = vadd.xlane.f32.xlu0 %v2339
        %v2371 = vpop.xlane.xlu0 %2370
        %2372 = vadd.xlane.f32.xlu0 %v2341
        %v2373 = vpop.xlane.xlu0 %2372
        %2374 = vadd.xlane.f32.xlu0 %v2343
        %v2375 = vpop.xlane.xlu0 %2374
        %2376 = vadd.xlane.f32.xlu0 %v2345
        %v2377 = vpop.xlane.xlu0 %2376
        %2378 = vadd.xlane.f32.xlu0 %v2347
        %v2379 = vpop.xlane.xlu0 %2378
        %2380 = vadd.xlane.f32.xlu0 %v2349
        %v2381 = vpop.xlane.xlu0 %2380
        %2382 = vadd.xlane.f32.xlu0 %v2351
        %v2383 = vpop.xlane.xlu0 %2382
        %2384 = vadd.xlane.f32.xlu0 %v2353
        %v2385 = vpop.xlane.xlu0 %2384
        %2386 = vadd.xlane.f32.xlu0 %v2355
        %v2387 = vpop.xlane.xlu0 %2386
        %2388 = vadd.xlane.f32.xlu0 %v2357
        %v2389 = vpop.xlane.xlu0 %2388
        %2390 = vadd.xlane.f32.xlu0 %v2359
        %v2391 = vpop.xlane.xlu0 %2390
        %2392 = vadd.xlane.f32.xlu0 %v2361
        %v2393 = vpop.xlane.xlu0 %2392
        %2394 = vadd.xlane.f32.xlu0 %v2363
        %v2395 = vpop.xlane.xlu0 %2394
        %v2396 = vlog2.pop %v2365
        %v2397 = vmul.f32 %v2396, 0.6931472
        %v2398 = vlog2.pop %v2367
        %v2399 = vmul.f32 %v2398, 0.6931472
        %v2400 = vlog2.pop %v2369
        %v2401 = vmul.f32 %v2400, 0.6931472
        %v2402 = vlog2.pop %v2371
        %v2403 = vmul.f32 %v2402, 0.6931472
        %v2404 = vlog2.pop %v2373
        %v2405 = vmul.f32 %v2404, 0.6931472
        %v2406 = vlog2.pop %v2375
        %v2407 = vmul.f32 %v2406, 0.6931472
        %v2408 = vlog2.pop %v2377
        %v2409 = vmul.f32 %v2408, 0.6931472
        %v2410 = vlog2.pop %v2379
        %v2411 = vmul.f32 %v2410, 0.6931472
        %v2412 = vlog2.pop %v2381
        %v2413 = vmul.f32 %v2412, 0.6931472
        %v2414 = vlog2.pop %v2383
        %v2415 = vmul.f32 %v2414, 0.6931472
        %v2416 = vlog2.pop %v2385
        %v2417 = vmul.f32 %v2416, 0.6931472
        %v2418 = vlog2.pop %v2387
        %v2419 = vmul.f32 %v2418, 0.6931472
        %v2420 = vlog2.pop %v2389
        %v2421 = vmul.f32 %v2420, 0.6931472
        %v2422 = vlog2.pop %v2391
        %v2423 = vmul.f32 %v2422, 0.6931472
        %v2424 = vlog2.pop %v2393
        %v2425 = vmul.f32 %v2424, 0.6931472
        %v2426 = vlog2.pop %v2395
        %v2427 = vmul.f32 %v2426, 0.6931472
        %v2428 = vsub.f32 %v2316, %v2397
        %v2429 = vsub.f32 %v2317, %v2399
        %v2430 = vsub.f32 %v2318, %v2401
        %v2431 = vsub.f32 %v2319, %v2403
        %v2432 = vsub.f32 %v2320, %v2405
        %v2433 = vsub.f32 %v2321, %v2407
        %v2434 = vsub.f32 %v2322, %v2409
        %v2435 = vsub.f32 %v2323, %v2411
        %v2436 = vsub.f32 %v2324, %v2413
        %v2437 = vsub.f32 %v2325, %v2415
        %v2438 = vsub.f32 %v2326, %v2417
        %v2439 = vsub.f32 %v2327, %v2419
        %v2440 = vsub.f32 %v2328, %v2421
        %v2441 = vsub.f32 %v2329, %v2423
        %v2442 = vsub.f32 %v2330, %v2425
        %v2443 = vsub.f32 %v2331, %v2427
        %2444 = vst [vmem:[%s378] sm:$0xff] %v2428
        %2445 = vst [vmem:[%s378 + $0x8] sm:$0xff] %v2429
        %2446 = vst [vmem:[%s378 + $0x10] sm:$0xff] %v2430
        %2447 = vst [vmem:[%s378 + $0x18] sm:$0xff] %v2431
        %2448 = vst [vmem:[%s378 + $0x20] sm:$0xff] %v2432
        %2449 = vst [vmem:[%s378 + $0x28] sm:$0xff] %v2433
        %2450 = vst [vmem:[%s378 + $0x30] sm:$0xff] %v2434
        %2451 = vst [vmem:[%s378 + $0x38] sm:$0xff] %v2435
        %2452 = vst [vmem:[%s378 + $0x40] sm:$0xff] %v2436
        %2453 = vst [vmem:[%s378 + $0x48] sm:$0xff] %v2437
        %2454 = vst [vmem:[%s378 + $0x50] sm:$0xff] %v2438
        %2455 = vst [vmem:[%s378 + $0x58] sm:$0xff] %v2439
        %2456 = vst [vmem:[%s378 + $0x60] sm:$0xff] %v2440
        %2457 = vst [vmem:[%s378 + $0x68] sm:$0xff] %v2441
        %2458 = vst [vmem:[%s378 + $0x70] sm:$0xff] %v2442
        %2459 = vst [vmem:[%s378 + $0x78] sm:$0xff] %v2443
        %s2460 = smul.u32 16, %s22
        %p2461 = scmp.lt.s32.totalorder %s2460, 31
        %s2462 = scalar_select %p2461, %s2460, 31
        %s2463 = smul.addr %s2462, 8
        %s2464 = scalar_lea.vmem %s9, %s2463
        // Predicated region
        $region69: #{_mlp_forward_jit.1} parent=55 // pred_check
          %p2465 = pneg %p234
        $region70: #{_mlp_forward_jit.1} parent=55 // pred_check_branch
          %2467 = sbr.rel (%p2465) target = $region72
        $region71: #{_mlp_forward_jit.1} parent=55 // pred_region
          %s2468 = smul.u32 16, %s22
        $region72: #{_mlp_forward_jit.1} parent=55 // pred_fallthru
          _
      $region56: #{_mlp_forward_jit.1} parent=5 // pred_fallthru
        _
      %p2469 = scmp.le.s32.totalorder 2, %s17
      // Predicated region
      $region73: #{_mlp_forward_jit.1} parent=5 // pred_check
        %p2470 = pneg %p2469
      $region74: #{_mlp_forward_jit.1} parent=5 // pred_check_branch
        %2472 = sbr.rel (%p2470) target = $region76
      $region75: #{_mlp_forward_jit.1} parent=5 // pred_region
        %s2473 = ssub.s32 %s17, 2
        // Predicated region
        $region77: #{_mlp_forward_jit.1} parent=75 // pred_check
          %p2474 = pneg %p240
        $region78: #{_mlp_forward_jit.1} parent=75 // pred_check_branch
          %2476 = sbr.rel (%p2474) target = $region80
        $region79: #{_mlp_forward_jit.1} parent=75 // pred_region
          %s2477 = smul.u32 16, %s23
          %p2478 = scmp.lt.s32.totalorder %s2477, 31
          %s2479 = scalar_select %p2478, %s2477, 31
          %s2480 = smul.addr %s2479, 8
          %s2481 = scalar_lea.vmem %s9, %s2480
        $region80: #{_mlp_forward_jit.1} parent=75 // pred_fallthru
          _
      $region76: #{_mlp_forward_jit.1} parent=5 // pred_fallthru
        _
    $region6: #{_mlp_forward_jit.1} parent=1 // loop_footer
      %s21 = sadd.s32 1, %s17
    $region7: #{_mlp_forward_jit.1} parent=1 // loop_footer_branch
      %16 = sbr.rel target = $region3
    $region8: #{_mlp_forward_jit.1} parent=1 // loop_exit
      _
    %2482 = vsyncpa [#allocation3], 1
    %s2483 = scalar_lea.sflag [#allocation3], 1
    %2484 = vsyncpa %s2483, 1
    %2485 = vsyncpa [#allocation5], 1

</llo_original>
